<compile_context>
chip_gen: v7x
topology: tpu7x:2x2x1
jax: 0.10.0
libtpu: 0.0.40
codegen_flags: <defaults>
</compile_context>

<pallas_src>
import math
import functools

import jax
import jax.numpy as jnp
from jax.experimental import pallas as pl
from jax.experimental.pallas import tpu as pltpu


# --------------------------- small shape helpers ---------------------------- #

def _round_up(x, m):
    return ((x + m - 1) // m) * m


def _pick_tile(dim, target, align):
    """Full (aligned) dim if it is small, otherwise the aligned target tile."""
    return _round_up(dim, align) if dim <= target else target


_VMEM_LIMIT = 48 * 1024 * 1024  # explicit scoped-VMEM budget (< v7x's 64 MiB)


# ----------------------------- Pallas kernels ------------------------------ #

def _proj_kernel(x_ref, wt_ref, b_ref, o_ref, acc_ref):
    """Tiled GEMM + bias.  Blocks: x (tm,tk), wt (tk,tn), b (1,tn), o (tm,tn)."""
    k = pl.program_id(3)

    @pl.when(k == 0)
    def _():
        acc_ref[...] = jnp.zeros_like(acc_ref)

    acc_ref[...] += jnp.dot(x_ref[...], wt_ref[...],
                            preferred_element_type=jnp.float32)

    @pl.when(k == pl.num_programs(3) - 1)
    def _():
        o_ref[...] = (acc_ref[...] + b_ref[...]).astype(o_ref.dtype)


def _sparsity_kernel(q_ref, ks_ref, m_ref, *, inv_L_K):
    # Per batch, all heads at once:
    #   M = max_j(Q K_sample^T) - sum_j(Q K_sample^T) / L_K
    q = q_ref[...]                                  # (H, L_Q, d_head)
    ks = ks_ref[...]                                # (H, U_part, d_head)
    s = jnp.einsum("hqd,hkd->hqk", q, ks,
                   preferred_element_type=jnp.float32)   # (H, L_Q, U_part)
    # Lane-dense output: last dim is L_Q.
    m_ref[...] = jnp.max(s, axis=-1) - jnp.sum(s, axis=-1) * inv_L_K


def _attn_kernel(qr_ref, k_ref, v_ref, o_ref, *, scale):
    # Per batch, all heads at once: softmax(Q_reduce K^T / sqrt(d)) V
    qr = qr_ref[...]                                # (H, u, d_head)
    k = k_ref[...]                                  # (H, L_K, d_head)
    v = v_ref[...]                                  # (H, L_K, d_head)
    s = jnp.einsum("hqd,hkd->hqk", qr, k,
                   preferred_element_type=jnp.float32) * scale   # (H, u, L_K)
    s = s - jnp.max(s, axis=-1, keepdims=True)      # stable softmax
    p = jnp.exp(s)
    p = p * pl.reciprocal(jnp.sum(p, axis=-1, keepdims=True), approx=True)
    o_ref[...] = jnp.einsum("hqk,hkd->hqd", p, v,
                            preferred_element_type=jnp.float32
                            ).astype(o_ref.dtype)


# ----------------------------- Pallas wrappers ----------------------------- #

def batched_linear(x, wt, b, *, tm=256, tn=256, tk=512):
    """y[p] = x[p] @ wt[p] + b[p].

    x : (P, M, K)   wt : (P, K, N) (already transposed)   b : (P, N)
    Returns (P, M, N) float32.  Tiled over (P, M, N, K) with an f32 VMEM
    accumulator; inputs are zero-padded to tile multiples (exact result).
    """
    P, M, K = x.shape
    N = wt.shape[2]

    tm = _pick_tile(M, tm, 8)
    tn = _pick_tile(N, tn, 128)
    tk = _pick_tile(K, tk, 128)
    Mp, Np, Kp = _round_up(M, tm), _round_up(N, tn), _round_up(K, tk)

    xp = jnp.pad(x, ((0, 0), (0, Mp - M), (0, Kp - K)))
    wtp = jnp.pad(wt, ((0, 0), (0, Kp - K), (0, Np - N)))
    bp = jnp.pad(b, ((0, 0), (0, Np - N))).reshape(P, 1, Np)

    grid = (P, Mp // tm, Np // tn, Kp // tk)

    out = pl.pallas_call(
        _proj_kernel,
        out_shape=jax.ShapeDtypeStruct((P, Mp, Np), jnp.float32),
        grid=grid,
        in_specs=[
            pl.BlockSpec((pl.Squeezed(), tm, tk), lambda p, i, j, k: (p, i, k)),
            pl.BlockSpec((pl.Squeezed(), tk, tn), lambda p, i, j, k: (p, k, j)),
            pl.BlockSpec((pl.Squeezed(), 1, tn), lambda p, i, j, k: (p, 0, j)),
        ],
        out_specs=pl.BlockSpec((pl.Squeezed(), tm, tn),
                               lambda p, i, j, k: (p, i, j)),
        scratch_shapes=[pltpu.VMEM((tm, tn), jnp.float32)],
        compiler_params=pltpu.CompilerParams(
            dimension_semantics=("parallel", "parallel", "parallel", "arbitrary"),
            vmem_limit_bytes=_VMEM_LIMIT),
    )(xp, wtp, bp)
    return out[:, :M, :N]


def sparsity_scores(q4, k_sample, L_K):
    """q4: (B,H,L_Q,d); k_sample: (B,H,U_part,d) -> M: (B,H,L_Q) (lane-dense)."""
    B, H, L_Q, d_t = q4.shape
    U = k_sample.shape[2]
    return pl.pallas_call(
        functools.partial(_sparsity_kernel, inv_L_K=1.0 / float(L_K)),
        out_shape=jax.ShapeDtypeStruct((B, H, L_Q), jnp.float32),
        grid=(B,),
        in_specs=[
            pl.BlockSpec((pl.Squeezed(), H, L_Q, d_t), lambda b: (b, 0, 0, 0)),
            pl.BlockSpec((pl.Squeezed(), H, U, d_t), lambda b: (b, 0, 0, 0)),
        ],
        out_specs=pl.BlockSpec((pl.Squeezed(), H, L_Q), lambda b: (b, 0, 0)),
        compiler_params=pltpu.CompilerParams(
            dimension_semantics=("parallel",),
            vmem_limit_bytes=_VMEM_LIMIT),
    )(q4, k_sample)


def sparse_attention(q_red, k4, v4):
    """q_red: (B,H,u,d); k4,v4: (B,H,L_K,d) -> (B,H,u,d).  All heads per step."""
    B, H, u, d_t = q_red.shape
    L_K = k4.shape[2]
    return pl.pallas_call(
        functools.partial(_attn_kernel, scale=1.0 / math.sqrt(d_t)),
        out_shape=jax.ShapeDtypeStruct((B, H, u, d_t), jnp.float32),
        grid=(B,),
        in_specs=[
            pl.BlockSpec((pl.Squeezed(), H, u, d_t), lambda b: (b, 0, 0, 0)),
            pl.BlockSpec((pl.Squeezed(), H, L_K, d_t), lambda b: (b, 0, 0, 0)),
            pl.BlockSpec((pl.Squeezed(), H, L_K, d_t), lambda b: (b, 0, 0, 0)),
        ],
        out_specs=pl.BlockSpec((pl.Squeezed(), H, u, d_t),
                               lambda b: (b, 0, 0, 0)),
        compiler_params=pltpu.CompilerParams(
            dimension_semantics=("parallel",),
            vmem_limit_bytes=_VMEM_LIMIT),
    )(q_red, k4, v4)


# ------------------------------ Module logic ------------------------------- #

def init_params(key, d_model):
    """nn.Linear-style deterministic init: U(-1/sqrt(in), 1/sqrt(in))."""
    bound = 1.0 / math.sqrt(d_model)
    params = {}
    for name in ("w_q", "w_k", "w_v", "w_concat"):
        key, kw, kb = jax.random.split(key, 3)
        params[name] = {
            "w": jax.random.uniform(kw, (d_model, d_model), jnp.float32,
                                    -bound, bound),
            "b": jax.random.uniform(kb, (d_model,), jnp.float32, -bound, bound),
        }
    return params


def prepare_weights(params):
    """Pre-transpose / pre-stack once (review: no per-call w.T, fused QKV)."""
    wt_qkv = jnp.stack([params["w_q"]["w"].T,
                        params["w_k"]["w"].T,
                        params["w_v"]["w"].T])              # (3, D, D)
    b_qkv = jnp.stack([params["w_q"]["b"],
                       params["w_k"]["b"],
                       params["w_v"]["b"]])                 # (3, D)
    wt_out = params["w_concat"]["w"].T[None]                # (1, D, D)
    b_out = params["w_concat"]["b"][None]                   # (1, D)
    return {"wt_qkv": wt_qkv, "b_qkv": b_qkv,
            "wt_out": wt_out, "b_out": b_out}


def multi_head_attention(wp, q, k, v, sample_key, *, n_head, sampling_factor):
    B, L, d_model = q.shape
    d_t = d_model // n_head

    # Fused Q/K/V projection: one pallas_call over a stacked P=3 axis
    # (q, k, v may be different tensors, so weights cannot be concatenated on N).
    x_stack = jnp.stack([q.reshape(B * L, d_model),
                         k.reshape(B * L, d_model),
                         v.reshape(B * L, d_model)])         # (3, B*L, D)
    qkv = batched_linear(x_stack, wp["wt_qkv"], wp["b_qkv"])  # (3, B*L, D)
    q2 = qkv[0].reshape(B, L, d_model)
    k2 = qkv[1].reshape(B, L, d_model)
    v2 = qkv[2].reshape(B, L, d_model)

    # Head split: q uses a raw view() (reference quirk), k/v use view+transpose.
    q4 = q2.reshape(B, n_head, L, d_t)
    k4 = k2.reshape(B, L, n_head, d_t).transpose(0, 2, 1, 3)
    v4 = v2.reshape(B, L, n_head, d_t).transpose(0, 2, 1, 3)

    # ProbSparse bookkeeping (scalar, Python-level — same formulas as reference).
    L_K = L_Q = L
    log_L_K = int(math.ceil(math.log1p(L_K)))
    log_L_Q = int(math.ceil(math.log1p(L_Q)))
    U_part = min(sampling_factor * L_Q * log_L_K, L_K)
    u = min(sampling_factor * log_L_Q, L_Q)

    # Random key-sampling (reference uses torch.randint; deterministic here).
    index_sample = jax.random.randint(sample_key, (U_part,), 0, L_K)
    # TODO(synk): the K_sample / Q_reduce gathers stay in XLA glue; a
    # scalar-prefetch DMA-gather variant would save one HBM round trip each.
    K_sample = k4[:, :, index_sample, :]                     # (B, H, U_part, d_t)

    # Sparsity measure M (Pallas kernel, lane-dense (B,H,L_Q) output).
    M = sparsity_scores(q4, K_sample, L_K)                   # (B, H, L_Q)

    # Select the u queries with the SMALLEST M (reference uses largest=False).
    _, M_top = jax.lax.top_k(-M, u)                          # (B, H, u)
    Q_reduce = jnp.take_along_axis(q4, M_top[..., None], axis=2)  # (B, H, u, d_t)

    # Scaled-dot-product attention on the reduced query set (Pallas kernel).
    out4 = sparse_attention(Q_reduce, k4, v4)                # (B, H, u, d_t)

    # concat: (B, H, u, d_t) -> (B, u, d_model), then output projection.
    out = out4.transpose(0, 2, 1, 3).reshape(B, u, d_model)
    out = batched_linear(out.reshape(1, B * u, d_model),
                         wp["wt_out"], wp["b_out"])[0]
    return out.reshape(B, u, d_model)


if __name__ == "__main__":
    # Small shapes consistent with the module (constructor takes d_model, n_head).
    B, L, D_MODEL, N_HEAD, SAMPLING_FACTOR = 2, 16, 32, 4, 5

    root = jax.random.PRNGKey(0)
    kq, kk, kv, kparams, ksample = jax.random.split(root, 5)
    q_in = jax.random.normal(kq, (B, L, D_MODEL), jnp.float32)
    k_in = jax.random.normal(kk, (B, L, D_MODEL), jnp.float32)
    v_in = jax.random.normal(kv, (B, L, D_MODEL), jnp.float32)

    params = init_params(kparams, D_MODEL)
    wp = prepare_weights(params)

    fwd = jax.jit(functools.partial(multi_head_attention,
                                    n_head=N_HEAD,
                                    sampling_factor=SAMPLING_FACTOR))
    out = fwd(wp, q_in, k_in, v_in, ksample)
    jax.block_until_ready(out)
    assert out.ndim == 3 and out.shape[0] == B and out.shape[2] == D_MODEL
    assert jnp.all(jnp.isfinite(out))
    print("KERNEL_OK")
</pallas_src>

<mosaic_0001>
module attributes {stable_mosaic.version = 11 : i64} {
  func.func @_proj_kernel(%arg0: i32, %arg1: i32, %arg2: i32, %arg3: i32, %arg4: memref<1x32x128xf32, #tpu.memory_space<vmem>>, %arg5: memref<1x128x128xf32, #tpu.memory_space<vmem>>, %arg6: memref<1x1x128xf32, #tpu.memory_space<vmem>>, %arg7: memref<1x32x128xf32, #tpu.memory_space<vmem>>, %arg8: memref<32x128xf32, #tpu.memory_space<vmem>>) attributes {dimension_semantics = [#tpu.dimension_semantics<parallel>, #tpu.dimension_semantics<parallel>, #tpu.dimension_semantics<parallel>, #tpu.dimension_semantics<arbitrary>], iteration_bounds = array<i64: 3, 1, 1, 1>, scalar_prefetch = 0 : i64, scratch_operands = 1 : i64, tpu.core_type = #tpu.core_type<tc>, window_params = [{transform_indices = @transform_0, window_bounds = array<i64: 1, 32, 128>}, {transform_indices = @transform_1, window_bounds = array<i64: 1, 128, 128>}, {transform_indices = @transform_2, window_bounds = array<i64: 1, 1, 128>}, {transform_indices = @transform_3, window_bounds = array<i64: 1, 32, 128>}]} {
    %c0_i32 = arith.constant 0 : i32
    %0 = arith.cmpi eq, %arg3, %c0_i32 : i32
    %1 = arith.extui %0 : i1 to i32
    %c0_i32_0 = arith.constant 0 : i32
    %2 = arith.cmpi ne, %1, %c0_i32_0 : i32
    scf.if %2 {
      %cst_12 = arith.constant 0.000000e+00 : f32
      %14 = vector.broadcast %cst_12 : f32 to vector<32x128xf32>
      %c0_13 = arith.constant 0 : index
      %c0_14 = arith.constant 0 : index
      %15 = vector.load %arg8[%c0_13, %c0_14] : memref<32x128xf32, #tpu.memory_space<vmem>>, vector<32x128xf32>
      tpu.vector_store %arg8[%c0_13, %c0_14], %14 {strides = array<i32>} : memref<32x128xf32, #tpu.memory_space<vmem>>, vector<32x128xf32>,
    } else {
    }
    %c0 = arith.constant 0 : index
    %c0_1 = arith.constant 0 : index
    %3 = vector.load %arg8[%c0, %c0_1] : memref<32x128xf32, #tpu.memory_space<vmem>>, vector<32x128xf32>
    %c0_2 = arith.constant 0 : index
    %c0_3 = arith.constant 0 : index
    %c0_4 = arith.constant 0 : index
    %4 = vector.load %arg4[%c0_2, %c0_3, %c0_4] : memref<1x32x128xf32, #tpu.memory_space<vmem>>, vector<1x32x128xf32>
    %5 = vector.shape_cast %4 : vector<1x32x128xf32> to vector<32x128xf32>
    %c0_5 = arith.constant 0 : index
    %c0_6 = arith.constant 0 : index
    %c0_7 = arith.constant 0 : index
    %6 = vector.load %arg5[%c0_5, %c0_6, %c0_7] : memref<1x128x128xf32, #tpu.memory_space<vmem>>, vector<1x128x128xf32>
    %7 = vector.shape_cast %6 : vector<1x128x128xf32> to vector<128x128xf32>
    %cst = arith.constant dense<0.000000e+00> : vector<32x128xf32>
    %8 = tpu.matmul %5, %7, %cst {dimension_numbers = #tpu.dot_dimension_numbers<[1], [0], [0], [1], [0, 0, 1, 1], [], []>} : vector<32x128xf32>, vector<128x128xf32>, vector<32x128xf32> -> vector<32x128xf32>
    %9 = arith.addf %3, %8 : vector<32x128xf32>
    %c0_8 = arith.constant 0 : index
    %c0_9 = arith.constant 0 : index
    %10 = vector.load %arg8[%c0_8, %c0_9] : memref<32x128xf32, #tpu.memory_space<vmem>>, vector<32x128xf32>
    tpu.vector_store %arg8[%c0_8, %c0_9], %9 {strides = array<i32>} : memref<32x128xf32, #tpu.memory_space<vmem>>, vector<32x128xf32>,
    %c0_i32_10 = arith.constant 0 : i32
    %11 = arith.cmpi eq, %arg3, %c0_i32_10 : i32
    %12 = arith.extui %11 : i1 to i32
    %c0_i32_11 = arith.constant 0 : i32
    %13 = arith.cmpi ne, %12, %c0_i32_11 : i32
    scf.if %13 {
      %c0_12 = arith.constant 0 : index
      %c0_13 = arith.constant 0 : index
      %14 = vector.load %arg8[%c0_12, %c0_13] : memref<32x128xf32, #tpu.memory_space<vmem>>, vector<32x128xf32>
      %c0_14 = arith.constant 0 : index
      %c0_15 = arith.constant 0 : index
      %c0_16 = arith.constant 0 : index
      %15 = vector.load %arg6[%c0_14, %c0_15, %c0_16] : memref<1x1x128xf32, #tpu.memory_space<vmem>>, vector<1x1x128xf32>
      %16 = vector.shape_cast %15 : vector<1x1x128xf32> to vector<1x128xf32>
      %17 = vector.broadcast %16 : vector<1x128xf32> to vector<32x128xf32>
      %18 = arith.addf %14, %17 : vector<32x128xf32>
      %c0_17 = arith.constant 0 : index
      %c0_18 = arith.constant 0 : index
      %c0_19 = arith.constant 0 : index
      %19 = vector.load %arg7[%c0_17, %c0_18, %c0_19] : memref<1x32x128xf32, #tpu.memory_space<vmem>>, vector<1x32x128xf32>
      %20 = vector.shape_cast %19 : vector<1x32x128xf32> to vector<32x128xf32>
      %21 = vector.shape_cast %18 : vector<32x128xf32> to vector<1x32x128xf32>
      tpu.vector_store %arg7[%c0_17, %c0_18, %c0_19], %21 {strides = array<i32>} : memref<1x32x128xf32, #tpu.memory_space<vmem>>, vector<1x32x128xf32>,
    } else {
    }
    return
  }
  func.func @transform_0(%arg0: i32, %arg1: i32, %arg2: i32, %arg3: i32) -> (i32, i32, i32) {
    %c0_i32 = arith.constant 0 : i32
    return %arg0, %arg1, %arg3 : i32, i32, i32
  }
  func.func @transform_1(%arg0: i32, %arg1: i32, %arg2: i32, %arg3: i32) -> (i32, i32, i32) {
    %c0_i32 = arith.constant 0 : i32
    return %arg0, %arg3, %arg2 : i32, i32, i32
  }
  func.func @transform_2(%arg0: i32, %arg1: i32, %arg2: i32, %arg3: i32) -> (i32, i32, i32) {
    %c0_i32 = arith.constant 0 : i32
    %c0_i32_0 = arith.constant 0 : i32
    return %arg0, %c0_i32, %arg2 : i32, i32, i32
  }
  func.func @transform_3(%arg0: i32, %arg1: i32, %arg2: i32, %arg3: i32) -> (i32, i32, i32) {
    %c0_i32 = arith.constant 0 : i32
    return %arg0, %arg1, %arg2 : i32, i32, i32
  }
}

module attributes {stable_mosaic.version = 11 : i64} {
  func.func @_sparsity_kernel(%arg0: i32, %arg1: memref<1x4x16x8xf32, #tpu.memory_space<vmem>>, %arg2: memref<1x4x16x8xf32, #tpu.memory_space<vmem>>, %arg3: memref<1x4x16xf32, #tpu.memory_space<vmem>>) attributes {dimension_semantics = [#tpu.dimension_semantics<parallel>], iteration_bounds = array<i64: 2>, scalar_prefetch = 0 : i64, scratch_operands = 0 : i64, tpu.core_type = #tpu.core_type<tc>, window_params = [{transform_indices = @transform_0, window_bounds = array<i64: 1, 4, 16, 8>}, {transform_indices = @transform_1, window_bounds = array<i64: 1, 4, 16, 8>}, {transform_indices = @transform_2, window_bounds = array<i64: 1, 4, 16>}]} {
    %c0 = arith.constant 0 : index
    %c0_0 = arith.constant 0 : index
    %c0_1 = arith.constant 0 : index
    %c0_2 = arith.constant 0 : index
    %0 = vector.load %arg1[%c0, %c0_0, %c0_1, %c0_2] : memref<1x4x16x8xf32, #tpu.memory_space<vmem>>, vector<1x4x16x8xf32>
    %1 = vector.shape_cast %0 : vector<1x4x16x8xf32> to vector<4x16x8xf32>
    %c0_3 = arith.constant 0 : index
    %c0_4 = arith.constant 0 : index
    %c0_5 = arith.constant 0 : index
    %c0_6 = arith.constant 0 : index
    %2 = vector.load %arg2[%c0_3, %c0_4, %c0_5, %c0_6] : memref<1x4x16x8xf32, #tpu.memory_space<vmem>>, vector<1x4x16x8xf32>
    %3 = vector.shape_cast %2 : vector<1x4x16x8xf32> to vector<4x16x8xf32>
    "tpu.trace_start"() <{level = 10 : i32, message = "hqd,hkd->hqk"}> : () -> ()
    %cst = arith.constant dense<0.000000e+00> : vector<4x16x16xf32>
    %4 = tpu.matmul %1, %3, %cst {dimension_numbers = #tpu.dot_dimension_numbers<[2], [2], [1], [1], [0, 0, 0, 1, 1, 1], [0], [0]>} : vector<4x16x8xf32>, vector<4x16x8xf32>, vector<4x16x16xf32> -> vector<4x16x16xf32>
    "tpu.trace_stop"() : () -> ()
    %cst_7 = arith.constant dense<0xFF800000> : vector<4x16xf32>
    %5 = vector.multi_reduction <maximumf>, %4, %cst_7 [2] : vector<4x16x16xf32> to vector<4x16xf32>
    %cst_8 = arith.constant dense<0.000000e+00> : vector<4x16xf32>
    %6 = vector.multi_reduction <add>, %4, %cst_8 [2] : vector<4x16x16xf32> to vector<4x16xf32>
    %cst_9 = arith.constant 6.250000e-02 : f32
    %7 = vector.broadcast %cst_9 : f32 to vector<4x16xf32>
    %8 = arith.mulf %6, %7 : vector<4x16xf32>
    %9 = arith.subf %5, %8 : vector<4x16xf32>
    %c0_10 = arith.constant 0 : index
    %c0_11 = arith.constant 0 : index
    %c0_12 = arith.constant 0 : index
    %10 = vector.load %arg3[%c0_10, %c0_11, %c0_12] : memref<1x4x16xf32, #tpu.memory_space<vmem>>, vector<1x4x16xf32>
    %11 = vector.shape_cast %10 : vector<1x4x16xf32> to vector<4x16xf32>
    %12 = vector.shape_cast %9 : vector<4x16xf32> to vector<1x4x16xf32>
    tpu.vector_store %arg3[%c0_10, %c0_11, %c0_12], %12 {strides = array<i32>} : memref<1x4x16xf32, #tpu.memory_space<vmem>>, vector<1x4x16xf32>,
    return
  }
  func.func @transform_0(%arg0: i32) -> (i32, i32, i32, i32) {
    %c0_i32 = arith.constant 0 : i32
    %c0_i32_0 = arith.constant 0 : i32
    %c0_i32_1 = arith.constant 0 : i32
    %c0_i32_2 = arith.constant 0 : i32
    return %arg0, %c0_i32, %c0_i32_0, %c0_i32_1 : i32, i32, i32, i32
  }
  func.func @transform_1(%arg0: i32) -> (i32, i32, i32, i32) {
    %c0_i32 = arith.constant 0 : i32
    %c0_i32_0 = arith.constant 0 : i32
    %c0_i32_1 = arith.constant 0 : i32
    %c0_i32_2 = arith.constant 0 : i32
    return %arg0, %c0_i32, %c0_i32_0, %c0_i32_1 : i32, i32, i32, i32
  }
  func.func @transform_2(%arg0: i32) -> (i32, i32, i32) {
    %c0_i32 = arith.constant 0 : i32
    %c0_i32_0 = arith.constant 0 : i32
    %c0_i32_1 = arith.constant 0 : i32
    return %arg0, %c0_i32, %c0_i32_0 : i32, i32, i32
  }
}

module attributes {stable_mosaic.version = 11 : i64} {
  func.func @_attn_kernel(%arg0: i32, %arg1: memref<1x4x15x8xf32, #tpu.memory_space<vmem>>, %arg2: memref<1x4x16x8xf32, #tpu.memory_space<vmem>>, %arg3: memref<1x4x16x8xf32, #tpu.memory_space<vmem>>, %arg4: memref<1x4x15x8xf32, #tpu.memory_space<vmem>>) attributes {dimension_semantics = [#tpu.dimension_semantics<parallel>], iteration_bounds = array<i64: 2>, scalar_prefetch = 0 : i64, scratch_operands = 0 : i64, tpu.core_type = #tpu.core_type<tc>, window_params = [{transform_indices = @transform_0, window_bounds = array<i64: 1, 4, 15, 8>}, {transform_indices = @transform_1, window_bounds = array<i64: 1, 4, 16, 8>}, {transform_indices = @transform_2, window_bounds = array<i64: 1, 4, 16, 8>}, {transform_indices = @transform_3, window_bounds = array<i64: 1, 4, 15, 8>}]} {
    %c0 = arith.constant 0 : index
    %c0_0 = arith.constant 0 : index
    %c0_1 = arith.constant 0 : index
    %c0_2 = arith.constant 0 : index
    %0 = vector.load %arg1[%c0, %c0_0, %c0_1, %c0_2] : memref<1x4x15x8xf32, #tpu.memory_space<vmem>>, vector<1x4x15x8xf32>
    %1 = vector.shape_cast %0 : vector<1x4x15x8xf32> to vector<4x15x8xf32>
    %c0_3 = arith.constant 0 : index
    %c0_4 = arith.constant 0 : index
    %c0_5 = arith.constant 0 : index
    %c0_6 = arith.constant 0 : index
    %2 = vector.load %arg2[%c0_3, %c0_4, %c0_5, %c0_6] : memref<1x4x16x8xf32, #tpu.memory_space<vmem>>, vector<1x4x16x8xf32>
    %3 = vector.shape_cast %2 : vector<1x4x16x8xf32> to vector<4x16x8xf32>
    %c0_7 = arith.constant 0 : index
    %c0_8 = arith.constant 0 : index
    %c0_9 = arith.constant 0 : index
    %c0_10 = arith.constant 0 : index
    %4 = vector.load %arg3[%c0_7, %c0_8, %c0_9, %c0_10] : memref<1x4x16x8xf32, #tpu.memory_space<vmem>>, vector<1x4x16x8xf32>
    %5 = vector.shape_cast %4 : vector<1x4x16x8xf32> to vector<4x16x8xf32>
    "tpu.trace_start"() <{level = 10 : i32, message = "hqd,hkd->hqk"}> : () -> ()
    %cst = arith.constant dense<0.000000e+00> : vector<4x15x16xf32>
    %6 = tpu.matmul %1, %3, %cst {dimension_numbers = #tpu.dot_dimension_numbers<[2], [2], [1], [1], [0, 0, 0, 1, 1, 1], [0], [0]>} : vector<4x15x8xf32>, vector<4x16x8xf32>, vector<4x15x16xf32> -> vector<4x15x16xf32>
    "tpu.trace_stop"() : () -> ()
    %cst_11 = arith.constant 0.353553385 : f32
    %7 = vector.broadcast %cst_11 : f32 to vector<4x15x16xf32>
    %8 = arith.mulf %6, %7 : vector<4x15x16xf32>
    %cst_12 = arith.constant dense<0xFF800000> : vector<4x15xf32>
    %9 = vector.multi_reduction <maximumf>, %8, %cst_12 [2] : vector<4x15x16xf32> to vector<4x15xf32>
    %10 = vector.shape_cast %9 : vector<4x15xf32> to vector<4x15x1xf32>
    %11 = vector.broadcast %10 : vector<4x15x1xf32> to vector<4x15x16xf32>
    %12 = arith.subf %8, %11 : vector<4x15x16xf32>
    %13 = math.exp %12 : vector<4x15x16xf32>
    %cst_13 = arith.constant dense<0.000000e+00> : vector<4x15xf32>
    %14 = vector.multi_reduction <add>, %13, %cst_13 [2] : vector<4x15x16xf32> to vector<4x15xf32>
    %15 = vector.shape_cast %14 : vector<4x15xf32> to vector<4x15x1xf32>
    %16 = tpu.reciprocal %15 {approx = true} : vector<4x15x1xf32> -> vector<4x15x1xf32>
    %17 = vector.broadcast %16 : vector<4x15x1xf32> to vector<4x15x16xf32>
    %18 = arith.mulf %13, %17 : vector<4x15x16xf32>
    "tpu.trace_start"() <{level = 10 : i32, message = "hqk,hkd->hqd"}> : () -> ()
    %cst_14 = arith.constant dense<0.000000e+00> : vector<4x15x8xf32>
    %19 = tpu.matmul %18, %5, %cst_14 {dimension_numbers = #tpu.dot_dimension_numbers<[2], [1], [1], [2], [0, 0, 0, 1, 1, 2], [0], [0]>} : vector<4x15x16xf32>, vector<4x16x8xf32>, vector<4x15x8xf32> -> vector<4x15x8xf32>
    "tpu.trace_stop"() : () -> ()
    %c0_15 = arith.constant 0 : index
    %c0_16 = arith.constant 0 : index
    %c0_17 = arith.constant 0 : index
    %c0_18 = arith.constant 0 : index
    %20 = vector.load %arg4[%c0_15, %c0_16, %c0_17, %c0_18] : memref<1x4x15x8xf32, #tpu.memory_space<vmem>>, vector<1x4x15x8xf32>
    %21 = vector.shape_cast %20 : vector<1x4x15x8xf32> to vector<4x15x8xf32>
    %22 = vector.shape_cast %19 : vector<4x15x8xf32> to vector<1x4x15x8xf32>
    tpu.vector_store %arg4[%c0_15, %c0_16, %c0_17, %c0_18], %22 {strides = array<i32>} : memref<1x4x15x8xf32, #tpu.memory_space<vmem>>, vector<1x4x15x8xf32>,
    return
  }
  func.func @transform_0(%arg0: i32) -> (i32, i32, i32, i32) {
    %c0_i32 = arith.constant 0 : i32
    %c0_i32_0 = arith.constant 0 : i32
    %c0_i32_1 = arith.constant 0 : i32
    %c0_i32_2 = arith.constant 0 : i32
    return %arg0, %c0_i32, %c0_i32_0, %c0_i32_1 : i32, i32, i32, i32
  }
  func.func @transform_1(%arg0: i32) -> (i32, i32, i32, i32) {
    %c0_i32 = arith.constant 0 : i32
    %c0_i32_0 = arith.constant 0 : i32
    %c0_i32_1 = arith.constant 0 : i32
    %c0_i32_2 = arith.constant 0 : i32
    return %arg0, %c0_i32, %c0_i32_0, %c0_i32_1 : i32, i32, i32, i32
  }
  func.func @transform_2(%arg0: i32) -> (i32, i32, i32, i32) {
    %c0_i32 = arith.constant 0 : i32
    %c0_i32_0 = arith.constant 0 : i32
    %c0_i32_1 = arith.constant 0 : i32
    %c0_i32_2 = arith.constant 0 : i32
    return %arg0, %c0_i32, %c0_i32_0, %c0_i32_1 : i32, i32, i32, i32
  }
  func.func @transform_3(%arg0: i32) -> (i32, i32, i32, i32) {
    %c0_i32 = arith.constant 0 : i32
    %c0_i32_0 = arith.constant 0 : i32
    %c0_i32_1 = arith.constant 0 : i32
    %c0_i32_2 = arith.constant 0 : i32
    return %arg0, %c0_i32, %c0_i32_0, %c0_i32_1 : i32, i32, i32, i32
  }
}

module attributes {stable_mosaic.version = 11 : i64} {
  func.func @_proj_kernel(%arg0: i32, %arg1: i32, %arg2: i32, %arg3: i32, %arg4: memref<1x32x128xf32, #tpu.memory_space<vmem>>, %arg5: memref<1x128x128xf32, #tpu.memory_space<vmem>>, %arg6: memref<1x1x128xf32, #tpu.memory_space<vmem>>, %arg7: memref<1x32x128xf32, #tpu.memory_space<vmem>>, %arg8: memref<32x128xf32, #tpu.memory_space<vmem>>) attributes {dimension_semantics = [#tpu.dimension_semantics<parallel>, #tpu.dimension_semantics<parallel>, #tpu.dimension_semantics<parallel>, #tpu.dimension_semantics<arbitrary>], iteration_bounds = array<i64: 1, 1, 1, 1>, scalar_prefetch = 0 : i64, scratch_operands = 1 : i64, tpu.core_type = #tpu.core_type<tc>, window_params = [{transform_indices = @transform_0, window_bounds = array<i64: 1, 32, 128>}, {transform_indices = @transform_1, window_bounds = array<i64: 1, 128, 128>}, {transform_indices = @transform_2, window_bounds = array<i64: 1, 1, 128>}, {transform_indices = @transform_3, window_bounds = array<i64: 1, 32, 128>}]} {
    %c0_i32 = arith.constant 0 : i32
    %0 = arith.cmpi eq, %arg3, %c0_i32 : i32
    %1 = arith.extui %0 : i1 to i32
    %c0_i32_0 = arith.constant 0 : i32
    %2 = arith.cmpi ne, %1, %c0_i32_0 : i32
    scf.if %2 {
      %cst_12 = arith.constant 0.000000e+00 : f32
      %14 = vector.broadcast %cst_12 : f32 to vector<32x128xf32>
      %c0_13 = arith.constant 0 : index
      %c0_14 = arith.constant 0 : index
      %15 = vector.load %arg8[%c0_13, %c0_14] : memref<32x128xf32, #tpu.memory_space<vmem>>, vector<32x128xf32>
      tpu.vector_store %arg8[%c0_13, %c0_14], %14 {strides = array<i32>} : memref<32x128xf32, #tpu.memory_space<vmem>>, vector<32x128xf32>,
    } else {
    }
    %c0 = arith.constant 0 : index
    %c0_1 = arith.constant 0 : index
    %3 = vector.load %arg8[%c0, %c0_1] : memref<32x128xf32, #tpu.memory_space<vmem>>, vector<32x128xf32>
    %c0_2 = arith.constant 0 : index
    %c0_3 = arith.constant 0 : index
    %c0_4 = arith.constant 0 : index
    %4 = vector.load %arg4[%c0_2, %c0_3, %c0_4] : memref<1x32x128xf32, #tpu.memory_space<vmem>>, vector<1x32x128xf32>
    %5 = vector.shape_cast %4 : vector<1x32x128xf32> to vector<32x128xf32>
    %c0_5 = arith.constant 0 : index
    %c0_6 = arith.constant 0 : index
    %c0_7 = arith.constant 0 : index
    %6 = vector.load %arg5[%c0_5, %c0_6, %c0_7] : memref<1x128x128xf32, #tpu.memory_space<vmem>>, vector<1x128x128xf32>
    %7 = vector.shape_cast %6 : vector<1x128x128xf32> to vector<128x128xf32>
    %cst = arith.constant dense<0.000000e+00> : vector<32x128xf32>
    %8 = tpu.matmul %5, %7, %cst {dimension_numbers = #tpu.dot_dimension_numbers<[1], [0], [0], [1], [0, 0, 1, 1], [], []>} : vector<32x128xf32>, vector<128x128xf32>, vector<32x128xf32> -> vector<32x128xf32>
    %9 = arith.addf %3, %8 : vector<32x128xf32>
    %c0_8 = arith.constant 0 : index
    %c0_9 = arith.constant 0 : index
    %10 = vector.load %arg8[%c0_8, %c0_9] : memref<32x128xf32, #tpu.memory_space<vmem>>, vector<32x128xf32>
    tpu.vector_store %arg8[%c0_8, %c0_9], %9 {strides = array<i32>} : memref<32x128xf32, #tpu.memory_space<vmem>>, vector<32x128xf32>,
    %c0_i32_10 = arith.constant 0 : i32
    %11 = arith.cmpi eq, %arg3, %c0_i32_10 : i32
    %12 = arith.extui %11 : i1 to i32
    %c0_i32_11 = arith.constant 0 : i32
    %13 = arith.cmpi ne, %12, %c0_i32_11 : i32
    scf.if %13 {
      %c0_12 = arith.constant 0 : index
      %c0_13 = arith.constant 0 : index
      %14 = vector.load %arg8[%c0_12, %c0_13] : memref<32x128xf32, #tpu.memory_space<vmem>>, vector<32x128xf32>
      %c0_14 = arith.constant 0 : index
      %c0_15 = arith.constant 0 : index
      %c0_16 = arith.constant 0 : index
      %15 = vector.load %arg6[%c0_14, %c0_15, %c0_16] : memref<1x1x128xf32, #tpu.memory_space<vmem>>, vector<1x1x128xf32>
      %16 = vector.shape_cast %15 : vector<1x1x128xf32> to vector<1x128xf32>
      %17 = vector.broadcast %16 : vector<1x128xf32> to vector<32x128xf32>
      %18 = arith.addf %14, %17 : vector<32x128xf32>
      %c0_17 = arith.constant 0 : index
      %c0_18 = arith.constant 0 : index
      %c0_19 = arith.constant 0 : index
      %19 = vector.load %arg7[%c0_17, %c0_18, %c0_19] : memref<1x32x128xf32, #tpu.memory_space<vmem>>, vector<1x32x128xf32>
      %20 = vector.shape_cast %19 : vector<1x32x128xf32> to vector<32x128xf32>
      %21 = vector.shape_cast %18 : vector<32x128xf32> to vector<1x32x128xf32>
      tpu.vector_store %arg7[%c0_17, %c0_18, %c0_19], %21 {strides = array<i32>} : memref<1x32x128xf32, #tpu.memory_space<vmem>>, vector<1x32x128xf32>,
    } else {
    }
    return
  }
  func.func @transform_0(%arg0: i32, %arg1: i32, %arg2: i32, %arg3: i32) -> (i32, i32, i32) {
    %c0_i32 = arith.constant 0 : i32
    return %arg0, %arg1, %arg3 : i32, i32, i32
  }
  func.func @transform_1(%arg0: i32, %arg1: i32, %arg2: i32, %arg3: i32) -> (i32, i32, i32) {
    %c0_i32 = arith.constant 0 : i32
    return %arg0, %arg3, %arg2 : i32, i32, i32
  }
  func.func @transform_2(%arg0: i32, %arg1: i32, %arg2: i32, %arg3: i32) -> (i32, i32, i32) {
    %c0_i32 = arith.constant 0 : i32
    %c0_i32_0 = arith.constant 0 : i32
    return %arg0, %c0_i32, %arg2 : i32, i32, i32
  }
  func.func @transform_3(%arg0: i32, %arg1: i32, %arg2: i32, %arg3: i32) -> (i32, i32, i32) {
    %c0_i32 = arith.constant 0 : i32
    return %arg0, %arg1, %arg2 : i32, i32, i32
  }
}

</mosaic_0001>

<llo_original>
// kernel: squeeze.20
$region0: #{squeeze.20}
  %s0 = inlined_call_operand.vmem [shape: f32[1,32,32], index: 0, kind: input, shape index: {}]
  %s1 = inlined_call_operand.vmem [shape: f32[2,4,16,8], index: 1, kind: output, shape index: {}]
  %v2 = vld [vmem:[%s0] sm:$0xff]
  %vm3 = vcmask 64512
  %4 = vst.msk [vmem:[%s1] ss:$4 sm:$0xff] %vm3, %v2
  %s5 = scalar_lea.vmem %s0, 8
  %v6 = vld [vmem:[%s5] sm:$0xff]
  %vm7 = vcmask 64512
  %s8 = scalar_lea.vmem %s1, 32
  %9 = vst.msk [vmem:[%s8] ss:$4 sm:$0xff] %vm7, %v6
  %s10 = scalar_lea.vmem %s0, 16
  %v11 = vld [vmem:[%s10] sm:$0xff]
  %vm12 = vcmask 64512
  %s13 = scalar_lea.vmem %s1, 64
  %14 = vst.msk [vmem:[%s13] ss:$4 sm:$0xff] %vm12, %v11
  %s15 = scalar_lea.vmem %s0, 24
  %v16 = vld [vmem:[%s15] sm:$0xff]
  %vm17 = vcmask 64512
  %s18 = scalar_lea.vmem %s1, 96
  %19 = vst.msk [vmem:[%s18] ss:$4 sm:$0xff] %vm17, %v16
  %v20 = vld [vmem:[%s0] sm:$0xff]
  %21 = vrot.lane.b32.xlu0 %v20, 120
  %v22 = vpop.permute.xlu0 %21
  %vm23 = vcmask 64512
  %s24 = scalar_lea.vmem %s1, 1
  %25 = vst.msk [vmem:[%s24] ss:$4 sm:$0xff] %vm23, %v22
  %s26 = scalar_lea.vmem %s0, 8
  %v27 = vld [vmem:[%s26] sm:$0xff]
  %28 = vrot.lane.b32.xlu0 %v27, 120
  %v29 = vpop.permute.xlu0 %28
  %vm30 = vcmask 64512
  %s31 = scalar_lea.vmem %s1, 33
  %32 = vst.msk [vmem:[%s31] ss:$4 sm:$0xff] %vm30, %v29
  %s33 = scalar_lea.vmem %s0, 16
  %v34 = vld [vmem:[%s33] sm:$0xff]
  %35 = vrot.lane.b32.xlu0 %v34, 120
  %v36 = vpop.permute.xlu0 %35
  %vm37 = vcmask 64512
  %s38 = scalar_lea.vmem %s1, 65
  %39 = vst.msk [vmem:[%s38] ss:$4 sm:$0xff] %vm37, %v36
  %s40 = scalar_lea.vmem %s0, 24
  %v41 = vld [vmem:[%s40] sm:$0xff]
  %42 = vrot.lane.b32.xlu0 %v41, 120
  %v43 = vpop.permute.xlu0 %42
  %vm44 = vcmask 64512
  %s45 = scalar_lea.vmem %s1, 97
  %46 = vst.msk [vmem:[%s45] ss:$4 sm:$0xff] %vm44, %v43
  %v47 = vld [vmem:[%s0] sm:$0xff]
  %48 = vrot.lane.b32.xlu0 %v47, 112
  %v49 = vpop.permute.xlu0 %48
  %vm50 = vcmask 64512
  %s51 = scalar_lea.vmem %s1, 2
  %52 = vst.msk [vmem:[%s51] ss:$4 sm:$0xff] %vm50, %v49
  %s53 = scalar_lea.vmem %s0, 8
  %v54 = vld [vmem:[%s53] sm:$0xff]
  %55 = vrot.lane.b32.xlu0 %v54, 112
  %v56 = vpop.permute.xlu0 %55
  %vm57 = vcmask 64512
  %s58 = scalar_lea.vmem %s1, 34
  %59 = vst.msk [vmem:[%s58] ss:$4 sm:$0xff] %vm57, %v56
  %s60 = scalar_lea.vmem %s0, 16
  %v61 = vld [vmem:[%s60] sm:$0xff]
  %62 = vrot.lane.b32.xlu0 %v61, 112
  %v63 = vpop.permute.xlu0 %62
  %vm64 = vcmask 64512
  %s65 = scalar_lea.vmem %s1, 66
  %66 = vst.msk [vmem:[%s65] ss:$4 sm:$0xff] %vm64, %v63
  %s67 = scalar_lea.vmem %s0, 24
  %v68 = vld [vmem:[%s67] sm:$0xff]
  %69 = vrot.lane.b32.xlu0 %v68, 112
  %v70 = vpop.permute.xlu0 %69
  %vm71 = vcmask 64512
  %s72 = scalar_lea.vmem %s1, 98
  %73 = vst.msk [vmem:[%s72] ss:$4 sm:$0xff] %vm71, %v70
  %v74 = vld [vmem:[%s0] sm:$0xff]
  %75 = vrot.lane.b32.xlu0 %v74, 104
  %v76 = vpop.permute.xlu0 %75
  %vm77 = vcmask 64512
  %s78 = scalar_lea.vmem %s1, 3
  %79 = vst.msk [vmem:[%s78] ss:$4 sm:$0xff] %vm77, %v76
  %s80 = scalar_lea.vmem %s0, 8
  %v81 = vld [vmem:[%s80] sm:$0xff]
  %82 = vrot.lane.b32.xlu0 %v81, 104
  %v83 = vpop.permute.xlu0 %82
  %vm84 = vcmask 64512
  %s85 = scalar_lea.vmem %s1, 35
  %86 = vst.msk [vmem:[%s85] ss:$4 sm:$0xff] %vm84, %v83
  %s87 = scalar_lea.vmem %s0, 16
  %v88 = vld [vmem:[%s87] sm:$0xff]
  %89 = vrot.lane.b32.xlu0 %v88, 104
  %v90 = vpop.permute.xlu0 %89
  %vm91 = vcmask 64512
  %s92 = scalar_lea.vmem %s1, 67
  %93 = vst.msk [vmem:[%s92] ss:$4 sm:$0xff] %vm91, %v90
  %s94 = scalar_lea.vmem %s0, 24
  %v95 = vld [vmem:[%s94] sm:$0xff]
  %96 = vrot.lane.b32.xlu0 %v95, 104
  %v97 = vpop.permute.xlu0 %96
  %vm98 = vcmask 64512
  %s99 = scalar_lea.vmem %s1, 99
  %100 = vst.msk [vmem:[%s99] ss:$4 sm:$0xff] %vm98, %v97

// kernel: squeeze.21
$region0: #{squeeze.21}
  %s0 = inlined_call_operand.vmem [shape: f32[1,32,32], index: 0, kind: input, shape index: {}]
  %s1 = inlined_call_operand.vmem [shape: f32[2,16,4,8], index: 1, kind: output, shape index: {}]
  $region1: #{squeeze.21} parent=0
    #allocation0 [shape = 'u8[131072]{0}', space=vmem, size = 0x20000, scoped, tag = 'scoped mem for output reshape']
    %v2 = vld [vmem:[%s0] sm:$0xff]
    %vm3 = vcmask 130048
    %4 = vst.msk [vmem:[#allocation0] ss:$8 sm:$0xf] %vm3, %v2
    %5 = vst.msk [vmem:[#allocation0] ss:$8 sm:$0xf0] %vm3, %v2
    %s6 = scalar_lea.vmem %s0, 8
    %v7 = vld [vmem:[%s6] sm:$0xff]
    %vm8 = vcmask 130048
    %s9 = scalar_lea.vmem [#allocation0], 64
    %10 = vst.msk [vmem:[%s9] ss:$8 sm:$0xf] %vm8, %v7
    %s11 = scalar_lea.vmem [#allocation0], 64
    %12 = vst.msk [vmem:[%s11] ss:$8 sm:$0xf0] %vm8, %v7
    %s13 = scalar_lea.vmem %s0, 16
    %v14 = vld [vmem:[%s13] sm:$0xff]
    %vm15 = vcmask 130048
    %s16 = scalar_lea.vmem [#allocation0], 128
    %17 = vst.msk [vmem:[%s16] ss:$8 sm:$0xf] %vm15, %v14
    %s18 = scalar_lea.vmem [#allocation0], 128
    %19 = vst.msk [vmem:[%s18] ss:$8 sm:$0xf0] %vm15, %v14
    %s20 = scalar_lea.vmem %s0, 24
    %v21 = vld [vmem:[%s20] sm:$0xff]
    %vm22 = vcmask 130048
    %s23 = scalar_lea.vmem [#allocation0], 192
    %24 = vst.msk [vmem:[%s23] ss:$8 sm:$0xf] %vm22, %v21
    %s25 = scalar_lea.vmem [#allocation0], 192
    %26 = vst.msk [vmem:[%s25] ss:$8 sm:$0xf0] %vm22, %v21
    %v27 = vld [vmem:[%s0] sm:$0xff]
    %28 = vrot.lane.b32.xlu0 %v27, 112
    %v29 = vpop.permute.xlu0 %28
    %vm30 = vcmask 130048
    %s31 = scalar_lea.vmem [#allocation0], 1
    %32 = vst.msk [vmem:[%s31] ss:$8 sm:$0xf] %vm30, %v29
    %s33 = scalar_lea.vmem [#allocation0], 1
    %34 = vst.msk [vmem:[%s33] ss:$8 sm:$0xf0] %vm30, %v29
    %s35 = scalar_lea.vmem %s0, 8
    %v36 = vld [vmem:[%s35] sm:$0xff]
    %37 = vrot.lane.b32.xlu0 %v36, 112
    %v38 = vpop.permute.xlu0 %37
    %vm39 = vcmask 130048
    %s40 = scalar_lea.vmem [#allocation0], 65
    %41 = vst.msk [vmem:[%s40] ss:$8 sm:$0xf] %vm39, %v38
    %s42 = scalar_lea.vmem [#allocation0], 65
    %43 = vst.msk [vmem:[%s42] ss:$8 sm:$0xf0] %vm39, %v38
    %s44 = scalar_lea.vmem %s0, 16
    %v45 = vld [vmem:[%s44] sm:$0xff]
    %46 = vrot.lane.b32.xlu0 %v45, 112
    %v47 = vpop.permute.xlu0 %46
    %vm48 = vcmask 130048
    %s49 = scalar_lea.vmem [#allocation0], 129
    %50 = vst.msk [vmem:[%s49] ss:$8 sm:$0xf] %vm48, %v47
    %s51 = scalar_lea.vmem [#allocation0], 129
    %52 = vst.msk [vmem:[%s51] ss:$8 sm:$0xf0] %vm48, %v47
    %s53 = scalar_lea.vmem %s0, 24
    %v54 = vld [vmem:[%s53] sm:$0xff]
    %55 = vrot.lane.b32.xlu0 %v54, 112
    %v56 = vpop.permute.xlu0 %55
    %vm57 = vcmask 130048
    %s58 = scalar_lea.vmem [#allocation0], 193
    %59 = vst.msk [vmem:[%s58] ss:$8 sm:$0xf] %vm57, %v56
    %s60 = scalar_lea.vmem [#allocation0], 193
    %61 = vst.msk [vmem:[%s60] ss:$8 sm:$0xf0] %vm57, %v56
    %s63 = sshllo.u32 0, 2
    %v65 = vld [vmem:[#allocation0] sm:%s63]
    %s66 = sshllo.u32 0, 2
    %67 = vst [vmem:[%s1] sm:%s66] %v65
    %s68 = scalar_lea.vmem [#allocation0], 8
    %v69 = vld [vmem:[%s68] sm:%s63]
    %s70 = sshllo.u32 0, 2
    %s71 = scalar_lea.vmem %s1, 2
    %72 = vst [vmem:[%s71] sm:%s70] %v69
    %s73 = scalar_lea.vmem [#allocation0], 16
    %v74 = vld [vmem:[%s73] sm:%s63]
    %s75 = sshllo.u32 0, 2
    %s76 = smul.addr 2, 2
    %s77 = scalar_lea.vmem %s1, %s76
    %78 = vst [vmem:[%s77] sm:%s75] %v74
    %s79 = scalar_lea.vmem [#allocation0], 24
    %v80 = vld [vmem:[%s79] sm:%s63]
    %s81 = sshllo.u32 0, 2
    %s82 = smul.addr 2, 3
    %s83 = scalar_lea.vmem %s1, %s82
    %84 = vst [vmem:[%s83] sm:%s81] %v80
    %s85 = scalar_lea.vmem [#allocation0], 32
    %v86 = vld [vmem:[%s85] sm:%s63]
    %s87 = sshllo.u32 0, 2
    %s88 = smul.addr 2, 4
    %s89 = scalar_lea.vmem %s1, %s88
    %90 = vst [vmem:[%s89] sm:%s87] %v86
    %s91 = scalar_lea.vmem [#allocation0], 40
    %v92 = vld [vmem:[%s91] sm:%s63]
    %s93 = sshllo.u32 0, 2
    %s94 = smul.addr 2, 5
    %s95 = scalar_lea.vmem %s1, %s94
    %96 = vst [vmem:[%s95] sm:%s93] %v92
    %s97 = scalar_lea.vmem [#allocation0], 48
    %v98 = vld [vmem:[%s97] sm:%s63]
    %s99 = sshllo.u32 0, 2
    %s100 = smul.addr 2, 6
    %s101 = scalar_lea.vmem %s1, %s100
    %102 = vst [vmem:[%s101] sm:%s99] %v98
    %s103 = scalar_lea.vmem [#allocation0], 56
    %v104 = vld [vmem:[%s103] sm:%s63]
    %s105 = sshllo.u32 0, 2
    %s106 = smul.addr 2, 7
    %s107 = scalar_lea.vmem %s1, %s106
    %108 = vst [vmem:[%s107] sm:%s105] %v104
    %s109 = scalar_lea.vmem [#allocation0], 64
    %v110 = vld [vmem:[%s109] sm:%s63]
    %s111 = sshllo.u32 0, 2
    %s112 = smul.addr 2, 8
    %s113 = scalar_lea.vmem %s1, %s112
    %114 = vst [vmem:[%s113] sm:%s111] %v110
    %s115 = scalar_lea.vmem [#allocation0], 72
    %v116 = vld [vmem:[%s115] sm:%s63]
    %s117 = sshllo.u32 0, 2
    %s118 = smul.addr 2, 9
    %s119 = scalar_lea.vmem %s1, %s118
    %120 = vst [vmem:[%s119] sm:%s117] %v116
    %s121 = scalar_lea.vmem [#allocation0], 80
    %v122 = vld [vmem:[%s121] sm:%s63]
    %s123 = sshllo.u32 0, 2
    %s124 = smul.addr 2, 10
    %s125 = scalar_lea.vmem %s1, %s124
    %126 = vst [vmem:[%s125] sm:%s123] %v122
    %s127 = scalar_lea.vmem [#allocation0], 88
    %v128 = vld [vmem:[%s127] sm:%s63]
    %s129 = sshllo.u32 0, 2
    %s130 = smul.addr 2, 11
    %s131 = scalar_lea.vmem %s1, %s130
    %132 = vst [vmem:[%s131] sm:%s129] %v128
    %s133 = scalar_lea.vmem [#allocation0], 96
    %v134 = vld [vmem:[%s133] sm:%s63]
    %s135 = sshllo.u32 0, 2
    %s136 = smul.addr 2, 12
    %s137 = scalar_lea.vmem %s1, %s136
    %138 = vst [vmem:[%s137] sm:%s135] %v134
    %s139 = scalar_lea.vmem [#allocation0], 104
    %v140 = vld [vmem:[%s139] sm:%s63]
    %s141 = sshllo.u32 0, 2
    %s142 = smul.addr 2, 13
    %s143 = scalar_lea.vmem %s1, %s142
    %144 = vst [vmem:[%s143] sm:%s141] %v140
    %s145 = scalar_lea.vmem [#allocation0], 112
    %v146 = vld [vmem:[%s145] sm:%s63]
    %s147 = sshllo.u32 0, 2
    %s148 = smul.addr 2, 14
    %s149 = scalar_lea.vmem %s1, %s148
    %150 = vst [vmem:[%s149] sm:%s147] %v146
    %s151 = scalar_lea.vmem [#allocation0], 120
    %v152 = vld [vmem:[%s151] sm:%s63]
    %s153 = sshllo.u32 0, 2
    %s154 = smul.addr 2, 15
    %s155 = scalar_lea.vmem %s1, %s154
    %156 = vst [vmem:[%s155] sm:%s153] %v152
    %s157 = scalar_lea.vmem [#allocation0], 128
    %v158 = vld [vmem:[%s157] sm:%s63]
    %s159 = sshllo.u32 0, 2
    %s160 = smul.addr 2, 16
    %s161 = scalar_lea.vmem %s1, %s160
    %162 = vst [vmem:[%s161] sm:%s159] %v158
    %s163 = scalar_lea.vmem [#allocation0], 136
    %v164 = vld [vmem:[%s163] sm:%s63]
    %s165 = sshllo.u32 0, 2
    %s166 = smul.addr 2, 17
    %s167 = scalar_lea.vmem %s1, %s166
    %168 = vst [vmem:[%s167] sm:%s165] %v164
    %s169 = scalar_lea.vmem [#allocation0], 144
    %v170 = vld [vmem:[%s169] sm:%s63]
    %s171 = sshllo.u32 0, 2
    %s172 = smul.addr 2, 18
    %s173 = scalar_lea.vmem %s1, %s172
    %174 = vst [vmem:[%s173] sm:%s171] %v170
    %s175 = scalar_lea.vmem [#allocation0], 152
    %v176 = vld [vmem:[%s175] sm:%s63]
    %s177 = sshllo.u32 0, 2
    %s178 = smul.addr 2, 19
    %s179 = scalar_lea.vmem %s1, %s178
    %180 = vst [vmem:[%s179] sm:%s177] %v176
    %s181 = scalar_lea.vmem [#allocation0], 160
    %v182 = vld [vmem:[%s181] sm:%s63]
    %s183 = sshllo.u32 0, 2
    %s184 = smul.addr 2, 20
    %s185 = scalar_lea.vmem %s1, %s184
    %186 = vst [vmem:[%s185] sm:%s183] %v182
    %s187 = scalar_lea.vmem [#allocation0], 168
    %v188 = vld [vmem:[%s187] sm:%s63]
    %s189 = sshllo.u32 0, 2
    %s190 = smul.addr 2, 21
    %s191 = scalar_lea.vmem %s1, %s190
    %192 = vst [vmem:[%s191] sm:%s189] %v188
    %s193 = scalar_lea.vmem [#allocation0], 176
    %v194 = vld [vmem:[%s193] sm:%s63]
    %s195 = sshllo.u32 0, 2
    %s196 = smul.addr 2, 22
    %s197 = scalar_lea.vmem %s1, %s196
    %198 = vst [vmem:[%s197] sm:%s195] %v194
    %s199 = scalar_lea.vmem [#allocation0], 184
    %v200 = vld [vmem:[%s199] sm:%s63]
    %s201 = sshllo.u32 0, 2
    %s202 = smul.addr 2, 23
    %s203 = scalar_lea.vmem %s1, %s202
    %204 = vst [vmem:[%s203] sm:%s201] %v200
    %s205 = scalar_lea.vmem [#allocation0], 192
    %v206 = vld [vmem:[%s205] sm:%s63]
    %s207 = sshllo.u32 0, 2
    %s208 = smul.addr 2, 24
    %s209 = scalar_lea.vmem %s1, %s208
    %210 = vst [vmem:[%s209] sm:%s207] %v206
    %s211 = scalar_lea.vmem [#allocation0], 200
    %v212 = vld [vmem:[%s211] sm:%s63]
    %s213 = sshllo.u32 0, 2
    %s214 = smul.addr 2, 25
    %s215 = scalar_lea.vmem %s1, %s214
    %216 = vst [vmem:[%s215] sm:%s213] %v212
    %s217 = scalar_lea.vmem [#allocation0], 208
    %v218 = vld [vmem:[%s217] sm:%s63]
    %s219 = sshllo.u32 0, 2
    %s220 = smul.addr 2, 26
    %s221 = scalar_lea.vmem %s1, %s220
    %222 = vst [vmem:[%s221] sm:%s219] %v218
    %s223 = scalar_lea.vmem [#allocation0], 216
    %v224 = vld [vmem:[%s223] sm:%s63]
    %s225 = sshllo.u32 0, 2
    %s226 = smul.addr 2, 27
    %s227 = scalar_lea.vmem %s1, %s226
    %228 = vst [vmem:[%s227] sm:%s225] %v224
    %s229 = scalar_lea.vmem [#allocation0], 224
    %v230 = vld [vmem:[%s229] sm:%s63]
    %s231 = sshllo.u32 0, 2
    %s232 = smul.addr 2, 28
    %s233 = scalar_lea.vmem %s1, %s232
    %234 = vst [vmem:[%s233] sm:%s231] %v230
    %s235 = scalar_lea.vmem [#allocation0], 232
    %v236 = vld [vmem:[%s235] sm:%s63]
    %s237 = sshllo.u32 0, 2
    %s238 = smul.addr 2, 29
    %s239 = scalar_lea.vmem %s1, %s238
    %240 = vst [vmem:[%s239] sm:%s237] %v236
    %s241 = scalar_lea.vmem [#allocation0], 240
    %v242 = vld [vmem:[%s241] sm:%s63]
    %s243 = sshllo.u32 0, 2
    %s244 = smul.addr 2, 30
    %s245 = scalar_lea.vmem %s1, %s244
    %246 = vst [vmem:[%s245] sm:%s243] %v242
    %s247 = scalar_lea.vmem [#allocation0], 248
    %v248 = vld [vmem:[%s247] sm:%s63]
    %s249 = sshllo.u32 0, 2
    %s250 = smul.addr 2, 31
    %s251 = scalar_lea.vmem %s1, %s250
    %252 = vst [vmem:[%s251] sm:%s249] %v248

// kernel: neg.1
$region0: #{neg.1}
  #allocation0 [shape = 's32[1]{0}', space=sflag, size = 0x4, scoped, tag = 'scoped memory for neg.1']
  %s0 = inlined_call_operand.vmem [shape: f32[2,4,16], index: 0, kind: input, shape index: {}]
  %s1 = inlined_call_operand.vmem [shape: f32[2,4,16], index: 1, kind: output, shape index: {}]
  %v2 = vld [vmem:[%s0] sm:$0xf]
  %3 = xla_tuple %v2
  %4 = xla_tuple %3
  %v5 = vxor.u32 %v2, 2147483648
  %6 = xla_tuple %v5
  %7 = vst [vmem:[%s1] sm:$0xf] %v5
  %s8 = scalar_lea.vmem %s0, 4
  %v9 = vld [vmem:[%s8] sm:$0xf]
  %10 = xla_tuple %v9
  %11 = xla_tuple %10
  %v12 = vxor.u32 %v9, 2147483648
  %13 = xla_tuple %v12
  %s14 = scalar_lea.vmem %s1, 4
  %15 = vst [vmem:[%s14] sm:$0xf] %v12

// kernel: multi_head_attention.4
$region0: #{multi_head_attention.4}
  #allocation0 [shape = 'u32[]', space=smem, size = 0x4, offset = 0x4, fixed_abs, tag = 'smem constant byte address 0x4 - core index']
  #allocation1 [shape = 'u32[144,128]{1,0:T(1,128)}', space=vmem, size = 0x12000, scoped, tag = 'internal scratch']
  #allocation2 [shape = 'f32[32,128]{1,0:T(8,128)}', space=vmem, size = 0x4000, scoped, tag = 'scratch operand']
  %s0 = inlined_call_operand.vmem [shape: f32[3,32,128], index: 0, kind: input, shape index: {}]
  %s1 = inlined_call_operand.vmem [shape: f32[3,128,128], index: 1, kind: input, shape index: {}]
  %s2 = inlined_call_operand.vmem [shape: f32[3,1,128], index: 2, kind: input, shape index: {}]
  %s3 = inlined_call_operand.vmem [shape: f32[3,32,128], index: 3, kind: output, shape index: {}]
  %s4 = sld [smem:[#allocation0]]
  $region53: #{multi_head_attention.4} parent=0
    _
  %s6 = ssub.s32 1, %s4
  %s7 = scalar_select 0, %s6, %s4
  loop: start=0, step=1, limit=5
  $region2: #{multi_head_attention.4} parent=0 // loop_pre_header
    _
  $region3: #{multi_head_attention.4} parent=0 // loop_header
    %s9 = sphi 0, %s13
    %p10 = scmp.ge.s32.totalorder %s9, 5
    %s16 = sphi 0, %s42
    %s17 = sphi 0, %s38
    %s18 = sphi 0, %s34
    %s19 = sphi 0, %s30
    %s20 = sphi 0, %s16
    %s21 = sphi 0, %s17
    %s22 = sphi 0, %s18
    %s23 = sphi 0, %s19
    %s24 = sphi 0, %s20
    %s25 = sphi 0, %s21
    %s26 = sphi 0, %s22
    %s27 = sphi 0, %s23
    %s49 = sphi 0, %s51
    %s52 = sphi 0, %s49
    %s53 = sphi 0, %s52
    %s69 = sphi 0, %s53
    %s79 = sphi 0, %s81
    %s82 = sphi 0, %s79
    %s83 = sphi 0, %s82
    %s99 = sphi 0, %s83
    %s107 = sphi 0, %s109
    %s110 = sphi 0, %s107
    %s111 = sphi 0, %s110
    %s127 = sphi 0, %s111
    %s137 = sphi 0, %s139
    %s140 = sphi 0, %s137
    %s141 = sphi 0, %s140
    %s157 = sphi 0, %s141
  $region4: #{multi_head_attention.4} parent=0 // loop_header_branch
    %12 = sbr.rel (%p10) target = $region8
  $region5: #{multi_head_attention.4} parent=0 // loop_body
    %s14 = ssub.s32 %s9, 1
    %s15 = ssub.s32 %s9, 2
    %s28 = sadd.s32 1, %s19
    %p29 = scmp.ge.s32.totalorder %s28, 1
    %s30 = scalar_select %p29, 0, %s28
    %s31 = sadd.s32 1, %s18
    %s32 = scalar_select %p29, %s31, %s18
    %p33 = scmp.ge.s32.totalorder %s32, 1
    %s34 = scalar_select %p33, 0, %s32
    %s35 = sadd.s32 1, %s17
    %s36 = scalar_select %p33, %s35, %s17
    %p37 = scmp.ge.s32.totalorder %s36, 1
    %s38 = scalar_select %p37, 0, %s36
    %s39 = sadd.s32 1, %s16
    %s40 = scalar_select %p37, %s39, %s16
    %p41 = scmp.ge.s32.totalorder %s40, 3
    %s42 = scalar_select %p41, 0, %s40
    %s43 = ssub.s32 %s16, %s42
    %s44 = ssub.s32 %s17, %s38
    %s45 = sor.u32 %s43, %s44
    %s46 = ssub.s32 %s19, %s30
    %s47 = sor.u32 %s45, %s46
    %p48 = scmp.eq.s32.totalorder %s47, 0
    %s50 = sadd.s32 %s49, 1
    %s51 = scalar_select %p48, %s49, %s50
    %p54 = pneg %p48
    %p55 = scmp.eq.s32.totalorder %s9, 2
    %p56 = por %p54, %p55
    %p57 = scmp.ne.s32.totalorder %s49, %s52
    %p58 = scmp.eq.s32.totalorder %s9, 0
    %p59 = por %p57, %p58
    %p60 = scmp.ne.s32.totalorder %s49, %s52
    %p61 = scmp.eq.s32.totalorder %s14, 2
    %p62 = por %p60, %p61
    %p63 = scmp.ne.s32.totalorder %s52, %s53
    %p64 = scmp.eq.s32.totalorder %s14, 0
    %p65 = por %p63, %p64
    %p66 = scmp.ne.s32.totalorder %s52, %s53
    %p67 = scmp.eq.s32.totalorder %s15, 2
    %p68 = por %p66, %p67
    %p70 = scmp.ne.s32.totalorder %s53, %s69
    %p71 = scmp.eq.s32.totalorder %s15, 0
    %p72 = por %p70, %p71
    %s73 = ssub.s32 %s16, %s42
    %s74 = ssub.s32 %s19, %s30
    %s75 = sor.u32 %s73, %s74
    %s76 = ssub.s32 %s18, %s34
    %s77 = sor.u32 %s75, %s76
    %p78 = scmp.eq.s32.totalorder %s77, 0
    %s80 = sadd.s32 %s79, 1
    %s81 = scalar_select %p78, %s79, %s80
    %p84 = pneg %p78
    %p85 = scmp.eq.s32.totalorder %s9, 2
    %p86 = por %p84, %p85
    %p87 = scmp.ne.s32.totalorder %s79, %s82
    %p88 = scmp.eq.s32.totalorder %s9, 0
    %p89 = por %p87, %p88
    %p90 = scmp.ne.s32.totalorder %s79, %s82
    %p91 = scmp.eq.s32.totalorder %s14, 2
    %p92 = por %p90, %p91
    %p93 = scmp.ne.s32.totalorder %s82, %s83
    %p94 = scmp.eq.s32.totalorder %s14, 0
    %p95 = por %p93, %p94
    %p96 = scmp.ne.s32.totalorder %s82, %s83
    %p97 = scmp.eq.s32.totalorder %s15, 2
    %p98 = por %p96, %p97
    %p100 = scmp.ne.s32.totalorder %s83, %s99
    %p101 = scmp.eq.s32.totalorder %s15, 0
    %p102 = por %p100, %p101
    %s103 = ssub.s32 %s16, %s42
    %s104 = ssub.s32 %s18, %s34
    %s105 = sor.u32 %s103, %s104
    %p106 = scmp.eq.s32.totalorder %s105, 0
    %s108 = sadd.s32 %s107, 1
    %s109 = scalar_select %p106, %s107, %s108
    %p112 = pneg %p106
    %p113 = scmp.eq.s32.totalorder %s9, 2
    %p114 = por %p112, %p113
    %p115 = scmp.ne.s32.totalorder %s107, %s110
    %p116 = scmp.eq.s32.totalorder %s9, 0
    %p117 = por %p115, %p116
    %p118 = scmp.ne.s32.totalorder %s107, %s110
    %p119 = scmp.eq.s32.totalorder %s14, 2
    %p120 = por %p118, %p119
    %p121 = scmp.ne.s32.totalorder %s110, %s111
    %p122 = scmp.eq.s32.totalorder %s14, 0
    %p123 = por %p121, %p122
    %p124 = scmp.ne.s32.totalorder %s110, %s111
    %p125 = scmp.eq.s32.totalorder %s15, 2
    %p126 = por %p124, %p125
    %p128 = scmp.ne.s32.totalorder %s111, %s127
    %p129 = scmp.eq.s32.totalorder %s15, 0
    %p130 = por %p128, %p129
    %s131 = ssub.s32 %s16, %s42
    %s132 = ssub.s32 %s17, %s38
    %s133 = sor.u32 %s131, %s132
    %s134 = ssub.s32 %s18, %s34
    %s135 = sor.u32 %s133, %s134
    %p136 = scmp.eq.s32.totalorder %s135, 0
    %s138 = sadd.s32 %s137, 1
    %s139 = scalar_select %p136, %s137, %s138
    %p142 = pneg %p136
    %p143 = scmp.eq.s32.totalorder %s9, 2
    %p144 = por %p142, %p143
    %p145 = scmp.ne.s32.totalorder %s137, %s140
    %p146 = scmp.eq.s32.totalorder %s9, 0
    %p147 = por %p145, %p146
    %p148 = scmp.ne.s32.totalorder %s137, %s140
    %p149 = scmp.eq.s32.totalorder %s14, 2
    %p150 = por %p148, %p149
    %p151 = scmp.ne.s32.totalorder %s140, %s141
    %p152 = scmp.eq.s32.totalorder %s14, 0
    %p153 = por %p151, %p152
    %p154 = scmp.ne.s32.totalorder %s140, %s141
    %p155 = scmp.eq.s32.totalorder %s15, 2
    %p156 = por %p154, %p155
    %p158 = scmp.ne.s32.totalorder %s141, %s157
    %p159 = scmp.eq.s32.totalorder %s15, 0
    %p160 = por %p158, %p159
    %p161 = scmp.le.s32.totalorder 1, %s9
    %p162 = scmp.lt.s32.totalorder %s9, 4
    %p163 = pnand %p161, %p162
    %p164 = pneg %p163
    // Predicated region
    $region9: #{multi_head_attention.4} parent=5 // pred_check
      _
    $region10: #{multi_head_attention.4} parent=5 // pred_check_branch
      %166 = sbr.rel (%p163) target = $region12
    $region11: #{multi_head_attention.4} parent=5 // pred_region
      %s167 = ssub.s32 %s9, 1
    $region12: #{multi_head_attention.4} parent=5 // pred_fallthru
      _
    %p168 = scmp.lt.s32.totalorder %s9, 3
    // Predicated region
    $region13: #{multi_head_attention.4} parent=5 // pred_check
      %p169 = pneg %p168
    $region14: #{multi_head_attention.4} parent=5 // pred_check_branch
      %171 = sbr.rel (%p169) target = $region16
    $region15: #{multi_head_attention.4} parent=5 // pred_region
      // Predicated region
      $region17: #{multi_head_attention.4} parent=15 // pred_check
        %p172 = pneg %p59
      $region18: #{multi_head_attention.4} parent=15 // pred_check_branch
        %174 = sbr.rel (%p172) target = $region20
      $region19: #{multi_head_attention.4} parent=15 // pred_region
        %s175 = smul.u32 4, %s17
        %p176 = scmp.lt.s32.totalorder %s16, 2
        %s177 = scalar_select %p176, %s16, 2
        %p178 = scmp.lt.s32.totalorder %s175, 3
        %s179 = scalar_select %p178, %s175, 3
        %p180 = scmp.lt.s32.totalorder %s19, 0
        %s181 = scalar_select %p180, %s19, 0
        %s182 = sadd.s32 %s181, %s179
        %s183 = smul.addr %s177, 4
        %s184 = sadd.s32 %s182, %s183
        %s185 = smul.addr %s184, 8
        %s186 = scalar_lea.vmem %s0, %s185
        %s187 = smul.u32 4, %s17
      $region20: #{multi_head_attention.4} parent=15 // pred_fallthru
        _
      // Predicated region
      $region21: #{multi_head_attention.4} parent=15 // pred_check
        %p188 = pneg %p89
      $region22: #{multi_head_attention.4} parent=15 // pred_check_branch
        %190 = sbr.rel (%p188) target = $region24
      $region23: #{multi_head_attention.4} parent=15 // pred_region
        %s191 = smul.u32 16, %s19
        %p192 = scmp.lt.s32.totalorder %s16, 2
        %s193 = scalar_select %p192, %s16, 2
        %p194 = scmp.lt.s32.totalorder %s191, 15
        %s195 = scalar_select %p194, %s191, 15
        %p196 = scmp.lt.s32.totalorder %s18, 0
        %s197 = scalar_select %p196, %s18, 0
        %s198 = sadd.s32 %s197, %s195
        %s199 = smul.addr %s193, 16
        %s200 = sadd.s32 %s198, %s199
        %s201 = smul.addr %s200, 8
        %s202 = scalar_lea.vmem %s1, %s201
        %s203 = smul.u32 16, %s19
      $region24: #{multi_head_attention.4} parent=15 // pred_fallthru
        _
      // Predicated region
      $region25: #{multi_head_attention.4} parent=15 // pred_check
        %p204 = pneg %p117
      $region26: #{multi_head_attention.4} parent=15 // pred_check_branch
        %206 = sbr.rel (%p204) target = $region28
      $region27: #{multi_head_attention.4} parent=15 // pred_region
        %p207 = scmp.lt.s32.totalorder %s16, 2
        %s208 = scalar_select %p207, %s16, 2
        %p209 = scmp.lt.s32.totalorder %s18, 0
        %s210 = scalar_select %p209, %s18, 0
        %s211 = sadd.s32 %s210, %s208
        %s212 = scalar_lea.vmem %s2, %s211
      $region28: #{multi_head_attention.4} parent=15 // pred_fallthru
        _
    $region16: #{multi_head_attention.4} parent=5 // pred_fallthru
      _
    %p213 = scmp.le.s32.totalorder 1, %s9
    %p214 = scmp.lt.s32.totalorder %s9, 4
    %p215 = pnand %p213, %p214
    %p216 = pneg %p215
    // Predicated region
    $region29: #{multi_head_attention.4} parent=5 // pred_check
      _
    $region30: #{multi_head_attention.4} parent=5 // pred_check_branch
      %218 = sbr.rel (%p215) target = $region32
    $region31: #{multi_head_attention.4} parent=5 // pred_region
      %s219 = ssub.s32 %s9, 1
      %s220 = smul.u32 4, %s21
      %p221 = scmp.lt.s32.totalorder %s20, 2
      %s222 = scalar_select %p221, %s20, 2
      %p223 = scmp.lt.s32.totalorder %s220, 3
      %s224 = scalar_select %p223, %s220, 3
      %p225 = scmp.lt.s32.totalorder %s23, 0
      %s226 = scalar_select %p225, %s23, 0
      %s227 = sadd.s32 %s226, %s224
      %s228 = smul.addr %s222, 4
      %s229 = sadd.s32 %s227, %s228
      %s230 = smul.addr %s229, 8
      %s231 = scalar_lea.vmem %s0, %s230
      %p232 = pneg %p65
      %p233 = pneg %p62
      %s234 = smul.u32 16, %s23
      %p235 = scmp.lt.s32.totalorder %s20, 2
      %s236 = scalar_select %p235, %s20, 2
      %p237 = scmp.lt.s32.totalorder %s234, 15
      %s238 = scalar_select %p237, %s234, 15
      %p239 = scmp.lt.s32.totalorder %s22, 0
      %s240 = scalar_select %p239, %s22, 0
      %s241 = sadd.s32 %s240, %s238
      %s242 = smul.addr %s236, 16
      %s243 = sadd.s32 %s241, %s242
      %s244 = smul.addr %s243, 8
      %s245 = scalar_lea.vmem %s1, %s244
      %p246 = pneg %p95
      %p247 = pneg %p92
      %p248 = scmp.lt.s32.totalorder %s20, 2
      %s249 = scalar_select %p248, %s20, 2
      %p250 = scmp.lt.s32.totalorder %s22, 0
      %s251 = scalar_select %p250, %s22, 0
      %s252 = sadd.s32 %s251, %s249
      %s253 = scalar_lea.vmem %s2, %s252
      %p254 = pneg %p123
      %p255 = pneg %p120
      %p256 = pneg %p153
      %p257 = pneg %p150
      %s258 = smul.u32 4, %s21
      %p259 = scmp.lt.s32.totalorder %s20, 2
      %s260 = scalar_select %p259, %s20, 2
      %p261 = scmp.lt.s32.totalorder %s258, 3
      %s262 = scalar_select %p261, %s258, 3
      %p263 = scmp.lt.s32.totalorder %s22, 0
      %s264 = scalar_select %p263, %s22, 0
      %s265 = sadd.s32 %s264, %s262
      %s266 = smul.addr %s260, 4
      %s267 = sadd.s32 %s265, %s266
      %s268 = smul.addr %s267, 8
      %s269 = scalar_lea.vmem %s3, %s268
      %s270 = smul.u32 4, %s21
      %p271 = scmp.lt.s32.totalorder %s20, 2
      %s272 = scalar_select %p271, %s20, 2
      %p273 = scmp.lt.s32.totalorder %s270, 3
      %s274 = scalar_select %p273, %s270, 3
      %p275 = scmp.lt.s32.totalorder %s23, 0
      %s276 = scalar_select %p275, %s23, 0
      %s277 = sadd.s32 %s276, %s274
      %s278 = smul.addr %s272, 4
      %s279 = sadd.s32 %s277, %s278
      %s280 = smul.addr %s279, 8
      %s281 = scalar_lea.vmem %s0, %s280
      %s282 = smul.u32 4, %s21
      %s283 = smul.u32 16, %s23
      %p284 = scmp.lt.s32.totalorder %s20, 2
      %s285 = scalar_select %p284, %s20, 2
      %p286 = scmp.lt.s32.totalorder %s283, 15
      %s287 = scalar_select %p286, %s283, 15
      %p288 = scmp.lt.s32.totalorder %s22, 0
      %s289 = scalar_select %p288, %s22, 0
      %s290 = sadd.s32 %s289, %s287
      %s291 = smul.addr %s285, 16
      %s292 = sadd.s32 %s290, %s291
      %s293 = smul.addr %s292, 8
      %s294 = scalar_lea.vmem %s1, %s293
      %s295 = smul.u32 16, %s23
      %p296 = scmp.lt.s32.totalorder %s20, 2
      %s297 = scalar_select %p296, %s20, 2
      %p298 = scmp.lt.s32.totalorder %s22, 0
      %s299 = scalar_select %p298, %s22, 0
      %s300 = sadd.s32 %s299, %s297
      %s301 = scalar_lea.vmem %s2, %s300
      %s302 = smul.u32 4, %s21
      %p303 = scmp.lt.s32.totalorder %s20, 2
      %s304 = scalar_select %p303, %s20, 2
      %p305 = scmp.lt.s32.totalorder %s302, 3
      %s306 = scalar_select %p305, %s302, 3
      %p307 = scmp.lt.s32.totalorder %s22, 0
      %s308 = scalar_select %p307, %s22, 0
      %s309 = sadd.s32 %s308, %s306
      %s310 = smul.addr %s304, 4
      %s311 = sadd.s32 %s309, %s310
      %s312 = smul.addr %s311, 8
      %s313 = scalar_lea.vmem %s3, %s312
      %s314 = smul.u32 4, %s21
      %p315 = scmp.eq.s32.totalorder %s23, 0
      // Predicated region
      $region33: #{multi_head_attention.4} parent=31 // pred_check
        %p316 = pneg %p315
      $region34: #{multi_head_attention.4} parent=31 // pred_check_branch
        %318 = sbr.rel (%p316) target = $region36
      $region35: #{multi_head_attention.4} parent=31 // pred_region
        %319 = vst [vmem:[#allocation2] sm:$0xff] 0.0
        %320 = vst [vmem:[#allocation2 + $0x8] sm:$0xff] 0.0
        %321 = vst [vmem:[#allocation2 + $0x10] sm:$0xff] 0.0
        %322 = vst [vmem:[#allocation2 + $0x18] sm:$0xff] 0.0
      $region36: #{multi_head_attention.4} parent=31 // pred_fallthru
        _
      %v323 = vld [vmem:[#allocation2] sm:$0xff]
      %v324 = vld [vmem:[#allocation2 + $0x8] sm:$0xff]
      %v325 = vld [vmem:[#allocation2 + $0x10] sm:$0xff]
      %v326 = vld [vmem:[#allocation2 + $0x18] sm:$0xff]
      %v327 = vld [vmem:[%s281] sm:$0xff]
      %v328 = vld [vmem:[%s281 + $0x8] sm:$0xff]
      %v329 = vld [vmem:[%s281 + $0x10] sm:$0xff]
      %v330 = vld [vmem:[%s281 + $0x18] sm:$0xff]
      %v331 = vld [vmem:[%s294] sm:$0xff]
      %v332 = vld [vmem:[%s294 + $0x8] sm:$0xff]
      %v333 = vld [vmem:[%s294 + $0x10] sm:$0xff]
      %v334 = vld [vmem:[%s294 + $0x18] sm:$0xff]
      %v335 = vld [vmem:[%s294 + $0x20] sm:$0xff]
      %v336 = vld [vmem:[%s294 + $0x28] sm:$0xff]
      %v337 = vld [vmem:[%s294 + $0x30] sm:$0xff]
      %v338 = vld [vmem:[%s294 + $0x38] sm:$0xff]
      %v339 = vld [vmem:[%s294 + $0x40] sm:$0xff]
      %v340 = vld [vmem:[%s294 + $0x48] sm:$0xff]
      %v341 = vld [vmem:[%s294 + $0x50] sm:$0xff]
      %v342 = vld [vmem:[%s294 + $0x58] sm:$0xff]
      %v343 = vld [vmem:[%s294 + $0x60] sm:$0xff]
      %v344 = vld [vmem:[%s294 + $0x68] sm:$0xff]
      %v345 = vld [vmem:[%s294 + $0x70] sm:$0xff]
      %v346 = vld [vmem:[%s294 + $0x78] sm:$0xff]
      %347 = vmatprep.subr.mxu0 0.0
      %348 = vmatpush1.msra.mxu0 %v331
      %349 = vmatprep.subr.mxu0 0.0
      %350 = vmatpush1.msra.mxu0 %v332
      %351 = vmatprep.subr.mxu0 0.0
      %352 = vmatpush1.msra.mxu0 %v333
      %353 = vmatprep.subr.mxu0 0.0
      %354 = vmatpush1.msra.mxu0 %v334
      %355 = vmatprep.subr.mxu0 0.0
      %356 = vmatpush1.msra.mxu0 %v335
      %357 = vmatprep.subr.mxu0 0.0
      %358 = vmatpush1.msra.mxu0 %v336
      %359 = vmatprep.subr.mxu0 0.0
      %360 = vmatpush1.msra.mxu0 %v337
      %361 = vmatprep.subr.mxu0 0.0
      %362 = vmatpush1.msra.mxu0 %v338
      %363 = vmatprep.subr.mxu0 0.0
      %364 = vmatpush1.msra.mxu0 %v339
      %365 = vmatprep.subr.mxu0 0.0
      %366 = vmatpush1.msra.mxu0 %v340
      %367 = vmatprep.subr.mxu0 0.0
      %368 = vmatpush1.msra.mxu0 %v341
      %369 = vmatprep.subr.mxu0 0.0
      %370 = vmatpush1.msra.mxu0 %v342
      %371 = vmatprep.subr.mxu0 0.0
      %372 = vmatpush1.msra.mxu0 %v343
      %373 = vmatprep.subr.mxu0 0.0
      %374 = vmatpush1.msra.mxu0 %v344
      %375 = vmatprep.subr.mxu0 0.0
      %376 = vmatpush1.msra.mxu0 %v345
      %377 = vmatprep.subr.mxu0 0.0
      %378 = vmatpush1.msra.mxu0 %v346
      %379 = vmatprep.subr.mxu0 0.0
      %380 = vmatpush1.msra.mxu0 0.0
      %381 = vmatprep.subr.mxu0 0.0
      %382 = vmatpush1.msra.mxu0 0.0
      %383 = vmatprep.subr.mxu0 0.0
      %384 = vmatpush1.msra.mxu0 0.0
      %385 = vmatprep.subr.mxu0 0.0
      %386 = vmatpush1.msra.mxu0 0.0
      %387 = vmatprep.subr.mxu0 0.0
      %388 = vmatpush1.msra.mxu0 0.0
      %389 = vmatprep.subr.mxu0 0.0
      %390 = vmatpush1.msra.mxu0 0.0
      %391 = vmatprep.subr.mxu0 0.0
      %392 = vmatpush1.msra.mxu0 0.0
      %393 = vmatprep.subr.mxu0 0.0
      %394 = vmatpush1.msra.mxu0 0.0
      %395 = vmatprep.subr.mxu0 0.0
      %396 = vmatpush1.msra.mxu0 0.0
      %397 = vmatprep.subr.mxu0 0.0
      %398 = vmatpush1.msra.mxu0 0.0
      %399 = vmatprep.subr.mxu0 0.0
      %400 = vmatpush1.msra.mxu0 0.0
      %401 = vmatprep.subr.mxu0 0.0
      %402 = vmatpush1.msra.mxu0 0.0
      %403 = vmatprep.subr.mxu0 0.0
      %404 = vmatpush1.msra.mxu0 0.0
      %405 = vmatprep.subr.mxu0 0.0
      %406 = vmatpush1.msra.mxu0 0.0
      %407 = vmatprep.subr.mxu0 0.0
      %408 = vmatpush1.msra.mxu0 0.0
      %409 = vmatprep.subr.mxu0 0.0
      %410 = vmatpush1.msra.mxu0 0.0
      %411 = vmatprep.mubr.f32.mxu0 0.0
      %412 = vmatmul.mubr.f32.gmra.mrb[0].mxu0 %v327
      %v413 = vpop.f32.mrb[0].mxu0
      %v414 = vadd.f32 0.0, %v413
      %v415 = vpop.f32.mrb[0].mxu0
      %416 = vmatprep.mubr.f32.mxu0 0.0
      %417 = vmatmul.mubr.f32.gmra.mrb[0].mxu0 %v328
      %v418 = vpop.f32.mrb[0].mxu0
      %v419 = vadd.f32 0.0, %v418
      %v420 = vpop.f32.mrb[0].mxu0
      %421 = vmatprep.mubr.f32.mxu0 0.0
      %422 = vmatmul.mubr.f32.gmra.mrb[0].mxu0 %v329
      %v423 = vpop.f32.mrb[0].mxu0
      %v424 = vadd.f32 0.0, %v423
      %v425 = vpop.f32.mrb[0].mxu0
      %426 = vmatprep.mubr.f32.mxu0 0.0
      %427 = vmatmul.mubr.f32.gmra.mrb[0].mxu0 %v330
      %v428 = vpop.f32.mrb[0].mxu0
      %v429 = vadd.f32 0.0, %v428
      %v430 = vpop.f32.mrb[0].mxu0
      %431 = vdwg.mxu0
      %v432 = vadd.f32 %v323, %v414
      %v433 = vadd.f32 %v324, %v419
      %v434 = vadd.f32 %v325, %v424
      %v435 = vadd.f32 %v326, %v429
      %436 = vst [vmem:[#allocation2] sm:$0xff] %v432
      %437 = vst [vmem:[#allocation2 + $0x8] sm:$0xff] %v433
      %438 = vst [vmem:[#allocation2 + $0x10] sm:$0xff] %v434
      %439 = vst [vmem:[#allocation2 + $0x18] sm:$0xff] %v435
      // Predicated region
      $region37: #{multi_head_attention.4} parent=31 // pred_check
        %p440 = pneg %p315
      $region38: #{multi_head_attention.4} parent=31 // pred_check_branch
        %442 = sbr.rel (%p440) target = $region40
      $region39: #{multi_head_attention.4} parent=31 // pred_region
        %v443 = vld [vmem:[#allocation2] sm:$0xff]
        %v444 = vld [vmem:[#allocation2 + $0x8] sm:$0xff]
        %v445 = vld [vmem:[#allocation2 + $0x10] sm:$0xff]
        %v446 = vld [vmem:[#allocation2 + $0x18] sm:$0xff]
        %v447 = vld [vmem:[%s301] sm:$0x1]
        %v449 = vlaneseq
        %v450 = vshrl.u32 %v449, 7
        %v451 = vsub.s32 0, %v450
        %v452 = vrot.slane %v447, %v451
        %v454 = vadd.f32 %v443, %v452
        %v455 = vadd.f32 %v444, %v452
        %v456 = vadd.f32 %v445, %v452
        %v457 = vadd.f32 %v446, %v452
        %458 = vst [vmem:[%s313] sm:$0xff] %v454
        %459 = vst [vmem:[%s313 + $0x8] sm:$0xff] %v455
        %460 = vst [vmem:[%s313 + $0x10] sm:$0xff] %v456
        %461 = vst [vmem:[%s313 + $0x18] sm:$0xff] %v457
      $region40: #{multi_head_attention.4} parent=31 // pred_fallthru
        _
      %s462 = smul.u32 4, %s21
      %p463 = scmp.lt.s32.totalorder %s20, 2
      %s464 = scalar_select %p463, %s20, 2
      %p465 = scmp.lt.s32.totalorder %s462, 3
      %s466 = scalar_select %p465, %s462, 3
      %p467 = scmp.lt.s32.totalorder %s22, 0
      %s468 = scalar_select %p467, %s22, 0
      %s469 = sadd.s32 %s468, %s466
      %s470 = smul.addr %s464, 4
      %s471 = sadd.s32 %s469, %s470
      %s472 = smul.addr %s471, 8
      %s473 = scalar_lea.vmem %s3, %s472
      // Predicated region
      $region41: #{multi_head_attention.4} parent=31 // pred_check
        %p474 = pneg %p150
      $region42: #{multi_head_attention.4} parent=31 // pred_check_branch
        %476 = sbr.rel (%p474) target = $region44
      $region43: #{multi_head_attention.4} parent=31 // pred_region
        %s477 = smul.u32 4, %s21
      $region44: #{multi_head_attention.4} parent=31 // pred_fallthru
        _
    $region32: #{multi_head_attention.4} parent=5 // pred_fallthru
      _
    %p478 = scmp.le.s32.totalorder 2, %s9
    // Predicated region
    $region45: #{multi_head_attention.4} parent=5 // pred_check
      %p479 = pneg %p478
    $region46: #{multi_head_attention.4} parent=5 // pred_check_branch
      %481 = sbr.rel (%p479) target = $region48
    $region47: #{multi_head_attention.4} parent=5 // pred_region
      %s482 = ssub.s32 %s9, 2
      // Predicated region
      $region49: #{multi_head_attention.4} parent=47 // pred_check
        %p483 = pneg %p156
      $region50: #{multi_head_attention.4} parent=47 // pred_check_branch
        %485 = sbr.rel (%p483) target = $region52
      $region51: #{multi_head_attention.4} parent=47 // pred_region
        %s486 = smul.u32 4, %s25
        %p487 = scmp.lt.s32.totalorder %s24, 2
        %s488 = scalar_select %p487, %s24, 2
        %p489 = scmp.lt.s32.totalorder %s486, 3
        %s490 = scalar_select %p489, %s486, 3
        %p491 = scmp.lt.s32.totalorder %s26, 0
        %s492 = scalar_select %p491, %s26, 0
        %s493 = sadd.s32 %s492, %s490
        %s494 = smul.addr %s488, 4
        %s495 = sadd.s32 %s493, %s494
        %s496 = smul.addr %s495, 8
        %s497 = scalar_lea.vmem %s3, %s496
      $region52: #{multi_head_attention.4} parent=47 // pred_fallthru
        _
    $region48: #{multi_head_attention.4} parent=5 // pred_fallthru
      _
  $region6: #{multi_head_attention.4} parent=0 // loop_footer
    %s13 = sadd.s32 1, %s9
  $region7: #{multi_head_attention.4} parent=0 // loop_footer_branch
    %8 = sbr.rel target = $region3
  $region8: #{multi_head_attention.4} parent=0 // loop_exit
    _

// kernel: multi_head_attention.5
$region0: #{multi_head_attention.5}
  #allocation0 [shape = 'u32[]', space=smem, size = 0x4, offset = 0x4, fixed_abs, tag = 'smem constant byte address 0x4 - core index']
  #allocation1 [shape = 'u32[144,128]{1,0:T(1,128)}', space=vmem, size = 0x12000, scoped, tag = 'internal scratch']
  %s0 = inlined_call_operand.vmem [shape: f32[2,4,16,8], index: 0, kind: input, shape index: {}]
  %s1 = inlined_call_operand.vmem [shape: f32[2,4,16,8], index: 1, kind: input, shape index: {}]
  %s2 = inlined_call_operand.vmem [shape: f32[2,4,16], index: 2, kind: output, shape index: {}]
  %s3 = sld [smem:[#allocation0]]
  $region41: #{multi_head_attention.5} parent=0
    _
  %s5 = ssub.s32 1, %s3
  %s6 = scalar_select 0, %s5, %s3
  loop: start=0, step=1, limit=4
  $region2: #{multi_head_attention.5} parent=0 // loop_pre_header
    _
  $region3: #{multi_head_attention.5} parent=0 // loop_header
    %s8 = sphi 0, %s12
    %p9 = scmp.ge.s32.totalorder %s8, 4
    %s18 = sphi 0, %s20
    %s21 = sphi 0, %s18
    %s22 = sphi 0, %s21
    %s38 = sphi 0, %s22
    %s44 = sphi 0, %s46
    %s47 = sphi 0, %s44
    %s48 = sphi 0, %s47
    %s64 = sphi 0, %s48
    %s70 = sphi 0, %s72
    %s73 = sphi 0, %s70
    %s74 = sphi 0, %s73
    %s90 = sphi 0, %s74
  $region4: #{multi_head_attention.5} parent=0 // loop_header_branch
    %11 = sbr.rel (%p9) target = $region8
  $region5: #{multi_head_attention.5} parent=0 // loop_body
    %s13 = ssub.s32 %s8, 1
    %s14 = ssub.s32 %s8, 2
    %s15 = sadd.s32 %s8, 1
    %s16 = ssub.s32 %s8, %s15
    %p17 = scmp.eq.s32.totalorder %s16, 0
    %s19 = sadd.s32 %s18, 1
    %s20 = scalar_select %p17, %s18, %s19
    %p23 = pneg %p17
    %p24 = scmp.eq.s32.totalorder %s8, 1
    %p25 = por %p23, %p24
    %p26 = scmp.ne.s32.totalorder %s18, %s21
    %p27 = scmp.eq.s32.totalorder %s8, 0
    %p28 = por %p26, %p27
    %p29 = scmp.ne.s32.totalorder %s18, %s21
    %p30 = scmp.eq.s32.totalorder %s13, 1
    %p31 = por %p29, %p30
    %p32 = scmp.ne.s32.totalorder %s21, %s22
    %p33 = scmp.eq.s32.totalorder %s13, 0
    %p34 = por %p32, %p33
    %p35 = scmp.ne.s32.totalorder %s21, %s22
    %p36 = scmp.eq.s32.totalorder %s14, 1
    %p37 = por %p35, %p36
    %p39 = scmp.ne.s32.totalorder %s22, %s38
    %p40 = scmp.eq.s32.totalorder %s14, 0
    %p41 = por %p39, %p40
    %s42 = ssub.s32 %s8, %s15
    %p43 = scmp.eq.s32.totalorder %s42, 0
    %s45 = sadd.s32 %s44, 1
    %s46 = scalar_select %p43, %s44, %s45
    %p49 = pneg %p43
    %p50 = scmp.eq.s32.totalorder %s8, 1
    %p51 = por %p49, %p50
    %p52 = scmp.ne.s32.totalorder %s44, %s47
    %p53 = scmp.eq.s32.totalorder %s8, 0
    %p54 = por %p52, %p53
    %p55 = scmp.ne.s32.totalorder %s44, %s47
    %p56 = scmp.eq.s32.totalorder %s13, 1
    %p57 = por %p55, %p56
    %p58 = scmp.ne.s32.totalorder %s47, %s48
    %p59 = scmp.eq.s32.totalorder %s13, 0
    %p60 = por %p58, %p59
    %p61 = scmp.ne.s32.totalorder %s47, %s48
    %p62 = scmp.eq.s32.totalorder %s14, 1
    %p63 = por %p61, %p62
    %p65 = scmp.ne.s32.totalorder %s48, %s64
    %p66 = scmp.eq.s32.totalorder %s14, 0
    %p67 = por %p65, %p66
    %s68 = ssub.s32 %s8, %s15
    %p69 = scmp.eq.s32.totalorder %s68, 0
    %s71 = sadd.s32 %s70, 1
    %s72 = scalar_select %p69, %s70, %s71
    %p75 = pneg %p69
    %p76 = scmp.eq.s32.totalorder %s8, 1
    %p77 = por %p75, %p76
    %p78 = scmp.ne.s32.totalorder %s70, %s73
    %p79 = scmp.eq.s32.totalorder %s8, 0
    %p80 = por %p78, %p79
    %p81 = scmp.ne.s32.totalorder %s70, %s73
    %p82 = scmp.eq.s32.totalorder %s13, 1
    %p83 = por %p81, %p82
    %p84 = scmp.ne.s32.totalorder %s73, %s74
    %p85 = scmp.eq.s32.totalorder %s13, 0
    %p86 = por %p84, %p85
    %p87 = scmp.ne.s32.totalorder %s73, %s74
    %p88 = scmp.eq.s32.totalorder %s14, 1
    %p89 = por %p87, %p88
    %p91 = scmp.ne.s32.totalorder %s74, %s90
    %p92 = scmp.eq.s32.totalorder %s14, 0
    %p93 = por %p91, %p92
    %p94 = scmp.le.s32.totalorder 1, %s8
    %p95 = scmp.lt.s32.totalorder %s8, 3
    %p96 = pnand %p94, %p95
    %p97 = pneg %p96
    // Predicated region
    $region9: #{multi_head_attention.5} parent=5 // pred_check
      _
    $region10: #{multi_head_attention.5} parent=5 // pred_check_branch
      %99 = sbr.rel (%p96) target = $region12
    $region11: #{multi_head_attention.5} parent=5 // pred_region
      %s100 = ssub.s32 %s8, 1
    $region12: #{multi_head_attention.5} parent=5 // pred_fallthru
      _
    %p101 = scmp.lt.s32.totalorder %s8, 2
    // Predicated region
    $region13: #{multi_head_attention.5} parent=5 // pred_check
      %p102 = pneg %p101
    $region14: #{multi_head_attention.5} parent=5 // pred_check_branch
      %104 = sbr.rel (%p102) target = $region16
    $region15: #{multi_head_attention.5} parent=5 // pred_region
      // Predicated region
      $region17: #{multi_head_attention.5} parent=15 // pred_check
        %p105 = pneg %p28
      $region18: #{multi_head_attention.5} parent=15 // pred_check_branch
        %107 = sbr.rel (%p105) target = $region20
      $region19: #{multi_head_attention.5} parent=15 // pred_region
        %p108 = scmp.lt.s32.totalorder %s8, 1
        %s109 = scalar_select %p108, %s8, 1
        %s110 = smul.addr %s109, 8
        %s111 = smul.addr %s110, 8
        %s112 = scalar_lea.vmem %s0, %s111
      $region20: #{multi_head_attention.5} parent=15 // pred_fallthru
        _
      // Predicated region
      $region21: #{multi_head_attention.5} parent=15 // pred_check
        %p113 = pneg %p54
      $region22: #{multi_head_attention.5} parent=15 // pred_check_branch
        %115 = sbr.rel (%p113) target = $region24
      $region23: #{multi_head_attention.5} parent=15 // pred_region
        %p116 = scmp.lt.s32.totalorder %s8, 1
        %s117 = scalar_select %p116, %s8, 1
        %s118 = smul.addr %s117, 8
        %s119 = smul.addr %s118, 8
        %s120 = scalar_lea.vmem %s1, %s119
      $region24: #{multi_head_attention.5} parent=15 // pred_fallthru
        _
    $region16: #{multi_head_attention.5} parent=5 // pred_fallthru
      _
    %p121 = scmp.le.s32.totalorder 1, %s8
    %p122 = scmp.lt.s32.totalorder %s8, 3
    %p123 = pnand %p121, %p122
    %p124 = pneg %p123
    // Predicated region
    $region25: #{multi_head_attention.5} parent=5 // pred_check
      _
    $region26: #{multi_head_attention.5} parent=5 // pred_check_branch
      %126 = sbr.rel (%p123) target = $region28
    $region27: #{multi_head_attention.5} parent=5 // pred_region
      %s127 = ssub.s32 %s8, 1
      %p128 = scmp.lt.s32.totalorder %s13, 1
      %s129 = scalar_select %p128, %s13, 1
      %s130 = smul.addr %s129, 8
      %s131 = smul.addr %s130, 8
      %s132 = scalar_lea.vmem %s0, %s131
      %p133 = pneg %p34
      %p134 = pneg %p31
      %p135 = scmp.lt.s32.totalorder %s13, 1
      %s136 = scalar_select %p135, %s13, 1
      %s137 = smul.addr %s136, 8
      %s138 = smul.addr %s137, 8
      %s139 = scalar_lea.vmem %s1, %s138
      %p140 = pneg %p60
      %p141 = pneg %p57
      %p142 = pneg %p86
      %p143 = pneg %p83
      %p144 = scmp.lt.s32.totalorder %s13, 1
      %s145 = scalar_select %p144, %s13, 1
      %s146 = smul.addr %s145, 4
      %s147 = scalar_lea.vmem %s2, %s146
      %p148 = scmp.lt.s32.totalorder %s13, 1
      %s149 = scalar_select %p148, %s13, 1
      %s150 = smul.addr %s149, 8
      %s151 = smul.addr %s150, 8
      %s152 = scalar_lea.vmem %s0, %s151
      %p153 = scmp.lt.s32.totalorder %s13, 1
      %s154 = scalar_select %p153, %s13, 1
      %s155 = smul.addr %s154, 8
      %s156 = smul.addr %s155, 8
      %s157 = scalar_lea.vmem %s1, %s156
      %p158 = scmp.lt.s32.totalorder %s13, 1
      %s159 = scalar_select %p158, %s13, 1
      %s160 = smul.addr %s159, 4
      %s161 = scalar_lea.vmem %s2, %s160
      %v162 = vld [vmem:[%s152] sm:$0xff]
      %v163 = vld [vmem:[%s152 + $0x8] sm:$0xff]
      %v164 = vld [vmem:[%s152 + $0x10] sm:$0xff]
      %v165 = vld [vmem:[%s152 + $0x18] sm:$0xff]
      %v166 = vld [vmem:[%s152 + $0x20] sm:$0xff]
      %v167 = vld [vmem:[%s152 + $0x28] sm:$0xff]
      %v168 = vld [vmem:[%s152 + $0x30] sm:$0xff]
      %v169 = vld [vmem:[%s152 + $0x38] sm:$0xff]
      %v170 = vld [vmem:[%s157] sm:$0xff]
      %v171 = vld [vmem:[%s157 + $0x8] sm:$0xff]
      %v172 = vld [vmem:[%s157 + $0x10] sm:$0xff]
      %v173 = vld [vmem:[%s157 + $0x18] sm:$0xff]
      %v174 = vld [vmem:[%s157 + $0x20] sm:$0xff]
      %v175 = vld [vmem:[%s157 + $0x28] sm:$0xff]
      %v176 = vld [vmem:[%s157 + $0x30] sm:$0xff]
      %v177 = vld [vmem:[%s157 + $0x38] sm:$0xff]
      %vm178 = vcmask 64512
      %v180 = vsel %vm178, %v162, 0
      %v183 = vsel %vm178, %v163, 0
      %v186 = vsel %vm178, %v170, 0
      %v189 = vsel %vm178, %v171, 0
      %191 = vmatprep.subr.mxu0 0.0
      %192 = vmatpush1.xpose.msra.mxu0 %v186
      %193 = vmatprep.subr.mxu0 0.0
      %194 = vmatpush1.xpose.msra.mxu0 %v189
      %195 = vmatprep.subr.mxu0 0.0
      %196 = vmatpush1.xpose.msra.mxu0 0.0
      %197 = vmatprep.subr.mxu0 0.0
      %198 = vmatpush1.xpose.msra.mxu0 0.0
      %199 = vmatprep.subr.mxu0 0.0
      %200 = vmatpush1.xpose.msra.mxu0 0.0
      %201 = vmatprep.subr.mxu0 0.0
      %202 = vmatpush1.xpose.msra.mxu0 0.0
      %203 = vmatprep.subr.mxu0 0.0
      %204 = vmatpush1.xpose.msra.mxu0 0.0
      %205 = vmatprep.subr.mxu0 0.0
      %206 = vmatpush1.xpose.msra.mxu0 0.0
      %207 = vmatprep.subr.mxu0 0.0
      %208 = vmatpush1.xpose.msra.mxu0 0.0
      %209 = vmatprep.subr.mxu0 0.0
      %210 = vmatpush1.xpose.msra.mxu0 0.0
      %211 = vmatprep.subr.mxu0 0.0
      %212 = vmatpush1.xpose.msra.mxu0 0.0
      %213 = vmatprep.subr.mxu0 0.0
      %214 = vmatpush1.xpose.msra.mxu0 0.0
      %215 = vmatprep.subr.mxu0 0.0
      %216 = vmatpush1.xpose.msra.mxu0 0.0
      %217 = vmatprep.subr.mxu0 0.0
      %218 = vmatpush1.xpose.msra.mxu0 0.0
      %219 = vmatprep.subr.mxu0 0.0
      %220 = vmatpush1.xpose.msra.mxu0 0.0
      %221 = vmatprep.subr.mxu0 0.0
      %222 = vmatpush1.xpose.msra.mxu0 0.0
      %223 = vmatprep.subr.mxu0 0.0
      %224 = vmatpush1.xpose.msra.mxu0 0.0
      %225 = vmatprep.subr.mxu0 0.0
      %226 = vmatpush1.xpose.msra.mxu0 0.0
      %227 = vmatprep.subr.mxu0 0.0
      %228 = vmatpush1.xpose.msra.mxu0 0.0
      %229 = vmatprep.subr.mxu0 0.0
      %230 = vmatpush1.xpose.msra.mxu0 0.0
      %231 = vmatprep.subr.mxu0 0.0
      %232 = vmatpush1.xpose.msra.mxu0 0.0
      %233 = vmatprep.subr.mxu0 0.0
      %234 = vmatpush1.xpose.msra.mxu0 0.0
      %235 = vmatprep.subr.mxu0 0.0
      %236 = vmatpush1.xpose.msra.mxu0 0.0
      %237 = vmatprep.subr.mxu0 0.0
      %238 = vmatpush1.xpose.msra.mxu0 0.0
      %239 = vmatprep.subr.mxu0 0.0
      %240 = vmatpush1.xpose.msra.mxu0 0.0
      %241 = vmatprep.subr.mxu0 0.0
      %242 = vmatpush1.xpose.msra.mxu0 0.0
      %243 = vmatprep.subr.mxu0 0.0
      %244 = vmatpush1.xpose.msra.mxu0 0.0
      %245 = vmatprep.subr.mxu0 0.0
      %246 = vmatpush1.xpose.msra.mxu0 0.0
      %247 = vmatprep.subr.mxu0 0.0
      %248 = vmatpush1.xpose.msra.mxu0 0.0
      %249 = vmatprep.subr.mxu0 0.0
      %250 = vmatpush1.xpose.msra.mxu0 0.0
      %251 = vmatprep.subr.mxu0 0.0
      %252 = vmatpush1.xpose.msra.mxu0 0.0
      %253 = vmatprep.subr.mxu0 0.0
      %254 = vmatpush1.xpose.msra.mxu0 0.0
      %255 = vmatprep.mubr.f32.mxu0 0.0
      %256 = vmatmul.mubr.f32.gmra.mrb[0].mxu0 %v180
      %v257 = vpop.f32.mrb[0].mxu0
      %v258 = vadd.f32 0.0, %v257
      %v259 = vpop.f32.mrb[0].mxu0
      %260 = vmatprep.mubr.f32.mxu0 0.0
      %261 = vmatmul.mubr.f32.gmra.mrb[0].mxu0 %v183
      %v262 = vpop.f32.mrb[0].mxu0
      %v263 = vadd.f32 0.0, %v262
      %v264 = vpop.f32.mrb[0].mxu0
      %265 = vdwg.mxu0
      %v267 = vsel %vm178, %v164, 0
      %v270 = vsel %vm178, %v165, 0
      %v273 = vsel %vm178, %v172, 0
      %v276 = vsel %vm178, %v173, 0
      %278 = vmatprep.subr.mxu0 0.0
      %279 = vmatpush1.xpose.msra.mxu0 %v273
      %280 = vmatprep.subr.mxu0 0.0
      %281 = vmatpush1.xpose.msra.mxu0 %v276
      %282 = vmatprep.subr.mxu0 0.0
      %283 = vmatpush1.xpose.msra.mxu0 0.0
      %284 = vmatprep.subr.mxu0 0.0
      %285 = vmatpush1.xpose.msra.mxu0 0.0
      %286 = vmatprep.subr.mxu0 0.0
      %287 = vmatpush1.xpose.msra.mxu0 0.0
      %288 = vmatprep.subr.mxu0 0.0
      %289 = vmatpush1.xpose.msra.mxu0 0.0
      %290 = vmatprep.subr.mxu0 0.0
      %291 = vmatpush1.xpose.msra.mxu0 0.0
      %292 = vmatprep.subr.mxu0 0.0
      %293 = vmatpush1.xpose.msra.mxu0 0.0
      %294 = vmatprep.subr.mxu0 0.0
      %295 = vmatpush1.xpose.msra.mxu0 0.0
      %296 = vmatprep.subr.mxu0 0.0
      %297 = vmatpush1.xpose.msra.mxu0 0.0
      %298 = vmatprep.subr.mxu0 0.0
      %299 = vmatpush1.xpose.msra.mxu0 0.0
      %300 = vmatprep.subr.mxu0 0.0
      %301 = vmatpush1.xpose.msra.mxu0 0.0
      %302 = vmatprep.subr.mxu0 0.0
      %303 = vmatpush1.xpose.msra.mxu0 0.0
      %304 = vmatprep.subr.mxu0 0.0
      %305 = vmatpush1.xpose.msra.mxu0 0.0
      %306 = vmatprep.subr.mxu0 0.0
      %307 = vmatpush1.xpose.msra.mxu0 0.0
      %308 = vmatprep.subr.mxu0 0.0
      %309 = vmatpush1.xpose.msra.mxu0 0.0
      %310 = vmatprep.subr.mxu0 0.0
      %311 = vmatpush1.xpose.msra.mxu0 0.0
      %312 = vmatprep.subr.mxu0 0.0
      %313 = vmatpush1.xpose.msra.mxu0 0.0
      %314 = vmatprep.subr.mxu0 0.0
      %315 = vmatpush1.xpose.msra.mxu0 0.0
      %316 = vmatprep.subr.mxu0 0.0
      %317 = vmatpush1.xpose.msra.mxu0 0.0
      %318 = vmatprep.subr.mxu0 0.0
      %319 = vmatpush1.xpose.msra.mxu0 0.0
      %320 = vmatprep.subr.mxu0 0.0
      %321 = vmatpush1.xpose.msra.mxu0 0.0
      %322 = vmatprep.subr.mxu0 0.0
      %323 = vmatpush1.xpose.msra.mxu0 0.0
      %324 = vmatprep.subr.mxu0 0.0
      %325 = vmatpush1.xpose.msra.mxu0 0.0
      %326 = vmatprep.subr.mxu0 0.0
      %327 = vmatpush1.xpose.msra.mxu0 0.0
      %328 = vmatprep.subr.mxu0 0.0
      %329 = vmatpush1.xpose.msra.mxu0 0.0
      %330 = vmatprep.subr.mxu0 0.0
      %331 = vmatpush1.xpose.msra.mxu0 0.0
      %332 = vmatprep.subr.mxu0 0.0
      %333 = vmatpush1.xpose.msra.mxu0 0.0
      %334 = vmatprep.subr.mxu0 0.0
      %335 = vmatpush1.xpose.msra.mxu0 0.0
      %336 = vmatprep.subr.mxu0 0.0
      %337 = vmatpush1.xpose.msra.mxu0 0.0
      %338 = vmatprep.subr.mxu0 0.0
      %339 = vmatpush1.xpose.msra.mxu0 0.0
      %340 = vmatprep.subr.mxu0 0.0
      %341 = vmatpush1.xpose.msra.mxu0 0.0
      %342 = vmatprep.mubr.f32.mxu0 0.0
      %343 = vmatmul.mubr.f32.gmra.mrb[0].mxu0 %v267
      %v344 = vpop.f32.mrb[0].mxu0
      %v345 = vadd.f32 0.0, %v344
      %v346 = vpop.f32.mrb[0].mxu0
      %347 = vmatprep.mubr.f32.mxu0 0.0
      %348 = vmatmul.mubr.f32.gmra.mrb[0].mxu0 %v270
      %v349 = vpop.f32.mrb[0].mxu0
      %v350 = vadd.f32 0.0, %v349
      %v351 = vpop.f32.mrb[0].mxu0
      %352 = vdwg.mxu0
      %v354 = vsel %vm178, %v166, 0
      %v357 = vsel %vm178, %v167, 0
      %v360 = vsel %vm178, %v174, 0
      %v363 = vsel %vm178, %v175, 0
      %365 = vmatprep.subr.mxu0 0.0
      %366 = vmatpush1.xpose.msra.mxu0 %v360
      %367 = vmatprep.subr.mxu0 0.0
      %368 = vmatpush1.xpose.msra.mxu0 %v363
      %369 = vmatprep.subr.mxu0 0.0
      %370 = vmatpush1.xpose.msra.mxu0 0.0
      %371 = vmatprep.subr.mxu0 0.0
      %372 = vmatpush1.xpose.msra.mxu0 0.0
      %373 = vmatprep.subr.mxu0 0.0
      %374 = vmatpush1.xpose.msra.mxu0 0.0
      %375 = vmatprep.subr.mxu0 0.0
      %376 = vmatpush1.xpose.msra.mxu0 0.0
      %377 = vmatprep.subr.mxu0 0.0
      %378 = vmatpush1.xpose.msra.mxu0 0.0
      %379 = vmatprep.subr.mxu0 0.0
      %380 = vmatpush1.xpose.msra.mxu0 0.0
      %381 = vmatprep.subr.mxu0 0.0
      %382 = vmatpush1.xpose.msra.mxu0 0.0
      %383 = vmatprep.subr.mxu0 0.0
      %384 = vmatpush1.xpose.msra.mxu0 0.0
      %385 = vmatprep.subr.mxu0 0.0
      %386 = vmatpush1.xpose.msra.mxu0 0.0
      %387 = vmatprep.subr.mxu0 0.0
      %388 = vmatpush1.xpose.msra.mxu0 0.0
      %389 = vmatprep.subr.mxu0 0.0
      %390 = vmatpush1.xpose.msra.mxu0 0.0
      %391 = vmatprep.subr.mxu0 0.0
      %392 = vmatpush1.xpose.msra.mxu0 0.0
      %393 = vmatprep.subr.mxu0 0.0
      %394 = vmatpush1.xpose.msra.mxu0 0.0
      %395 = vmatprep.subr.mxu0 0.0
      %396 = vmatpush1.xpose.msra.mxu0 0.0
      %397 = vmatprep.subr.mxu0 0.0
      %398 = vmatpush1.xpose.msra.mxu0 0.0
      %399 = vmatprep.subr.mxu0 0.0
      %400 = vmatpush1.xpose.msra.mxu0 0.0
      %401 = vmatprep.subr.mxu0 0.0
      %402 = vmatpush1.xpose.msra.mxu0 0.0
      %403 = vmatprep.subr.mxu0 0.0
      %404 = vmatpush1.xpose.msra.mxu0 0.0
      %405 = vmatprep.subr.mxu0 0.0
      %406 = vmatpush1.xpose.msra.mxu0 0.0
      %407 = vmatprep.subr.mxu0 0.0
      %408 = vmatpush1.xpose.msra.mxu0 0.0
      %409 = vmatprep.subr.mxu0 0.0
      %410 = vmatpush1.xpose.msra.mxu0 0.0
      %411 = vmatprep.subr.mxu0 0.0
      %412 = vmatpush1.xpose.msra.mxu0 0.0
      %413 = vmatprep.subr.mxu0 0.0
      %414 = vmatpush1.xpose.msra.mxu0 0.0
      %415 = vmatprep.subr.mxu0 0.0
      %416 = vmatpush1.xpose.msra.mxu0 0.0
      %417 = vmatprep.subr.mxu0 0.0
      %418 = vmatpush1.xpose.msra.mxu0 0.0
      %419 = vmatprep.subr.mxu0 0.0
      %420 = vmatpush1.xpose.msra.mxu0 0.0
      %421 = vmatprep.subr.mxu0 0.0
      %422 = vmatpush1.xpose.msra.mxu0 0.0
      %423 = vmatprep.subr.mxu0 0.0
      %424 = vmatpush1.xpose.msra.mxu0 0.0
      %425 = vmatprep.subr.mxu0 0.0
      %426 = vmatpush1.xpose.msra.mxu0 0.0
      %427 = vmatprep.subr.mxu0 0.0
      %428 = vmatpush1.xpose.msra.mxu0 0.0
      %429 = vmatprep.mubr.f32.mxu0 0.0
      %430 = vmatmul.mubr.f32.gmra.mrb[0].mxu0 %v354
      %v431 = vpop.f32.mrb[0].mxu0
      %v432 = vadd.f32 0.0, %v431
      %v433 = vpop.f32.mrb[0].mxu0
      %434 = vmatprep.mubr.f32.mxu0 0.0
      %435 = vmatmul.mubr.f32.gmra.mrb[0].mxu0 %v357
      %v436 = vpop.f32.mrb[0].mxu0
      %v437 = vadd.f32 0.0, %v436
      %v438 = vpop.f32.mrb[0].mxu0
      %439 = vdwg.mxu0
      %v441 = vsel %vm178, %v168, 0
      %v444 = vsel %vm178, %v169, 0
      %v447 = vsel %vm178, %v176, 0
      %v450 = vsel %vm178, %v177, 0
      %452 = vmatprep.subr.mxu0 0.0
      %453 = vmatpush1.xpose.msra.mxu0 %v447
      %454 = vmatprep.subr.mxu0 0.0
      %455 = vmatpush1.xpose.msra.mxu0 %v450
      %456 = vmatprep.subr.mxu0 0.0
      %457 = vmatpush1.xpose.msra.mxu0 0.0
      %458 = vmatprep.subr.mxu0 0.0
      %459 = vmatpush1.xpose.msra.mxu0 0.0
      %460 = vmatprep.subr.mxu0 0.0
      %461 = vmatpush1.xpose.msra.mxu0 0.0
      %462 = vmatprep.subr.mxu0 0.0
      %463 = vmatpush1.xpose.msra.mxu0 0.0
      %464 = vmatprep.subr.mxu0 0.0
      %465 = vmatpush1.xpose.msra.mxu0 0.0
      %466 = vmatprep.subr.mxu0 0.0
      %467 = vmatpush1.xpose.msra.mxu0 0.0
      %468 = vmatprep.subr.mxu0 0.0
      %469 = vmatpush1.xpose.msra.mxu0 0.0
      %470 = vmatprep.subr.mxu0 0.0
      %471 = vmatpush1.xpose.msra.mxu0 0.0
      %472 = vmatprep.subr.mxu0 0.0
      %473 = vmatpush1.xpose.msra.mxu0 0.0
      %474 = vmatprep.subr.mxu0 0.0
      %475 = vmatpush1.xpose.msra.mxu0 0.0
      %476 = vmatprep.subr.mxu0 0.0
      %477 = vmatpush1.xpose.msra.mxu0 0.0
      %478 = vmatprep.subr.mxu0 0.0
      %479 = vmatpush1.xpose.msra.mxu0 0.0
      %480 = vmatprep.subr.mxu0 0.0
      %481 = vmatpush1.xpose.msra.mxu0 0.0
      %482 = vmatprep.subr.mxu0 0.0
      %483 = vmatpush1.xpose.msra.mxu0 0.0
      %484 = vmatprep.subr.mxu0 0.0
      %485 = vmatpush1.xpose.msra.mxu0 0.0
      %486 = vmatprep.subr.mxu0 0.0
      %487 = vmatpush1.xpose.msra.mxu0 0.0
      %488 = vmatprep.subr.mxu0 0.0
      %489 = vmatpush1.xpose.msra.mxu0 0.0
      %490 = vmatprep.subr.mxu0 0.0
      %491 = vmatpush1.xpose.msra.mxu0 0.0
      %492 = vmatprep.subr.mxu0 0.0
      %493 = vmatpush1.xpose.msra.mxu0 0.0
      %494 = vmatprep.subr.mxu0 0.0
      %495 = vmatpush1.xpose.msra.mxu0 0.0
      %496 = vmatprep.subr.mxu0 0.0
      %497 = vmatpush1.xpose.msra.mxu0 0.0
      %498 = vmatprep.subr.mxu0 0.0
      %499 = vmatpush1.xpose.msra.mxu0 0.0
      %500 = vmatprep.subr.mxu0 0.0
      %501 = vmatpush1.xpose.msra.mxu0 0.0
      %502 = vmatprep.subr.mxu0 0.0
      %503 = vmatpush1.xpose.msra.mxu0 0.0
      %504 = vmatprep.subr.mxu0 0.0
      %505 = vmatpush1.xpose.msra.mxu0 0.0
      %506 = vmatprep.subr.mxu0 0.0
      %507 = vmatpush1.xpose.msra.mxu0 0.0
      %508 = vmatprep.subr.mxu0 0.0
      %509 = vmatpush1.xpose.msra.mxu0 0.0
      %510 = vmatprep.subr.mxu0 0.0
      %511 = vmatpush1.xpose.msra.mxu0 0.0
      %512 = vmatprep.subr.mxu0 0.0
      %513 = vmatpush1.xpose.msra.mxu0 0.0
      %514 = vmatprep.subr.mxu0 0.0
      %515 = vmatpush1.xpose.msra.mxu0 0.0
      %516 = vmatprep.mubr.f32.mxu0 0.0
      %517 = vmatmul.mubr.f32.gmra.mrb[0].mxu0 %v441
      %v518 = vpop.f32.mrb[0].mxu0
      %v519 = vadd.f32 0.0, %v518
      %v520 = vpop.f32.mrb[0].mxu0
      %521 = vmatprep.mubr.f32.mxu0 0.0
      %522 = vmatmul.mubr.f32.gmra.mrb[0].mxu0 %v444
      %v523 = vpop.f32.mrb[0].mxu0
      %v524 = vadd.f32 0.0, %v523
      %v525 = vpop.f32.mrb[0].mxu0
      %526 = vdwg.mxu0
      %vm527 = vcmask 130048
      %v528 = vsel %vm527, %v258, -inf
      %529 = vmax.xlane.f32.xlu0 %v528
      %v530 = vpop.xlane.xlu0 %529
      %v531 = vsel %vm527, %v263, -inf
      %532 = vmax.xlane.f32.xlu0 %v531
      %v533 = vpop.xlane.xlu0 %532
      %v534 = vsel %vm527, %v345, -inf
      %535 = vmax.xlane.f32.xlu0 %v534
      %v536 = vpop.xlane.xlu0 %535
      %v537 = vsel %vm527, %v350, -inf
      %538 = vmax.xlane.f32.xlu0 %v537
      %v539 = vpop.xlane.xlu0 %538
      %v540 = vsel %vm527, %v432, -inf
      %541 = vmax.xlane.f32.xlu0 %v540
      %v542 = vpop.xlane.xlu0 %541
      %v543 = vsel %vm527, %v437, -inf
      %544 = vmax.xlane.f32.xlu0 %v543
      %v545 = vpop.xlane.xlu0 %544
      %v546 = vsel %vm527, %v519, -inf
      %547 = vmax.xlane.f32.xlu0 %v546
      %v548 = vpop.xlane.xlu0 %547
      %v549 = vsel %vm527, %v524, -inf
      %550 = vmax.xlane.f32.xlu0 %v549
      %v551 = vpop.xlane.xlu0 %550
      %v552 = vsel %vm527, %v258, 0.0
      %553 = vadd.xlane.f32.xlu0 %v552
      %v554 = vpop.xlane.xlu0 %553
      %v555 = vsel %vm527, %v263, 0.0
      %556 = vadd.xlane.f32.xlu0 %v555
      %v557 = vpop.xlane.xlu0 %556
      %v558 = vsel %vm527, %v345, 0.0
      %559 = vadd.xlane.f32.xlu0 %v558
      %v560 = vpop.xlane.xlu0 %559
      %v561 = vsel %vm527, %v350, 0.0
      %562 = vadd.xlane.f32.xlu0 %v561
      %v563 = vpop.xlane.xlu0 %562
      %v564 = vsel %vm527, %v432, 0.0
      %565 = vadd.xlane.f32.xlu0 %v564
      %v566 = vpop.xlane.xlu0 %565
      %v567 = vsel %vm527, %v437, 0.0
      %568 = vadd.xlane.f32.xlu0 %v567
      %v569 = vpop.xlane.xlu0 %568
      %v570 = vsel %vm527, %v519, 0.0
      %571 = vadd.xlane.f32.xlu0 %v570
      %v572 = vpop.xlane.xlu0 %571
      %v573 = vsel %vm527, %v524, 0.0
      %574 = vadd.xlane.f32.xlu0 %v573
      %v575 = vpop.xlane.xlu0 %574
      %v576 = vmul.f32 %v554, 0.0625
      %v577 = vmul.f32 %v557, 0.0625
      %v578 = vmul.f32 %v560, 0.0625
      %v579 = vmul.f32 %v563, 0.0625
      %v580 = vmul.f32 %v566, 0.0625
      %v581 = vmul.f32 %v569, 0.0625
      %v582 = vmul.f32 %v572, 0.0625
      %v583 = vmul.f32 %v575, 0.0625
      %v584 = vsub.f32 %v530, %v576
      %v585 = vsub.f32 %v533, %v577
      %v586 = vsub.f32 %v536, %v578
      %v587 = vsub.f32 %v539, %v579
      %v588 = vsub.f32 %v542, %v580
      %v589 = vsub.f32 %v545, %v581
      %v590 = vsub.f32 %v548, %v582
      %v591 = vsub.f32 %v551, %v583
      %v600 = vlaneseq
      %v601 = vand.u32 %v600, 127
      %v602 = vlaneseq
      %v603 = vshrl.u32 %v602, 7
      %v604 = vsub.s32 %v601, %v603
      %v605 = vrot.slane %v584, %v604
      %v606 = vadd.s32 %v601, 4294967288
      %v607 = vlaneseq
      %v608 = vshrl.u32 %v607, 7
      %v609 = vsub.s32 %v606, %v608
      %v610 = vrot.slane %v585, %v609
      %vm611 = vcmask 130112
      %v612 = vsel %vm611, %v610, %v605
      %v613 = vlaneseq
      %v614 = vshrl.u32 %v613, 7
      %v615 = vsub.s32 %v601, %v614
      %v616 = vrot.slane %v586, %v615
      %v617 = vlaneseq
      %v618 = vshrl.u32 %v617, 7
      %v619 = vsub.s32 %v606, %v618
      %v620 = vrot.slane %v587, %v619
      %v621 = vsel %vm611, %v620, %v616
      %v622 = vlaneseq
      %v623 = vshrl.u32 %v622, 7
      %v624 = vsub.s32 %v601, %v623
      %v625 = vrot.slane %v588, %v624
      %v626 = vlaneseq
      %v627 = vshrl.u32 %v626, 7
      %v628 = vsub.s32 %v606, %v627
      %v629 = vrot.slane %v589, %v628
      %v630 = vsel %vm611, %v629, %v625
      %v631 = vlaneseq
      %v632 = vshrl.u32 %v631, 7
      %v633 = vsub.s32 %v601, %v632
      %v634 = vrot.slane %v590, %v633
      %v635 = vlaneseq
      %v636 = vshrl.u32 %v635, 7
      %v637 = vsub.s32 %v606, %v636
      %v638 = vrot.slane %v591, %v637
      %v639 = vsel %vm611, %v638, %v634
      %vm640 = vcmask 1041409
      %v641 = vsel %vm640, %v621, %v612
      %vm642 = vcmask 1042434
      %v643 = vsel %vm642, %v630, %v641
      %vm644 = vcmask 1043459
      %v645 = vsel %vm644, %v639, %v643
      %vm647 = vcmask 125952
      %648 = vst.msk [vmem:[%s161] sm:$0xf] %vm647, %v645
      %p649 = scmp.lt.s32.totalorder %s13, 1
      %s650 = scalar_select %p649, %s13, 1
      %s651 = smul.addr %s650, 4
      %s652 = scalar_lea.vmem %s2, %s651
      // Predicated region
      $region29: #{multi_head_attention.5} parent=27 // pred_check
        %p653 = pneg %p83
      $region30: #{multi_head_attention.5} parent=27 // pred_check_branch
        %655 = sbr.rel (%p653) target = $region32
      $region31: #{multi_head_attention.5} parent=27 // pred_region
        _
      $region32: #{multi_head_attention.5} parent=27 // pred_fallthru
        _
    $region28: #{multi_head_attention.5} parent=5 // pred_fallthru
      _
    %p656 = scmp.le.s32.totalorder 2, %s8
    // Predicated region
    $region33: #{multi_head_attention.5} parent=5 // pred_check
      %p657 = pneg %p656
    $region34: #{multi_head_attention.5} parent=5 // pred_check_branch
      %659 = sbr.rel (%p657) target = $region36
    $region35: #{multi_head_attention.5} parent=5 // pred_region
      %s660 = ssub.s32 %s8, 2
      // Predicated region
      $region37: #{multi_head_attention.5} parent=35 // pred_check
        %p661 = pneg %p89
      $region38: #{multi_head_attention.5} parent=35 // pred_check_branch
        %663 = sbr.rel (%p661) target = $region40
      $region39: #{multi_head_attention.5} parent=35 // pred_region
        %p664 = scmp.lt.s32.totalorder %s14, 1
        %s665 = scalar_select %p664, %s14, 1
        %s666 = smul.addr %s665, 4
        %s667 = scalar_lea.vmem %s2, %s666
      $region40: #{multi_head_attention.5} parent=35 // pred_fallthru
        _
    $region36: #{multi_head_attention.5} parent=5 // pred_fallthru
      _
  $region6: #{multi_head_attention.5} parent=0 // loop_footer
    %s12 = sadd.s32 1, %s8
  $region7: #{multi_head_attention.5} parent=0 // loop_footer_branch
    %7 = sbr.rel target = $region3
  $region8: #{multi_head_attention.5} parent=0 // loop_exit
    _

// kernel: squeeze.23
$region0: #{squeeze.23}
  %s0 = inlined_call_operand.vmem [shape: f32[1,30,32], index: 0, kind: input, shape index: {}]
  %s1 = inlined_call_operand.vmem [shape: f32[2,15,32], index: 1, kind: output, shape index: {}]
  %v2 = vld [vmem:[%s0] sm:$0xff]
  %vm3 = vcmask 261120
  %4 = vst.msk [vmem:[%s1] sm:$0xff] %vm3, %v2
  %s5 = scalar_lea.vmem %s0, 8
  %v6 = vld [vmem:[%s5] sm:$0xff]
  %vm7 = vcmask 261120
  %s8 = scalar_lea.vmem %s1, 8
  %9 = vst.msk [vmem:[%s8] sm:$0x7f] %vm7, %v6
  %s10 = scalar_lea.vmem %s1, 9
  %11 = vst.msk [vmem:[%s10] sm:$0x80] %vm7, %v6
  %s12 = scalar_lea.vmem %s0, 16
  %v13 = vld [vmem:[%s12] sm:$0xff]
  %vm14 = vcmask 261120
  %s15 = scalar_lea.vmem %s1, 17
  %16 = vst.msk [vmem:[%s15] sm:$0xff] %vm14, %v13
  %s17 = scalar_lea.vmem %s0, 24
  %v18 = vld [vmem:[%s17] sm:$0x3f]
  %vm19 = vcmask 261120
  %s20 = scalar_lea.vmem %s1, 25
  %21 = vst.msk [vmem:[%s20] sm:$0x3f] %vm19, %v18

// kernel: multi_head_attention.7
$region0: #{multi_head_attention.7}
  #allocation0 [shape = 'u32[]', space=smem, size = 0x4, offset = 0x4, fixed_abs, tag = 'smem constant byte address 0x4 - core index']
  #allocation1 [shape = 'u32[144,128]{1,0:T(1,128)}', space=vmem, size = 0x12000, scoped, tag = 'internal scratch']
  #allocation2 [shape = 'f32[32,128]{1,0:T(8,128)}', space=vmem, size = 0x4000, scoped, tag = 'scratch operand']
  %s0 = inlined_call_operand.vmem [shape: f32[1,32,128], index: 0, kind: input, shape index: {}]
  %s1 = inlined_call_operand.vmem [shape: f32[1,128,128], index: 1, kind: input, shape index: {}]
  %s2 = inlined_call_operand.vmem [shape: f32[1,1,128], index: 2, kind: input, shape index: {}]
  %s3 = inlined_call_operand.vmem [shape: f32[1,32,128], index: 3, kind: output, shape index: {}]
  %s4 = sld [smem:[#allocation0]]
  $region30: #{multi_head_attention.7} parent=0
    _
  %s6 = ssub.s32 1, %s4
  %s7 = scalar_select 0, %s6, %s4
  // Predicated region
  $region2: #{multi_head_attention.7} parent=0 // pred_check
    _
  $region3: #{multi_head_attention.7} parent=0 // pred_check_branch
    %9 = sbr.rel (0) target = $region5
  $region4: #{multi_head_attention.7} parent=0 // pred_region
    _
  $region5: #{multi_head_attention.7} parent=0 // pred_fallthru
    _
  // Predicated region
  $region6: #{multi_head_attention.7} parent=0 // pred_check
    _
  $region7: #{multi_head_attention.7} parent=0 // pred_check_branch
    %11 = sbr.rel (0) target = $region9
  $region8: #{multi_head_attention.7} parent=0 // pred_region
    _
  $region9: #{multi_head_attention.7} parent=0 // pred_fallthru
    _
  // Predicated region
  $region10: #{multi_head_attention.7} parent=0 // pred_check
    _
  $region11: #{multi_head_attention.7} parent=0 // pred_check_branch
    %13 = sbr.rel (0) target = $region13
  $region12: #{multi_head_attention.7} parent=0 // pred_region
    _
  $region13: #{multi_head_attention.7} parent=0 // pred_fallthru
    _
  %p14 = scmp.eq.s32.totalorder 0, 0
  // Predicated region
  $region14: #{multi_head_attention.7} parent=0 // pred_check
    %p15 = pneg %p14
  $region15: #{multi_head_attention.7} parent=0 // pred_check_branch
    %17 = sbr.rel (%p15) target = $region17
  $region16: #{multi_head_attention.7} parent=0 // pred_region
    %18 = vst [vmem:[#allocation2] sm:$0xff] 0.0
    %19 = vst [vmem:[#allocation2 + $0x8] sm:$0xff] 0.0
    %20 = vst [vmem:[#allocation2 + $0x10] sm:$0xff] 0.0
    %21 = vst [vmem:[#allocation2 + $0x18] sm:$0xff] 0.0
  $region17: #{multi_head_attention.7} parent=0 // pred_fallthru
    _
  %v22 = vld [vmem:[#allocation2] sm:$0xff]
  %v23 = vld [vmem:[#allocation2 + $0x8] sm:$0xff]
  %v24 = vld [vmem:[#allocation2 + $0x10] sm:$0xff]
  %v25 = vld [vmem:[#allocation2 + $0x18] sm:$0xff]
  %v26 = vld [vmem:[%s0] sm:$0xff]
  %v27 = vld [vmem:[%s0 + $0x8] sm:$0xff]
  %v28 = vld [vmem:[%s0 + $0x10] sm:$0xff]
  %v29 = vld [vmem:[%s0 + $0x18] sm:$0xff]
  %v30 = vld [vmem:[%s1] sm:$0xff]
  %v31 = vld [vmem:[%s1 + $0x8] sm:$0xff]
  %v32 = vld [vmem:[%s1 + $0x10] sm:$0xff]
  %v33 = vld [vmem:[%s1 + $0x18] sm:$0xff]
  %v34 = vld [vmem:[%s1 + $0x20] sm:$0xff]
  %v35 = vld [vmem:[%s1 + $0x28] sm:$0xff]
  %v36 = vld [vmem:[%s1 + $0x30] sm:$0xff]
  %v37 = vld [vmem:[%s1 + $0x38] sm:$0xff]
  %v38 = vld [vmem:[%s1 + $0x40] sm:$0xff]
  %v39 = vld [vmem:[%s1 + $0x48] sm:$0xff]
  %v40 = vld [vmem:[%s1 + $0x50] sm:$0xff]
  %v41 = vld [vmem:[%s1 + $0x58] sm:$0xff]
  %v42 = vld [vmem:[%s1 + $0x60] sm:$0xff]
  %v43 = vld [vmem:[%s1 + $0x68] sm:$0xff]
  %v44 = vld [vmem:[%s1 + $0x70] sm:$0xff]
  %v45 = vld [vmem:[%s1 + $0x78] sm:$0xff]
  %46 = vmatprep.subr.mxu0 0.0
  %47 = vmatpush1.msra.mxu0 %v30
  %48 = vmatprep.subr.mxu0 0.0
  %49 = vmatpush1.msra.mxu0 %v31
  %50 = vmatprep.subr.mxu0 0.0
  %51 = vmatpush1.msra.mxu0 %v32
  %52 = vmatprep.subr.mxu0 0.0
  %53 = vmatpush1.msra.mxu0 %v33
  %54 = vmatprep.subr.mxu0 0.0
  %55 = vmatpush1.msra.mxu0 %v34
  %56 = vmatprep.subr.mxu0 0.0
  %57 = vmatpush1.msra.mxu0 %v35
  %58 = vmatprep.subr.mxu0 0.0
  %59 = vmatpush1.msra.mxu0 %v36
  %60 = vmatprep.subr.mxu0 0.0
  %61 = vmatpush1.msra.mxu0 %v37
  %62 = vmatprep.subr.mxu0 0.0
  %63 = vmatpush1.msra.mxu0 %v38
  %64 = vmatprep.subr.mxu0 0.0
  %65 = vmatpush1.msra.mxu0 %v39
  %66 = vmatprep.subr.mxu0 0.0
  %67 = vmatpush1.msra.mxu0 %v40
  %68 = vmatprep.subr.mxu0 0.0
  %69 = vmatpush1.msra.mxu0 %v41
  %70 = vmatprep.subr.mxu0 0.0
  %71 = vmatpush1.msra.mxu0 %v42
  %72 = vmatprep.subr.mxu0 0.0
  %73 = vmatpush1.msra.mxu0 %v43
  %74 = vmatprep.subr.mxu0 0.0
  %75 = vmatpush1.msra.mxu0 %v44
  %76 = vmatprep.subr.mxu0 0.0
  %77 = vmatpush1.msra.mxu0 %v45
  %78 = vmatprep.subr.mxu0 0.0
  %79 = vmatpush1.msra.mxu0 0.0
  %80 = vmatprep.subr.mxu0 0.0
  %81 = vmatpush1.msra.mxu0 0.0
  %82 = vmatprep.subr.mxu0 0.0
  %83 = vmatpush1.msra.mxu0 0.0
  %84 = vmatprep.subr.mxu0 0.0
  %85 = vmatpush1.msra.mxu0 0.0
  %86 = vmatprep.subr.mxu0 0.0
  %87 = vmatpush1.msra.mxu0 0.0
  %88 = vmatprep.subr.mxu0 0.0
  %89 = vmatpush1.msra.mxu0 0.0
  %90 = vmatprep.subr.mxu0 0.0
  %91 = vmatpush1.msra.mxu0 0.0
  %92 = vmatprep.subr.mxu0 0.0
  %93 = vmatpush1.msra.mxu0 0.0
  %94 = vmatprep.subr.mxu0 0.0
  %95 = vmatpush1.msra.mxu0 0.0
  %96 = vmatprep.subr.mxu0 0.0
  %97 = vmatpush1.msra.mxu0 0.0
  %98 = vmatprep.subr.mxu0 0.0
  %99 = vmatpush1.msra.mxu0 0.0
  %100 = vmatprep.subr.mxu0 0.0
  %101 = vmatpush1.msra.mxu0 0.0
  %102 = vmatprep.subr.mxu0 0.0
  %103 = vmatpush1.msra.mxu0 0.0
  %104 = vmatprep.subr.mxu0 0.0
  %105 = vmatpush1.msra.mxu0 0.0
  %106 = vmatprep.subr.mxu0 0.0
  %107 = vmatpush1.msra.mxu0 0.0
  %108 = vmatprep.subr.mxu0 0.0
  %109 = vmatpush1.msra.mxu0 0.0
  %110 = vmatprep.mubr.f32.mxu0 0.0
  %111 = vmatmul.mubr.f32.gmra.mrb[0].mxu0 %v26
  %v112 = vpop.f32.mrb[0].mxu0
  %v113 = vadd.f32 0.0, %v112
  %v114 = vpop.f32.mrb[0].mxu0
  %115 = vmatprep.mubr.f32.mxu0 0.0
  %116 = vmatmul.mubr.f32.gmra.mrb[0].mxu0 %v27
  %v117 = vpop.f32.mrb[0].mxu0
  %v118 = vadd.f32 0.0, %v117
  %v119 = vpop.f32.mrb[0].mxu0
  %120 = vmatprep.mubr.f32.mxu0 0.0
  %121 = vmatmul.mubr.f32.gmra.mrb[0].mxu0 %v28
  %v122 = vpop.f32.mrb[0].mxu0
  %v123 = vadd.f32 0.0, %v122
  %v124 = vpop.f32.mrb[0].mxu0
  %125 = vmatprep.mubr.f32.mxu0 0.0
  %126 = vmatmul.mubr.f32.gmra.mrb[0].mxu0 %v29
  %v127 = vpop.f32.mrb[0].mxu0
  %v128 = vadd.f32 0.0, %v127
  %v129 = vpop.f32.mrb[0].mxu0
  %130 = vdwg.mxu0
  %v131 = vadd.f32 %v22, %v113
  %v132 = vadd.f32 %v23, %v118
  %v133 = vadd.f32 %v24, %v123
  %v134 = vadd.f32 %v25, %v128
  %135 = vst [vmem:[#allocation2] sm:$0xff] %v131
  %136 = vst [vmem:[#allocation2 + $0x8] sm:$0xff] %v132
  %137 = vst [vmem:[#allocation2 + $0x10] sm:$0xff] %v133
  %138 = vst [vmem:[#allocation2 + $0x18] sm:$0xff] %v134
  // Predicated region
  $region18: #{multi_head_attention.7} parent=0 // pred_check
    %p139 = pneg %p14
  $region19: #{multi_head_attention.7} parent=0 // pred_check_branch
    %141 = sbr.rel (%p139) target = $region21
  $region20: #{multi_head_attention.7} parent=0 // pred_region
    %v142 = vld [vmem:[#allocation2] sm:$0xff]
    %v143 = vld [vmem:[#allocation2 + $0x8] sm:$0xff]
    %v144 = vld [vmem:[#allocation2 + $0x10] sm:$0xff]
    %v145 = vld [vmem:[#allocation2 + $0x18] sm:$0xff]
    %v146 = vld [vmem:[%s2] sm:$0x1]
    %v148 = vlaneseq
    %v149 = vshrl.u32 %v148, 7
    %v150 = vsub.s32 0, %v149
    %v151 = vrot.slane %v146, %v150
    %v153 = vadd.f32 %v142, %v151
    %v154 = vadd.f32 %v143, %v151
    %v155 = vadd.f32 %v144, %v151
    %v156 = vadd.f32 %v145, %v151
    %157 = vst [vmem:[%s3] sm:$0xff] %v153
    %158 = vst [vmem:[%s3 + $0x8] sm:$0xff] %v154
    %159 = vst [vmem:[%s3 + $0x10] sm:$0xff] %v155
    %160 = vst [vmem:[%s3 + $0x18] sm:$0xff] %v156
  $region21: #{multi_head_attention.7} parent=0 // pred_fallthru
    _
  // Predicated region
  $region22: #{multi_head_attention.7} parent=0 // pred_check
    _
  $region23: #{multi_head_attention.7} parent=0 // pred_check_branch
    %162 = sbr.rel (0) target = $region25
  $region24: #{multi_head_attention.7} parent=0 // pred_region
    _
  $region25: #{multi_head_attention.7} parent=0 // pred_fallthru
    _
  // Predicated region
  $region26: #{multi_head_attention.7} parent=0 // pred_check
    _
  $region27: #{multi_head_attention.7} parent=0 // pred_check_branch
    %164 = sbr.rel (0) target = $region29
  $region28: #{multi_head_attention.7} parent=0 // pred_region
    _
  $region29: #{multi_head_attention.7} parent=0 // pred_fallthru
    _

// kernel: multi_head_attention.6
$region0: #{multi_head_attention.6}
  #allocation0 [shape = 'u32[]', space=smem, size = 0x4, offset = 0x4, fixed_abs, tag = 'smem constant byte address 0x4 - core index']
  #allocation1 [shape = 'u32[144,128]{1,0:T(1,128)}', space=vmem, size = 0x12000, scoped, tag = 'internal scratch']
  %s0 = inlined_call_operand.vmem [shape: f32[2,4,15,8], index: 0, kind: input, shape index: {}]
  %s1 = inlined_call_operand.vmem [shape: f32[2,4,16,8], index: 1, kind: input, shape index: {}]
  %s2 = inlined_call_operand.vmem [shape: f32[2,4,16,8], index: 2, kind: input, shape index: {}]
  %s3 = inlined_call_operand.vmem [shape: f32[2,4,15,8], index: 3, kind: output, shape index: {}]
  %s4 = sld [smem:[#allocation0]]
  $region45: #{multi_head_attention.6} parent=0
    _
  %s6 = ssub.s32 1, %s4
  %s7 = scalar_select 0, %s6, %s4
  loop: start=0, step=1, limit=4
  $region2: #{multi_head_attention.6} parent=0 // loop_pre_header
    _
  $region3: #{multi_head_attention.6} parent=0 // loop_header
    %s9 = sphi 0, %s13
    %p10 = scmp.ge.s32.totalorder %s9, 4
    %s19 = sphi 0, %s21
    %s22 = sphi 0, %s19
    %s23 = sphi 0, %s22
    %s39 = sphi 0, %s23
    %s45 = sphi 0, %s47
    %s48 = sphi 0, %s45
    %s49 = sphi 0, %s48
    %s65 = sphi 0, %s49
    %s71 = sphi 0, %s73
    %s74 = sphi 0, %s71
    %s75 = sphi 0, %s74
    %s91 = sphi 0, %s75
    %s97 = sphi 0, %s99
    %s100 = sphi 0, %s97
    %s101 = sphi 0, %s100
    %s117 = sphi 0, %s101
  $region4: #{multi_head_attention.6} parent=0 // loop_header_branch
    %12 = sbr.rel (%p10) target = $region8
  $region5: #{multi_head_attention.6} parent=0 // loop_body
    %s14 = ssub.s32 %s9, 1
    %s15 = ssub.s32 %s9, 2
    %s16 = sadd.s32 %s9, 1
    %s17 = ssub.s32 %s9, %s16
    %p18 = scmp.eq.s32.totalorder %s17, 0
    %s20 = sadd.s32 %s19, 1
    %s21 = scalar_select %p18, %s19, %s20
    %p24 = pneg %p18
    %p25 = scmp.eq.s32.totalorder %s9, 1
    %p26 = por %p24, %p25
    %p27 = scmp.ne.s32.totalorder %s19, %s22
    %p28 = scmp.eq.s32.totalorder %s9, 0
    %p29 = por %p27, %p28
    %p30 = scmp.ne.s32.totalorder %s19, %s22
    %p31 = scmp.eq.s32.totalorder %s14, 1
    %p32 = por %p30, %p31
    %p33 = scmp.ne.s32.totalorder %s22, %s23
    %p34 = scmp.eq.s32.totalorder %s14, 0
    %p35 = por %p33, %p34
    %p36 = scmp.ne.s32.totalorder %s22, %s23
    %p37 = scmp.eq.s32.totalorder %s15, 1
    %p38 = por %p36, %p37
    %p40 = scmp.ne.s32.totalorder %s23, %s39
    %p41 = scmp.eq.s32.totalorder %s15, 0
    %p42 = por %p40, %p41
    %s43 = ssub.s32 %s9, %s16
    %p44 = scmp.eq.s32.totalorder %s43, 0
    %s46 = sadd.s32 %s45, 1
    %s47 = scalar_select %p44, %s45, %s46
    %p50 = pneg %p44
    %p51 = scmp.eq.s32.totalorder %s9, 1
    %p52 = por %p50, %p51
    %p53 = scmp.ne.s32.totalorder %s45, %s48
    %p54 = scmp.eq.s32.totalorder %s9, 0
    %p55 = por %p53, %p54
    %p56 = scmp.ne.s32.totalorder %s45, %s48
    %p57 = scmp.eq.s32.totalorder %s14, 1
    %p58 = por %p56, %p57
    %p59 = scmp.ne.s32.totalorder %s48, %s49
    %p60 = scmp.eq.s32.totalorder %s14, 0
    %p61 = por %p59, %p60
    %p62 = scmp.ne.s32.totalorder %s48, %s49
    %p63 = scmp.eq.s32.totalorder %s15, 1
    %p64 = por %p62, %p63
    %p66 = scmp.ne.s32.totalorder %s49, %s65
    %p67 = scmp.eq.s32.totalorder %s15, 0
    %p68 = por %p66, %p67
    %s69 = ssub.s32 %s9, %s16
    %p70 = scmp.eq.s32.totalorder %s69, 0
    %s72 = sadd.s32 %s71, 1
    %s73 = scalar_select %p70, %s71, %s72
    %p76 = pneg %p70
    %p77 = scmp.eq.s32.totalorder %s9, 1
    %p78 = por %p76, %p77
    %p79 = scmp.ne.s32.totalorder %s71, %s74
    %p80 = scmp.eq.s32.totalorder %s9, 0
    %p81 = por %p79, %p80
    %p82 = scmp.ne.s32.totalorder %s71, %s74
    %p83 = scmp.eq.s32.totalorder %s14, 1
    %p84 = por %p82, %p83
    %p85 = scmp.ne.s32.totalorder %s74, %s75
    %p86 = scmp.eq.s32.totalorder %s14, 0
    %p87 = por %p85, %p86
    %p88 = scmp.ne.s32.totalorder %s74, %s75
    %p89 = scmp.eq.s32.totalorder %s15, 1
    %p90 = por %p88, %p89
    %p92 = scmp.ne.s32.totalorder %s75, %s91
    %p93 = scmp.eq.s32.totalorder %s15, 0
    %p94 = por %p92, %p93
    %s95 = ssub.s32 %s9, %s16
    %p96 = scmp.eq.s32.totalorder %s95, 0
    %s98 = sadd.s32 %s97, 1
    %s99 = scalar_select %p96, %s97, %s98
    %p102 = pneg %p96
    %p103 = scmp.eq.s32.totalorder %s9, 1
    %p104 = por %p102, %p103
    %p105 = scmp.ne.s32.totalorder %s97, %s100
    %p106 = scmp.eq.s32.totalorder %s9, 0
    %p107 = por %p105, %p106
    %p108 = scmp.ne.s32.totalorder %s97, %s100
    %p109 = scmp.eq.s32.totalorder %s14, 1
    %p110 = por %p108, %p109
    %p111 = scmp.ne.s32.totalorder %s100, %s101
    %p112 = scmp.eq.s32.totalorder %s14, 0
    %p113 = por %p111, %p112
    %p114 = scmp.ne.s32.totalorder %s100, %s101
    %p115 = scmp.eq.s32.totalorder %s15, 1
    %p116 = por %p114, %p115
    %p118 = scmp.ne.s32.totalorder %s101, %s117
    %p119 = scmp.eq.s32.totalorder %s15, 0
    %p120 = por %p118, %p119
    %p121 = scmp.le.s32.totalorder 1, %s9
    %p122 = scmp.lt.s32.totalorder %s9, 3
    %p123 = pnand %p121, %p122
    %p124 = pneg %p123
    // Predicated region
    $region9: #{multi_head_attention.6} parent=5 // pred_check
      _
    $region10: #{multi_head_attention.6} parent=5 // pred_check_branch
      %126 = sbr.rel (%p123) target = $region12
    $region11: #{multi_head_attention.6} parent=5 // pred_region
      %s127 = ssub.s32 %s9, 1
    $region12: #{multi_head_attention.6} parent=5 // pred_fallthru
      _
    %p128 = scmp.lt.s32.totalorder %s9, 2
    // Predicated region
    $region13: #{multi_head_attention.6} parent=5 // pred_check
      %p129 = pneg %p128
    $region14: #{multi_head_attention.6} parent=5 // pred_check_branch
      %131 = sbr.rel (%p129) target = $region16
    $region15: #{multi_head_attention.6} parent=5 // pred_region
      // Predicated region
      $region17: #{multi_head_attention.6} parent=15 // pred_check
        %p132 = pneg %p29
      $region18: #{multi_head_attention.6} parent=15 // pred_check_branch
        %134 = sbr.rel (%p132) target = $region20
      $region19: #{multi_head_attention.6} parent=15 // pred_region
        %p135 = scmp.lt.s32.totalorder %s9, 1
        %s136 = scalar_select %p135, %s9, 1
        %s137 = smul.addr %s136, 8
        %s138 = smul.addr %s137, 8
        %s139 = scalar_lea.vmem %s0, %s138
      $region20: #{multi_head_attention.6} parent=15 // pred_fallthru
        _
      // Predicated region
      $region21: #{multi_head_attention.6} parent=15 // pred_check
        %p140 = pneg %p55
      $region22: #{multi_head_attention.6} parent=15 // pred_check_branch
        %142 = sbr.rel (%p140) target = $region24
      $region23: #{multi_head_attention.6} parent=15 // pred_region
        %p143 = scmp.lt.s32.totalorder %s9, 1
        %s144 = scalar_select %p143, %s9, 1
        %s145 = smul.addr %s144, 8
        %s146 = smul.addr %s145, 8
        %s147 = scalar_lea.vmem %s1, %s146
      $region24: #{multi_head_attention.6} parent=15 // pred_fallthru
        _
      // Predicated region
      $region25: #{multi_head_attention.6} parent=15 // pred_check
        %p148 = pneg %p81
      $region26: #{multi_head_attention.6} parent=15 // pred_check_branch
        %150 = sbr.rel (%p148) target = $region28
      $region27: #{multi_head_attention.6} parent=15 // pred_region
        %p151 = scmp.lt.s32.totalorder %s9, 1
        %s152 = scalar_select %p151, %s9, 1
        %s153 = smul.addr %s152, 8
        %s154 = smul.addr %s153, 8
        %s155 = scalar_lea.vmem %s2, %s154
      $region28: #{multi_head_attention.6} parent=15 // pred_fallthru
        _
    $region16: #{multi_head_attention.6} parent=5 // pred_fallthru
      _
    %p156 = scmp.le.s32.totalorder 1, %s9
    %p157 = scmp.lt.s32.totalorder %s9, 3
    %p158 = pnand %p156, %p157
    %p159 = pneg %p158
    // Predicated region
    $region29: #{multi_head_attention.6} parent=5 // pred_check
      _
    $region30: #{multi_head_attention.6} parent=5 // pred_check_branch
      %161 = sbr.rel (%p158) target = $region32
    $region31: #{multi_head_attention.6} parent=5 // pred_region
      %s162 = ssub.s32 %s9, 1
      %p163 = scmp.lt.s32.totalorder %s14, 1
      %s164 = scalar_select %p163, %s14, 1
      %s165 = smul.addr %s164, 8
      %s166 = smul.addr %s165, 8
      %s167 = scalar_lea.vmem %s0, %s166
      %p168 = pneg %p35
      %p169 = pneg %p32
      %p170 = scmp.lt.s32.totalorder %s14, 1
      %s171 = scalar_select %p170, %s14, 1
      %s172 = smul.addr %s171, 8
      %s173 = smul.addr %s172, 8
      %s174 = scalar_lea.vmem %s1, %s173
      %p175 = pneg %p61
      %p176 = pneg %p58
      %p177 = scmp.lt.s32.totalorder %s14, 1
      %s178 = scalar_select %p177, %s14, 1
      %s179 = smul.addr %s178, 8
      %s180 = smul.addr %s179, 8
      %s181 = scalar_lea.vmem %s2, %s180
      %p182 = pneg %p87
      %p183 = pneg %p84
      %p184 = pneg %p113
      %p185 = pneg %p110
      %p186 = scmp.lt.s32.totalorder %s14, 1
      %s187 = scalar_select %p186, %s14, 1
      %s188 = smul.addr %s187, 8
      %s189 = smul.addr %s188, 8
      %s190 = scalar_lea.vmem %s3, %s189
      %p191 = scmp.lt.s32.totalorder %s14, 1
      %s192 = scalar_select %p191, %s14, 1
      %s193 = smul.addr %s192, 8
      %s194 = smul.addr %s193, 8
      %s195 = scalar_lea.vmem %s0, %s194
      %p196 = scmp.lt.s32.totalorder %s14, 1
      %s197 = scalar_select %p196, %s14, 1
      %s198 = smul.addr %s197, 8
      %s199 = smul.addr %s198, 8
      %s200 = scalar_lea.vmem %s1, %s199
      %p201 = scmp.lt.s32.totalorder %s14, 1
      %s202 = scalar_select %p201, %s14, 1
      %s203 = smul.addr %s202, 8
      %s204 = smul.addr %s203, 8
      %s205 = scalar_lea.vmem %s2, %s204
      %p206 = scmp.lt.s32.totalorder %s14, 1
      %s207 = scalar_select %p206, %s14, 1
      %s208 = smul.addr %s207, 8
      %s209 = smul.addr %s208, 8
      %s210 = scalar_lea.vmem %s3, %s209
      %v211 = vld [vmem:[%s195] sm:$0xff]
      %v212 = vld [vmem:[%s195 + $0x8] sm:$0x7f]
      %v213 = vld [vmem:[%s195 + $0x10] sm:$0xff]
      %v214 = vld [vmem:[%s195 + $0x18] sm:$0x7f]
      %v215 = vld [vmem:[%s195 + $0x20] sm:$0xff]
      %v216 = vld [vmem:[%s195 + $0x28] sm:$0x7f]
      %v217 = vld [vmem:[%s195 + $0x30] sm:$0xff]
      %v218 = vld [vmem:[%s195 + $0x38] sm:$0x7f]
      %v219 = vld [vmem:[%s200] sm:$0xff]
      %v220 = vld [vmem:[%s200 + $0x8] sm:$0xff]
      %v221 = vld [vmem:[%s200 + $0x10] sm:$0xff]
      %v222 = vld [vmem:[%s200 + $0x18] sm:$0xff]
      %v223 = vld [vmem:[%s200 + $0x20] sm:$0xff]
      %v224 = vld [vmem:[%s200 + $0x28] sm:$0xff]
      %v225 = vld [vmem:[%s200 + $0x30] sm:$0xff]
      %v226 = vld [vmem:[%s200 + $0x38] sm:$0xff]
      %v227 = vld [vmem:[%s205] sm:$0xff]
      %v228 = vld [vmem:[%s205 + $0x8] sm:$0xff]
      %v229 = vld [vmem:[%s205 + $0x10] sm:$0xff]
      %v230 = vld [vmem:[%s205 + $0x18] sm:$0xff]
      %v231 = vld [vmem:[%s205 + $0x20] sm:$0xff]
      %v232 = vld [vmem:[%s205 + $0x28] sm:$0xff]
      %v233 = vld [vmem:[%s205 + $0x30] sm:$0xff]
      %v234 = vld [vmem:[%s205 + $0x38] sm:$0xff]
      %vm235 = vcmask 64512
      %v237 = vsel %vm235, %v211, 0
      %v240 = vsel %vm235, %v212, 0
      %v243 = vsel %vm235, %v219, 0
      %v246 = vsel %vm235, %v220, 0
      %248 = vmatprep.subr.mxu0 0.0
      %249 = vmatpush1.xpose.msra.mxu0 %v243
      %250 = vmatprep.subr.mxu0 0.0
      %251 = vmatpush1.xpose.msra.mxu0 %v246
      %252 = vmatprep.subr.mxu0 0.0
      %253 = vmatpush1.xpose.msra.mxu0 0.0
      %254 = vmatprep.subr.mxu0 0.0
      %255 = vmatpush1.xpose.msra.mxu0 0.0
      %256 = vmatprep.subr.mxu0 0.0
      %257 = vmatpush1.xpose.msra.mxu0 0.0
      %258 = vmatprep.subr.mxu0 0.0
      %259 = vmatpush1.xpose.msra.mxu0 0.0
      %260 = vmatprep.subr.mxu0 0.0
      %261 = vmatpush1.xpose.msra.mxu0 0.0
      %262 = vmatprep.subr.mxu0 0.0
      %263 = vmatpush1.xpose.msra.mxu0 0.0
      %264 = vmatprep.subr.mxu0 0.0
      %265 = vmatpush1.xpose.msra.mxu0 0.0
      %266 = vmatprep.subr.mxu0 0.0
      %267 = vmatpush1.xpose.msra.mxu0 0.0
      %268 = vmatprep.subr.mxu0 0.0
      %269 = vmatpush1.xpose.msra.mxu0 0.0
      %270 = vmatprep.subr.mxu0 0.0
      %271 = vmatpush1.xpose.msra.mxu0 0.0
      %272 = vmatprep.subr.mxu0 0.0
      %273 = vmatpush1.xpose.msra.mxu0 0.0
      %274 = vmatprep.subr.mxu0 0.0
      %275 = vmatpush1.xpose.msra.mxu0 0.0
      %276 = vmatprep.subr.mxu0 0.0
      %277 = vmatpush1.xpose.msra.mxu0 0.0
      %278 = vmatprep.subr.mxu0 0.0
      %279 = vmatpush1.xpose.msra.mxu0 0.0
      %280 = vmatprep.subr.mxu0 0.0
      %281 = vmatpush1.xpose.msra.mxu0 0.0
      %282 = vmatprep.subr.mxu0 0.0
      %283 = vmatpush1.xpose.msra.mxu0 0.0
      %284 = vmatprep.subr.mxu0 0.0
      %285 = vmatpush1.xpose.msra.mxu0 0.0
      %286 = vmatprep.subr.mxu0 0.0
      %287 = vmatpush1.xpose.msra.mxu0 0.0
      %288 = vmatprep.subr.mxu0 0.0
      %289 = vmatpush1.xpose.msra.mxu0 0.0
      %290 = vmatprep.subr.mxu0 0.0
      %291 = vmatpush1.xpose.msra.mxu0 0.0
      %292 = vmatprep.subr.mxu0 0.0
      %293 = vmatpush1.xpose.msra.mxu0 0.0
      %294 = vmatprep.subr.mxu0 0.0
      %295 = vmatpush1.xpose.msra.mxu0 0.0
      %296 = vmatprep.subr.mxu0 0.0
      %297 = vmatpush1.xpose.msra.mxu0 0.0
      %298 = vmatprep.subr.mxu0 0.0
      %299 = vmatpush1.xpose.msra.mxu0 0.0
      %300 = vmatprep.subr.mxu0 0.0
      %301 = vmatpush1.xpose.msra.mxu0 0.0
      %302 = vmatprep.subr.mxu0 0.0
      %303 = vmatpush1.xpose.msra.mxu0 0.0
      %304 = vmatprep.subr.mxu0 0.0
      %305 = vmatpush1.xpose.msra.mxu0 0.0
      %306 = vmatprep.subr.mxu0 0.0
      %307 = vmatpush1.xpose.msra.mxu0 0.0
      %308 = vmatprep.subr.mxu0 0.0
      %309 = vmatpush1.xpose.msra.mxu0 0.0
      %310 = vmatprep.subr.mxu0 0.0
      %311 = vmatpush1.xpose.msra.mxu0 0.0
      %312 = vmatprep.mubr.f32.mxu0 0.0
      %313 = vmatmul.mubr.f32.gmra.mrb[0].mxu0 %v237
      %v314 = vpop.f32.mrb[0].mxu0
      %v315 = vadd.f32 0.0, %v314
      %v316 = vpop.f32.mrb[0].mxu0
      %317 = vmatprep.mubr.f32.mxu0 0.0
      %318 = vmatmul.mubr.f32.gmra.mrb[0].mxu0 %v240
      %v319 = vpop.f32.mrb[0].mxu0
      %v320 = vadd.f32 0.0, %v319
      %v321 = vpop.f32.mrb[0].mxu0
      %322 = vdwg.mxu0
      %v324 = vsel %vm235, %v213, 0
      %v327 = vsel %vm235, %v214, 0
      %v330 = vsel %vm235, %v221, 0
      %v333 = vsel %vm235, %v222, 0
      %335 = vmatprep.subr.mxu0 0.0
      %336 = vmatpush1.xpose.msra.mxu0 %v330
      %337 = vmatprep.subr.mxu0 0.0
      %338 = vmatpush1.xpose.msra.mxu0 %v333
      %339 = vmatprep.subr.mxu0 0.0
      %340 = vmatpush1.xpose.msra.mxu0 0.0
      %341 = vmatprep.subr.mxu0 0.0
      %342 = vmatpush1.xpose.msra.mxu0 0.0
      %343 = vmatprep.subr.mxu0 0.0
      %344 = vmatpush1.xpose.msra.mxu0 0.0
      %345 = vmatprep.subr.mxu0 0.0
      %346 = vmatpush1.xpose.msra.mxu0 0.0
      %347 = vmatprep.subr.mxu0 0.0
      %348 = vmatpush1.xpose.msra.mxu0 0.0
      %349 = vmatprep.subr.mxu0 0.0
      %350 = vmatpush1.xpose.msra.mxu0 0.0
      %351 = vmatprep.subr.mxu0 0.0
      %352 = vmatpush1.xpose.msra.mxu0 0.0
      %353 = vmatprep.subr.mxu0 0.0
      %354 = vmatpush1.xpose.msra.mxu0 0.0
      %355 = vmatprep.subr.mxu0 0.0
      %356 = vmatpush1.xpose.msra.mxu0 0.0
      %357 = vmatprep.subr.mxu0 0.0
      %358 = vmatpush1.xpose.msra.mxu0 0.0
      %359 = vmatprep.subr.mxu0 0.0
      %360 = vmatpush1.xpose.msra.mxu0 0.0
      %361 = vmatprep.subr.mxu0 0.0
      %362 = vmatpush1.xpose.msra.mxu0 0.0
      %363 = vmatprep.subr.mxu0 0.0
      %364 = vmatpush1.xpose.msra.mxu0 0.0
      %365 = vmatprep.subr.mxu0 0.0
      %366 = vmatpush1.xpose.msra.mxu0 0.0
      %367 = vmatprep.subr.mxu0 0.0
      %368 = vmatpush1.xpose.msra.mxu0 0.0
      %369 = vmatprep.subr.mxu0 0.0
      %370 = vmatpush1.xpose.msra.mxu0 0.0
      %371 = vmatprep.subr.mxu0 0.0
      %372 = vmatpush1.xpose.msra.mxu0 0.0
      %373 = vmatprep.subr.mxu0 0.0
      %374 = vmatpush1.xpose.msra.mxu0 0.0
      %375 = vmatprep.subr.mxu0 0.0
      %376 = vmatpush1.xpose.msra.mxu0 0.0
      %377 = vmatprep.subr.mxu0 0.0
      %378 = vmatpush1.xpose.msra.mxu0 0.0
      %379 = vmatprep.subr.mxu0 0.0
      %380 = vmatpush1.xpose.msra.mxu0 0.0
      %381 = vmatprep.subr.mxu0 0.0
      %382 = vmatpush1.xpose.msra.mxu0 0.0
      %383 = vmatprep.subr.mxu0 0.0
      %384 = vmatpush1.xpose.msra.mxu0 0.0
      %385 = vmatprep.subr.mxu0 0.0
      %386 = vmatpush1.xpose.msra.mxu0 0.0
      %387 = vmatprep.subr.mxu0 0.0
      %388 = vmatpush1.xpose.msra.mxu0 0.0
      %389 = vmatprep.subr.mxu0 0.0
      %390 = vmatpush1.xpose.msra.mxu0 0.0
      %391 = vmatprep.subr.mxu0 0.0
      %392 = vmatpush1.xpose.msra.mxu0 0.0
      %393 = vmatprep.subr.mxu0 0.0
      %394 = vmatpush1.xpose.msra.mxu0 0.0
      %395 = vmatprep.subr.mxu0 0.0
      %396 = vmatpush1.xpose.msra.mxu0 0.0
      %397 = vmatprep.subr.mxu0 0.0
      %398 = vmatpush1.xpose.msra.mxu0 0.0
      %399 = vmatprep.mubr.f32.mxu0 0.0
      %400 = vmatmul.mubr.f32.gmra.mrb[0].mxu0 %v324
      %v401 = vpop.f32.mrb[0].mxu0
      %v402 = vadd.f32 0.0, %v401
      %v403 = vpop.f32.mrb[0].mxu0
      %404 = vmatprep.mubr.f32.mxu0 0.0
      %405 = vmatmul.mubr.f32.gmra.mrb[0].mxu0 %v327
      %v406 = vpop.f32.mrb[0].mxu0
      %v407 = vadd.f32 0.0, %v406
      %v408 = vpop.f32.mrb[0].mxu0
      %409 = vdwg.mxu0
      %v411 = vsel %vm235, %v215, 0
      %v414 = vsel %vm235, %v216, 0
      %v417 = vsel %vm235, %v223, 0
      %v420 = vsel %vm235, %v224, 0
      %422 = vmatprep.subr.mxu0 0.0
      %423 = vmatpush1.xpose.msra.mxu0 %v417
      %424 = vmatprep.subr.mxu0 0.0
      %425 = vmatpush1.xpose.msra.mxu0 %v420
      %426 = vmatprep.subr.mxu0 0.0
      %427 = vmatpush1.xpose.msra.mxu0 0.0
      %428 = vmatprep.subr.mxu0 0.0
      %429 = vmatpush1.xpose.msra.mxu0 0.0
      %430 = vmatprep.subr.mxu0 0.0
      %431 = vmatpush1.xpose.msra.mxu0 0.0
      %432 = vmatprep.subr.mxu0 0.0
      %433 = vmatpush1.xpose.msra.mxu0 0.0
      %434 = vmatprep.subr.mxu0 0.0
      %435 = vmatpush1.xpose.msra.mxu0 0.0
      %436 = vmatprep.subr.mxu0 0.0
      %437 = vmatpush1.xpose.msra.mxu0 0.0
      %438 = vmatprep.subr.mxu0 0.0
      %439 = vmatpush1.xpose.msra.mxu0 0.0
      %440 = vmatprep.subr.mxu0 0.0
      %441 = vmatpush1.xpose.msra.mxu0 0.0
      %442 = vmatprep.subr.mxu0 0.0
      %443 = vmatpush1.xpose.msra.mxu0 0.0
      %444 = vmatprep.subr.mxu0 0.0
      %445 = vmatpush1.xpose.msra.mxu0 0.0
      %446 = vmatprep.subr.mxu0 0.0
      %447 = vmatpush1.xpose.msra.mxu0 0.0
      %448 = vmatprep.subr.mxu0 0.0
      %449 = vmatpush1.xpose.msra.mxu0 0.0
      %450 = vmatprep.subr.mxu0 0.0
      %451 = vmatpush1.xpose.msra.mxu0 0.0
      %452 = vmatprep.subr.mxu0 0.0
      %453 = vmatpush1.xpose.msra.mxu0 0.0
      %454 = vmatprep.subr.mxu0 0.0
      %455 = vmatpush1.xpose.msra.mxu0 0.0
      %456 = vmatprep.subr.mxu0 0.0
      %457 = vmatpush1.xpose.msra.mxu0 0.0
      %458 = vmatprep.subr.mxu0 0.0
      %459 = vmatpush1.xpose.msra.mxu0 0.0
      %460 = vmatprep.subr.mxu0 0.0
      %461 = vmatpush1.xpose.msra.mxu0 0.0
      %462 = vmatprep.subr.mxu0 0.0
      %463 = vmatpush1.xpose.msra.mxu0 0.0
      %464 = vmatprep.subr.mxu0 0.0
      %465 = vmatpush1.xpose.msra.mxu0 0.0
      %466 = vmatprep.subr.mxu0 0.0
      %467 = vmatpush1.xpose.msra.mxu0 0.0
      %468 = vmatprep.subr.mxu0 0.0
      %469 = vmatpush1.xpose.msra.mxu0 0.0
      %470 = vmatprep.subr.mxu0 0.0
      %471 = vmatpush1.xpose.msra.mxu0 0.0
      %472 = vmatprep.subr.mxu0 0.0
      %473 = vmatpush1.xpose.msra.mxu0 0.0
      %474 = vmatprep.subr.mxu0 0.0
      %475 = vmatpush1.xpose.msra.mxu0 0.0
      %476 = vmatprep.subr.mxu0 0.0
      %477 = vmatpush1.xpose.msra.mxu0 0.0
      %478 = vmatprep.subr.mxu0 0.0
      %479 = vmatpush1.xpose.msra.mxu0 0.0
      %480 = vmatprep.subr.mxu0 0.0
      %481 = vmatpush1.xpose.msra.mxu0 0.0
      %482 = vmatprep.subr.mxu0 0.0
      %483 = vmatpush1.xpose.msra.mxu0 0.0
      %484 = vmatprep.subr.mxu0 0.0
      %485 = vmatpush1.xpose.msra.mxu0 0.0
      %486 = vmatprep.mubr.f32.mxu0 0.0
      %487 = vmatmul.mubr.f32.gmra.mrb[0].mxu0 %v411
      %v488 = vpop.f32.mrb[0].mxu0
      %v489 = vadd.f32 0.0, %v488
      %v490 = vpop.f32.mrb[0].mxu0
      %491 = vmatprep.mubr.f32.mxu0 0.0
      %492 = vmatmul.mubr.f32.gmra.mrb[0].mxu0 %v414
      %v493 = vpop.f32.mrb[0].mxu0
      %v494 = vadd.f32 0.0, %v493
      %v495 = vpop.f32.mrb[0].mxu0
      %496 = vdwg.mxu0
      %v498 = vsel %vm235, %v217, 0
      %v501 = vsel %vm235, %v218, 0
      %v504 = vsel %vm235, %v225, 0
      %v507 = vsel %vm235, %v226, 0
      %509 = vmatprep.subr.mxu0 0.0
      %510 = vmatpush1.xpose.msra.mxu0 %v504
      %511 = vmatprep.subr.mxu0 0.0
      %512 = vmatpush1.xpose.msra.mxu0 %v507
      %513 = vmatprep.subr.mxu0 0.0
      %514 = vmatpush1.xpose.msra.mxu0 0.0
      %515 = vmatprep.subr.mxu0 0.0
      %516 = vmatpush1.xpose.msra.mxu0 0.0
      %517 = vmatprep.subr.mxu0 0.0
      %518 = vmatpush1.xpose.msra.mxu0 0.0
      %519 = vmatprep.subr.mxu0 0.0
      %520 = vmatpush1.xpose.msra.mxu0 0.0
      %521 = vmatprep.subr.mxu0 0.0
      %522 = vmatpush1.xpose.msra.mxu0 0.0
      %523 = vmatprep.subr.mxu0 0.0
      %524 = vmatpush1.xpose.msra.mxu0 0.0
      %525 = vmatprep.subr.mxu0 0.0
      %526 = vmatpush1.xpose.msra.mxu0 0.0
      %527 = vmatprep.subr.mxu0 0.0
      %528 = vmatpush1.xpose.msra.mxu0 0.0
      %529 = vmatprep.subr.mxu0 0.0
      %530 = vmatpush1.xpose.msra.mxu0 0.0
      %531 = vmatprep.subr.mxu0 0.0
      %532 = vmatpush1.xpose.msra.mxu0 0.0
      %533 = vmatprep.subr.mxu0 0.0
      %534 = vmatpush1.xpose.msra.mxu0 0.0
      %535 = vmatprep.subr.mxu0 0.0
      %536 = vmatpush1.xpose.msra.mxu0 0.0
      %537 = vmatprep.subr.mxu0 0.0
      %538 = vmatpush1.xpose.msra.mxu0 0.0
      %539 = vmatprep.subr.mxu0 0.0
      %540 = vmatpush1.xpose.msra.mxu0 0.0
      %541 = vmatprep.subr.mxu0 0.0
      %542 = vmatpush1.xpose.msra.mxu0 0.0
      %543 = vmatprep.subr.mxu0 0.0
      %544 = vmatpush1.xpose.msra.mxu0 0.0
      %545 = vmatprep.subr.mxu0 0.0
      %546 = vmatpush1.xpose.msra.mxu0 0.0
      %547 = vmatprep.subr.mxu0 0.0
      %548 = vmatpush1.xpose.msra.mxu0 0.0
      %549 = vmatprep.subr.mxu0 0.0
      %550 = vmatpush1.xpose.msra.mxu0 0.0
      %551 = vmatprep.subr.mxu0 0.0
      %552 = vmatpush1.xpose.msra.mxu0 0.0
      %553 = vmatprep.subr.mxu0 0.0
      %554 = vmatpush1.xpose.msra.mxu0 0.0
      %555 = vmatprep.subr.mxu0 0.0
      %556 = vmatpush1.xpose.msra.mxu0 0.0
      %557 = vmatprep.subr.mxu0 0.0
      %558 = vmatpush1.xpose.msra.mxu0 0.0
      %559 = vmatprep.subr.mxu0 0.0
      %560 = vmatpush1.xpose.msra.mxu0 0.0
      %561 = vmatprep.subr.mxu0 0.0
      %562 = vmatpush1.xpose.msra.mxu0 0.0
      %563 = vmatprep.subr.mxu0 0.0
      %564 = vmatpush1.xpose.msra.mxu0 0.0
      %565 = vmatprep.subr.mxu0 0.0
      %566 = vmatpush1.xpose.msra.mxu0 0.0
      %567 = vmatprep.subr.mxu0 0.0
      %568 = vmatpush1.xpose.msra.mxu0 0.0
      %569 = vmatprep.subr.mxu0 0.0
      %570 = vmatpush1.xpose.msra.mxu0 0.0
      %571 = vmatprep.subr.mxu0 0.0
      %572 = vmatpush1.xpose.msra.mxu0 0.0
      %573 = vmatprep.mubr.f32.mxu0 0.0
      %574 = vmatmul.mubr.f32.gmra.mrb[0].mxu0 %v498
      %v575 = vpop.f32.mrb[0].mxu0
      %v576 = vadd.f32 0.0, %v575
      %v577 = vpop.f32.mrb[0].mxu0
      %578 = vmatprep.mubr.f32.mxu0 0.0
      %579 = vmatmul.mubr.f32.gmra.mrb[0].mxu0 %v501
      %v580 = vpop.f32.mrb[0].mxu0
      %v581 = vadd.f32 0.0, %v580
      %v582 = vpop.f32.mrb[0].mxu0
      %583 = vdwg.mxu0
      %v584 = vmul.f32 %v315, 0.35355338
      %v585 = vmul.f32 %v320, 0.35355338
      %v586 = vmul.f32 %v402, 0.35355338
      %v587 = vmul.f32 %v407, 0.35355338
      %v588 = vmul.f32 %v489, 0.35355338
      %v589 = vmul.f32 %v494, 0.35355338
      %v590 = vmul.f32 %v576, 0.35355338
      %v591 = vmul.f32 %v581, 0.35355338
      %vm592 = vcmask 130048
      %v593 = vsel %vm592, %v584, -inf
      %594 = vmax.xlane.f32.xlu0 %v593
      %v595 = vpop.xlane.xlu0 %594
      %vm596 = vcmask 129024
      %v597 = vsel %vm596, %v585, -inf
      %598 = vmax.xlane.f32.xlu0 %v597
      %v599 = vpop.xlane.xlu0 %598
      %v600 = vsel %vm592, %v586, -inf
      %601 = vmax.xlane.f32.xlu0 %v600
      %v602 = vpop.xlane.xlu0 %601
      %v603 = vsel %vm596, %v587, -inf
      %604 = vmax.xlane.f32.xlu0 %v603
      %v605 = vpop.xlane.xlu0 %604
      %v606 = vsel %vm592, %v588, -inf
      %607 = vmax.xlane.f32.xlu0 %v606
      %v608 = vpop.xlane.xlu0 %607
      %v609 = vsel %vm596, %v589, -inf
      %610 = vmax.xlane.f32.xlu0 %v609
      %v611 = vpop.xlane.xlu0 %610
      %v612 = vsel %vm592, %v590, -inf
      %613 = vmax.xlane.f32.xlu0 %v612
      %v614 = vpop.xlane.xlu0 %613
      %v615 = vsel %vm596, %v591, -inf
      %616 = vmax.xlane.f32.xlu0 %v615
      %v617 = vpop.xlane.xlu0 %616
      %v618 = vsub.f32 %v584, %v595
      %v619 = vsub.f32 %v585, %v599
      %v620 = vsub.f32 %v586, %v602
      %v621 = vsub.f32 %v587, %v605
      %v622 = vsub.f32 %v588, %v608
      %v623 = vsub.f32 %v589, %v611
      %v624 = vsub.f32 %v590, %v614
      %v625 = vsub.f32 %v591, %v617
      %v626 = vmul.f32 %v618, 1.442695
      %v627 = vpow.pop %v626
      %v628 = vmul.f32 %v619, 1.442695
      %v629 = vpow.pop %v628
      %v630 = vmul.f32 %v620, 1.442695
      %v631 = vpow.pop %v630
      %v632 = vmul.f32 %v621, 1.442695
      %v633 = vpow.pop %v632
      %v634 = vmul.f32 %v622, 1.442695
      %v635 = vpow.pop %v634
      %v636 = vmul.f32 %v623, 1.442695
      %v637 = vpow.pop %v636
      %v638 = vmul.f32 %v624, 1.442695
      %v639 = vpow.pop %v638
      %v640 = vmul.f32 %v625, 1.442695
      %v641 = vpow.pop %v640
      %v642 = vsel %vm592, %v627, 0.0
      %643 = vadd.xlane.f32.xlu0 %v642
      %v644 = vpop.xlane.xlu0 %643
      %v645 = vsel %vm596, %v629, 0.0
      %646 = vadd.xlane.f32.xlu0 %v645
      %v647 = vpop.xlane.xlu0 %646
      %v648 = vsel %vm592, %v631, 0.0
      %649 = vadd.xlane.f32.xlu0 %v648
      %v650 = vpop.xlane.xlu0 %649
      %v651 = vsel %vm596, %v633, 0.0
      %652 = vadd.xlane.f32.xlu0 %v651
      %v653 = vpop.xlane.xlu0 %652
      %v654 = vsel %vm592, %v635, 0.0
      %655 = vadd.xlane.f32.xlu0 %v654
      %v656 = vpop.xlane.xlu0 %655
      %v657 = vsel %vm596, %v637, 0.0
      %658 = vadd.xlane.f32.xlu0 %v657
      %v659 = vpop.xlane.xlu0 %658
      %v660 = vsel %vm592, %v639, 0.0
      %661 = vadd.xlane.f32.xlu0 %v660
      %v662 = vpop.xlane.xlu0 %661
      %v663 = vsel %vm596, %v641, 0.0
      %664 = vadd.xlane.f32.xlu0 %v663
      %v665 = vpop.xlane.xlu0 %664
      %v666 = vrcp.pop %v644
      %v667 = vrcp.pop %v647
      %v668 = vrcp.pop %v650
      %v669 = vrcp.pop %v653
      %v670 = vrcp.pop %v656
      %v671 = vrcp.pop %v659
      %v672 = vrcp.pop %v662
      %v673 = vrcp.pop %v665
      %v674 = vmul.f32 %v627, %v666
      %v675 = vmul.f32 %v629, %v667
      %v676 = vmul.f32 %v631, %v668
      %v677 = vmul.f32 %v633, %v669
      %v678 = vmul.f32 %v635, %v670
      %v679 = vmul.f32 %v637, %v671
      %v680 = vmul.f32 %v639, %v672
      %v681 = vmul.f32 %v641, %v673
      %v683 = vsel %vm592, %v674, 0
      %v686 = vsel %vm592, %v675, 0
      %688 = vmatprep.subr.mxu0 0.0
      %689 = vmatpush1.msra.mxu0 %v227
      %690 = vmatprep.subr.mxu0 0.0
      %691 = vmatpush1.msra.mxu0 %v228
      %692 = vmatprep.subr.mxu0 0.0
      %693 = vmatpush1.msra.mxu0 0.0
      %694 = vmatprep.subr.mxu0 0.0
      %695 = vmatpush1.msra.mxu0 0.0
      %696 = vmatprep.subr.mxu0 0.0
      %697 = vmatpush1.msra.mxu0 0.0
      %698 = vmatprep.subr.mxu0 0.0
      %699 = vmatpush1.msra.mxu0 0.0
      %700 = vmatprep.subr.mxu0 0.0
      %701 = vmatpush1.msra.mxu0 0.0
      %702 = vmatprep.subr.mxu0 0.0
      %703 = vmatpush1.msra.mxu0 0.0
      %704 = vmatprep.subr.mxu0 0.0
      %705 = vmatpush1.msra.mxu0 0.0
      %706 = vmatprep.subr.mxu0 0.0
      %707 = vmatpush1.msra.mxu0 0.0
      %708 = vmatprep.subr.mxu0 0.0
      %709 = vmatpush1.msra.mxu0 0.0
      %710 = vmatprep.subr.mxu0 0.0
      %711 = vmatpush1.msra.mxu0 0.0
      %712 = vmatprep.subr.mxu0 0.0
      %713 = vmatpush1.msra.mxu0 0.0
      %714 = vmatprep.subr.mxu0 0.0
      %715 = vmatpush1.msra.mxu0 0.0
      %716 = vmatprep.subr.mxu0 0.0
      %717 = vmatpush1.msra.mxu0 0.0
      %718 = vmatprep.subr.mxu0 0.0
      %719 = vmatpush1.msra.mxu0 0.0
      %720 = vmatprep.subr.mxu0 0.0
      %721 = vmatpush1.msra.mxu0 0.0
      %722 = vmatprep.subr.mxu0 0.0
      %723 = vmatpush1.msra.mxu0 0.0
      %724 = vmatprep.subr.mxu0 0.0
      %725 = vmatpush1.msra.mxu0 0.0
      %726 = vmatprep.subr.mxu0 0.0
      %727 = vmatpush1.msra.mxu0 0.0
      %728 = vmatprep.subr.mxu0 0.0
      %729 = vmatpush1.msra.mxu0 0.0
      %730 = vmatprep.subr.mxu0 0.0
      %731 = vmatpush1.msra.mxu0 0.0
      %732 = vmatprep.subr.mxu0 0.0
      %733 = vmatpush1.msra.mxu0 0.0
      %734 = vmatprep.subr.mxu0 0.0
      %735 = vmatpush1.msra.mxu0 0.0
      %736 = vmatprep.subr.mxu0 0.0
      %737 = vmatpush1.msra.mxu0 0.0
      %738 = vmatprep.subr.mxu0 0.0
      %739 = vmatpush1.msra.mxu0 0.0
      %740 = vmatprep.subr.mxu0 0.0
      %741 = vmatpush1.msra.mxu0 0.0
      %742 = vmatprep.subr.mxu0 0.0
      %743 = vmatpush1.msra.mxu0 0.0
      %744 = vmatprep.subr.mxu0 0.0
      %745 = vmatpush1.msra.mxu0 0.0
      %746 = vmatprep.subr.mxu0 0.0
      %747 = vmatpush1.msra.mxu0 0.0
      %748 = vmatprep.subr.mxu0 0.0
      %749 = vmatpush1.msra.mxu0 0.0
      %750 = vmatprep.subr.mxu0 0.0
      %751 = vmatpush1.msra.mxu0 0.0
      %752 = vmatprep.mubr.f32.mxu0 0.0
      %753 = vmatmul.mubr.f32.gmra.mrb[0].mxu0 %v683
      %v754 = vpop.f32.mrb[0].mxu0
      %v755 = vadd.f32 0.0, %v754
      %v756 = vpop.f32.mrb[0].mxu0
      %757 = vmatprep.mubr.f32.mxu0 0.0
      %758 = vmatmul.mubr.f32.gmra.mrb[0].mxu0 %v686
      %v759 = vpop.f32.mrb[0].mxu0
      %v760 = vadd.f32 0.0, %v759
      %v761 = vpop.f32.mrb[0].mxu0
      %762 = vdwg.mxu0
      %v764 = vsel %vm592, %v676, 0
      %v767 = vsel %vm592, %v677, 0
      %769 = vmatprep.subr.mxu0 0.0
      %770 = vmatpush1.msra.mxu0 %v229
      %771 = vmatprep.subr.mxu0 0.0
      %772 = vmatpush1.msra.mxu0 %v230
      %773 = vmatprep.subr.mxu0 0.0
      %774 = vmatpush1.msra.mxu0 0.0
      %775 = vmatprep.subr.mxu0 0.0
      %776 = vmatpush1.msra.mxu0 0.0
      %777 = vmatprep.subr.mxu0 0.0
      %778 = vmatpush1.msra.mxu0 0.0
      %779 = vmatprep.subr.mxu0 0.0
      %780 = vmatpush1.msra.mxu0 0.0
      %781 = vmatprep.subr.mxu0 0.0
      %782 = vmatpush1.msra.mxu0 0.0
      %783 = vmatprep.subr.mxu0 0.0
      %784 = vmatpush1.msra.mxu0 0.0
      %785 = vmatprep.subr.mxu0 0.0
      %786 = vmatpush1.msra.mxu0 0.0
      %787 = vmatprep.subr.mxu0 0.0
      %788 = vmatpush1.msra.mxu0 0.0
      %789 = vmatprep.subr.mxu0 0.0
      %790 = vmatpush1.msra.mxu0 0.0
      %791 = vmatprep.subr.mxu0 0.0
      %792 = vmatpush1.msra.mxu0 0.0
      %793 = vmatprep.subr.mxu0 0.0
      %794 = vmatpush1.msra.mxu0 0.0
      %795 = vmatprep.subr.mxu0 0.0
      %796 = vmatpush1.msra.mxu0 0.0
      %797 = vmatprep.subr.mxu0 0.0
      %798 = vmatpush1.msra.mxu0 0.0
      %799 = vmatprep.subr.mxu0 0.0
      %800 = vmatpush1.msra.mxu0 0.0
      %801 = vmatprep.subr.mxu0 0.0
      %802 = vmatpush1.msra.mxu0 0.0
      %803 = vmatprep.subr.mxu0 0.0
      %804 = vmatpush1.msra.mxu0 0.0
      %805 = vmatprep.subr.mxu0 0.0
      %806 = vmatpush1.msra.mxu0 0.0
      %807 = vmatprep.subr.mxu0 0.0
      %808 = vmatpush1.msra.mxu0 0.0
      %809 = vmatprep.subr.mxu0 0.0
      %810 = vmatpush1.msra.mxu0 0.0
      %811 = vmatprep.subr.mxu0 0.0
      %812 = vmatpush1.msra.mxu0 0.0
      %813 = vmatprep.subr.mxu0 0.0
      %814 = vmatpush1.msra.mxu0 0.0
      %815 = vmatprep.subr.mxu0 0.0
      %816 = vmatpush1.msra.mxu0 0.0
      %817 = vmatprep.subr.mxu0 0.0
      %818 = vmatpush1.msra.mxu0 0.0
      %819 = vmatprep.subr.mxu0 0.0
      %820 = vmatpush1.msra.mxu0 0.0
      %821 = vmatprep.subr.mxu0 0.0
      %822 = vmatpush1.msra.mxu0 0.0
      %823 = vmatprep.subr.mxu0 0.0
      %824 = vmatpush1.msra.mxu0 0.0
      %825 = vmatprep.subr.mxu0 0.0
      %826 = vmatpush1.msra.mxu0 0.0
      %827 = vmatprep.subr.mxu0 0.0
      %828 = vmatpush1.msra.mxu0 0.0
      %829 = vmatprep.subr.mxu0 0.0
      %830 = vmatpush1.msra.mxu0 0.0
      %831 = vmatprep.subr.mxu0 0.0
      %832 = vmatpush1.msra.mxu0 0.0
      %833 = vmatprep.mubr.f32.mxu0 0.0
      %834 = vmatmul.mubr.f32.gmra.mrb[0].mxu0 %v764
      %v835 = vpop.f32.mrb[0].mxu0
      %v836 = vadd.f32 0.0, %v835
      %v837 = vpop.f32.mrb[0].mxu0
      %838 = vmatprep.mubr.f32.mxu0 0.0
      %839 = vmatmul.mubr.f32.gmra.mrb[0].mxu0 %v767
      %v840 = vpop.f32.mrb[0].mxu0
      %v841 = vadd.f32 0.0, %v840
      %v842 = vpop.f32.mrb[0].mxu0
      %843 = vdwg.mxu0
      %v845 = vsel %vm592, %v678, 0
      %v848 = vsel %vm592, %v679, 0
      %850 = vmatprep.subr.mxu0 0.0
      %851 = vmatpush1.msra.mxu0 %v231
      %852 = vmatprep.subr.mxu0 0.0
      %853 = vmatpush1.msra.mxu0 %v232
      %854 = vmatprep.subr.mxu0 0.0
      %855 = vmatpush1.msra.mxu0 0.0
      %856 = vmatprep.subr.mxu0 0.0
      %857 = vmatpush1.msra.mxu0 0.0
      %858 = vmatprep.subr.mxu0 0.0
      %859 = vmatpush1.msra.mxu0 0.0
      %860 = vmatprep.subr.mxu0 0.0
      %861 = vmatpush1.msra.mxu0 0.0
      %862 = vmatprep.subr.mxu0 0.0
      %863 = vmatpush1.msra.mxu0 0.0
      %864 = vmatprep.subr.mxu0 0.0
      %865 = vmatpush1.msra.mxu0 0.0
      %866 = vmatprep.subr.mxu0 0.0
      %867 = vmatpush1.msra.mxu0 0.0
      %868 = vmatprep.subr.mxu0 0.0
      %869 = vmatpush1.msra.mxu0 0.0
      %870 = vmatprep.subr.mxu0 0.0
      %871 = vmatpush1.msra.mxu0 0.0
      %872 = vmatprep.subr.mxu0 0.0
      %873 = vmatpush1.msra.mxu0 0.0
      %874 = vmatprep.subr.mxu0 0.0
      %875 = vmatpush1.msra.mxu0 0.0
      %876 = vmatprep.subr.mxu0 0.0
      %877 = vmatpush1.msra.mxu0 0.0
      %878 = vmatprep.subr.mxu0 0.0
      %879 = vmatpush1.msra.mxu0 0.0
      %880 = vmatprep.subr.mxu0 0.0
      %881 = vmatpush1.msra.mxu0 0.0
      %882 = vmatprep.subr.mxu0 0.0
      %883 = vmatpush1.msra.mxu0 0.0
      %884 = vmatprep.subr.mxu0 0.0
      %885 = vmatpush1.msra.mxu0 0.0
      %886 = vmatprep.subr.mxu0 0.0
      %887 = vmatpush1.msra.mxu0 0.0
      %888 = vmatprep.subr.mxu0 0.0
      %889 = vmatpush1.msra.mxu0 0.0
      %890 = vmatprep.subr.mxu0 0.0
      %891 = vmatpush1.msra.mxu0 0.0
      %892 = vmatprep.subr.mxu0 0.0
      %893 = vmatpush1.msra.mxu0 0.0
      %894 = vmatprep.subr.mxu0 0.0
      %895 = vmatpush1.msra.mxu0 0.0
      %896 = vmatprep.subr.mxu0 0.0
      %897 = vmatpush1.msra.mxu0 0.0
      %898 = vmatprep.subr.mxu0 0.0
      %899 = vmatpush1.msra.mxu0 0.0
      %900 = vmatprep.subr.mxu0 0.0
      %901 = vmatpush1.msra.mxu0 0.0
      %902 = vmatprep.subr.mxu0 0.0
      %903 = vmatpush1.msra.mxu0 0.0
      %904 = vmatprep.subr.mxu0 0.0
      %905 = vmatpush1.msra.mxu0 0.0
      %906 = vmatprep.subr.mxu0 0.0
      %907 = vmatpush1.msra.mxu0 0.0
      %908 = vmatprep.subr.mxu0 0.0
      %909 = vmatpush1.msra.mxu0 0.0
      %910 = vmatprep.subr.mxu0 0.0
      %911 = vmatpush1.msra.mxu0 0.0
      %912 = vmatprep.subr.mxu0 0.0
      %913 = vmatpush1.msra.mxu0 0.0
      %914 = vmatprep.mubr.f32.mxu0 0.0
      %915 = vmatmul.mubr.f32.gmra.mrb[0].mxu0 %v845
      %v916 = vpop.f32.mrb[0].mxu0
      %v917 = vadd.f32 0.0, %v916
      %v918 = vpop.f32.mrb[0].mxu0
      %919 = vmatprep.mubr.f32.mxu0 0.0
      %920 = vmatmul.mubr.f32.gmra.mrb[0].mxu0 %v848
      %v921 = vpop.f32.mrb[0].mxu0
      %v922 = vadd.f32 0.0, %v921
      %v923 = vpop.f32.mrb[0].mxu0
      %924 = vdwg.mxu0
      %v926 = vsel %vm592, %v680, 0
      %v929 = vsel %vm592, %v681, 0
      %931 = vmatprep.subr.mxu0 0.0
      %932 = vmatpush1.msra.mxu0 %v233
      %933 = vmatprep.subr.mxu0 0.0
      %934 = vmatpush1.msra.mxu0 %v234
      %935 = vmatprep.subr.mxu0 0.0
      %936 = vmatpush1.msra.mxu0 0.0
      %937 = vmatprep.subr.mxu0 0.0
      %938 = vmatpush1.msra.mxu0 0.0
      %939 = vmatprep.subr.mxu0 0.0
      %940 = vmatpush1.msra.mxu0 0.0
      %941 = vmatprep.subr.mxu0 0.0
      %942 = vmatpush1.msra.mxu0 0.0
      %943 = vmatprep.subr.mxu0 0.0
      %944 = vmatpush1.msra.mxu0 0.0
      %945 = vmatprep.subr.mxu0 0.0
      %946 = vmatpush1.msra.mxu0 0.0
      %947 = vmatprep.subr.mxu0 0.0
      %948 = vmatpush1.msra.mxu0 0.0
      %949 = vmatprep.subr.mxu0 0.0
      %950 = vmatpush1.msra.mxu0 0.0
      %951 = vmatprep.subr.mxu0 0.0
      %952 = vmatpush1.msra.mxu0 0.0
      %953 = vmatprep.subr.mxu0 0.0
      %954 = vmatpush1.msra.mxu0 0.0
      %955 = vmatprep.subr.mxu0 0.0
      %956 = vmatpush1.msra.mxu0 0.0
      %957 = vmatprep.subr.mxu0 0.0
      %958 = vmatpush1.msra.mxu0 0.0
      %959 = vmatprep.subr.mxu0 0.0
      %960 = vmatpush1.msra.mxu0 0.0
      %961 = vmatprep.subr.mxu0 0.0
      %962 = vmatpush1.msra.mxu0 0.0
      %963 = vmatprep.subr.mxu0 0.0
      %964 = vmatpush1.msra.mxu0 0.0
      %965 = vmatprep.subr.mxu0 0.0
      %966 = vmatpush1.msra.mxu0 0.0
      %967 = vmatprep.subr.mxu0 0.0
      %968 = vmatpush1.msra.mxu0 0.0
      %969 = vmatprep.subr.mxu0 0.0
      %970 = vmatpush1.msra.mxu0 0.0
      %971 = vmatprep.subr.mxu0 0.0
      %972 = vmatpush1.msra.mxu0 0.0
      %973 = vmatprep.subr.mxu0 0.0
      %974 = vmatpush1.msra.mxu0 0.0
      %975 = vmatprep.subr.mxu0 0.0
      %976 = vmatpush1.msra.mxu0 0.0
      %977 = vmatprep.subr.mxu0 0.0
      %978 = vmatpush1.msra.mxu0 0.0
      %979 = vmatprep.subr.mxu0 0.0
      %980 = vmatpush1.msra.mxu0 0.0
      %981 = vmatprep.subr.mxu0 0.0
      %982 = vmatpush1.msra.mxu0 0.0
      %983 = vmatprep.subr.mxu0 0.0
      %984 = vmatpush1.msra.mxu0 0.0
      %985 = vmatprep.subr.mxu0 0.0
      %986 = vmatpush1.msra.mxu0 0.0
      %987 = vmatprep.subr.mxu0 0.0
      %988 = vmatpush1.msra.mxu0 0.0
      %989 = vmatprep.subr.mxu0 0.0
      %990 = vmatpush1.msra.mxu0 0.0
      %991 = vmatprep.subr.mxu0 0.0
      %992 = vmatpush1.msra.mxu0 0.0
      %993 = vmatprep.subr.mxu0 0.0
      %994 = vmatpush1.msra.mxu0 0.0
      %995 = vmatprep.mubr.f32.mxu0 0.0
      %996 = vmatmul.mubr.f32.gmra.mrb[0].mxu0 %v926
      %v997 = vpop.f32.mrb[0].mxu0
      %v998 = vadd.f32 0.0, %v997
      %v999 = vpop.f32.mrb[0].mxu0
      %1000 = vmatprep.mubr.f32.mxu0 0.0
      %1001 = vmatmul.mubr.f32.gmra.mrb[0].mxu0 %v929
      %v1002 = vpop.f32.mrb[0].mxu0
      %v1003 = vadd.f32 0.0, %v1002
      %v1004 = vpop.f32.mrb[0].mxu0
      %1005 = vdwg.mxu0
      %1006 = vst.msk [vmem:[%s210] sm:$0xff] %vm235, %v755
      %vm1007 = vcmask 63488
      %1008 = vst.msk [vmem:[%s210 + $0x8] sm:$0x7f] %vm1007, %v760
      %1009 = vst.msk [vmem:[%s210 + $0x10] sm:$0xff] %vm235, %v836
      %1010 = vst.msk [vmem:[%s210 + $0x18] sm:$0x7f] %vm1007, %v841
      %1011 = vst.msk [vmem:[%s210 + $0x20] sm:$0xff] %vm235, %v917
      %1012 = vst.msk [vmem:[%s210 + $0x28] sm:$0x7f] %vm1007, %v922
      %1013 = vst.msk [vmem:[%s210 + $0x30] sm:$0xff] %vm235, %v998
      %1014 = vst.msk [vmem:[%s210 + $0x38] sm:$0x7f] %vm1007, %v1003
      %p1015 = scmp.lt.s32.totalorder %s14, 1
      %s1016 = scalar_select %p1015, %s14, 1
      %s1017 = smul.addr %s1016, 8
      %s1018 = smul.addr %s1017, 8
      %s1019 = scalar_lea.vmem %s3, %s1018
      // Predicated region
      $region33: #{multi_head_attention.6} parent=31 // pred_check
        %p1020 = pneg %p110
      $region34: #{multi_head_attention.6} parent=31 // pred_check_branch
        %1022 = sbr.rel (%p1020) target = $region36
      $region35: #{multi_head_attention.6} parent=31 // pred_region
        _
      $region36: #{multi_head_attention.6} parent=31 // pred_fallthru
        _
    $region32: #{multi_head_attention.6} parent=5 // pred_fallthru
      _
    %p1023 = scmp.le.s32.totalorder 2, %s9
    // Predicated region
    $region37: #{multi_head_attention.6} parent=5 // pred_check
      %p1024 = pneg %p1023
    $region38: #{multi_head_attention.6} parent=5 // pred_check_branch
      %1026 = sbr.rel (%p1024) target = $region40
    $region39: #{multi_head_attention.6} parent=5 // pred_region
      %s1027 = ssub.s32 %s9, 2
      // Predicated region
      $region41: #{multi_head_attention.6} parent=39 // pred_check
        %p1028 = pneg %p116
      $region42: #{multi_head_attention.6} parent=39 // pred_check_branch
        %1030 = sbr.rel (%p1028) target = $region44
      $region43: #{multi_head_attention.6} parent=39 // pred_region
        %p1031 = scmp.lt.s32.totalorder %s15, 1
        %s1032 = scalar_select %p1031, %s15, 1
        %s1033 = smul.addr %s1032, 8
        %s1034 = smul.addr %s1033, 8
        %s1035 = scalar_lea.vmem %s3, %s1034
      $region44: #{multi_head_attention.6} parent=39 // pred_fallthru
        _
    $region40: #{multi_head_attention.6} parent=5 // pred_fallthru
      _
  $region6: #{multi_head_attention.6} parent=0 // loop_footer
    %s13 = sadd.s32 1, %s9
  $region7: #{multi_head_attention.6} parent=0 // loop_footer_branch
    %8 = sbr.rel target = $region3
  $region8: #{multi_head_attention.6} parent=0 // loop_exit
    _

</llo_original>
